<compile_context>
chip_gen: v5e
topology: v5e:2x2
jax: 0.10.0
libtpu: 0.0.40
codegen_flags: <defaults>
</compile_context>

<pallas_src>
import functools

import jax
import jax.numpy as jnp
from jax.experimental import pallas as pl
from jax.experimental.pallas import tpu as pltpu

INPUT_SIZE = 784
HIDDEN_SIZE = 256
NUM_LAYERS = 10
OUT_SIZE = 10
OUT_PAD = 128  # lane-dense padded head width


def _round_up(x, m):
    return ((x + m - 1) // m) * m


def _cdiv(a, b):
    return -(-a // b)


def _use_bf16_activations():
    """bf16 VPU/EUP exists on v6e/v7x; v5e and older emulate bf16 -> keep f32 there."""
    try:
        kind = jax.devices()[0].device_kind.lower()
    except Exception:  # pragma: no cover - be conservative if detection fails
        return False
    return ("v6" in kind) or ("v7" in kind)


def _activate(acc_f32, bias_f32, use_bf16_act):
    """sigmoid(x) = 0.5*tanh(0.5*x) + 0.5 (single EUP transcendental). Returns bf16."""
    if use_bf16_act:
        h = acc_f32.astype(jnp.bfloat16) + bias_f32.astype(jnp.bfloat16)
        return jnp.tanh(h * 0.5) * 0.5 + 0.5  # all bf16 (2x packed VPU/EUP rate)
    h = acc_f32 + bias_f32
    return (jnp.tanh(h * 0.5) * 0.5 + 0.5).astype(jnp.bfloat16)


def mlp_kernel(x_ref, w0_ref, b0_ref, wh_ref, bh_ref, wo_ref, bo_ref, o_ref,
               *, n_sub, use_bf16_act):
    tb = x_ref.shape[0]
    tsub = tb // n_sub

    b0 = b0_ref[...]
    bo = bo_ref[...]
    w0 = w0_ref[...]

    # Row sub-blocks of the batch tile: layer-outer / sub-block-inner ordering lets the
    # scheduler overlap the MXU matmul of sub-block k+1 with the bias+sigmoid of sub-block k.
    subs = [x_ref[pl.ds(k * tsub, tsub), :] for k in range(n_sub)]

    # Layer 0: (tsub, 784)bf16 @ (784, 256)bf16 -> f32 acc.
    subs = [_activate(jnp.dot(s, w0, preferred_element_type=jnp.float32), b0, use_bf16_act)
            for s in subs]

    # Hidden layers 1..NUM_LAYERS-1: (tsub, 256) @ (256, 256). Static unroll (small fixed count).
    for i in range(NUM_LAYERS - 1):
        w = wh_ref[i]
        b = bh_ref[i]
        subs = [_activate(jnp.dot(s, w, preferred_element_type=jnp.float32), b, use_bf16_act)
                for s in subs]

    # Output head: (tsub, 256) @ (256, 128-padded) + (1, 128-padded). No activation.
    wo = wo_ref[...]
    for k in range(n_sub):
        o_ref[pl.ds(k * tsub, tsub), :] = (
            jnp.dot(subs[k], wo, preferred_element_type=jnp.float32) + bo
        ).astype(o_ref.dtype)


def _choose_tiling(batch, block_batch):
    kind = ""
    try:
        kind = jax.devices()[0].device_kind.lower()
    except Exception:
        pass
    num_tiles = max(1, _cdiv(batch, block_batch))
    # v7x has two TensorCores: make sure the "parallel" batch axis has >= 2 grid steps.
    if "v7" in kind and num_tiles == 1 and batch > 8:
        num_tiles = 2
    tb = _round_up(_cdiv(batch, num_tiles), 8)  # sublane multiple, even split (no wasted tile)
    padded = tb * num_tiles
    # Sub-block count: keep sub-blocks >= 64 rows and a multiple of 8 sublanes.
    n_sub = 1
    for cand in (4, 2):
        if tb % (8 * cand) == 0 and tb // cand >= 64:
            n_sub = cand
            break
    return tb, padded, n_sub


def vanishing_gradient_net(x, params, *, block_batch=512, use_bf16_act=None):
    """x: (batch, 784) float32. Returns (batch, 10) float32."""
    if use_bf16_act is None:
        use_bf16_act = _use_bf16_activations()
    w0, b0, wh, bh, wo_p, bo_p = params
    batch = x.shape[0]

    tb, padded, n_sub = _choose_tiling(batch, block_batch)
    if padded != batch:
        x = jnp.pad(x, ((0, padded - batch), (0, 0)))
    x = x.astype(jnp.bfloat16)

    kernel = functools.partial(mlp_kernel, n_sub=n_sub, use_bf16_act=use_bf16_act)
    grid = (padded // tb,)
    out = pl.pallas_call(
        kernel,
        out_shape=jax.ShapeDtypeStruct((padded, OUT_PAD), jnp.float32),
        grid_spec=pltpu.PrefetchScalarGridSpec(
            num_scalar_prefetch=0,
            grid=grid,
            in_specs=[
                # batch-tiled input
                pl.BlockSpec((tb, INPUT_SIZE), lambda i: (i, 0)),
                # weights/biases: constant index_map -> resident across grid steps
                pl.BlockSpec((INPUT_SIZE, HIDDEN_SIZE), lambda i: (0, 0)),
                pl.BlockSpec((1, HIDDEN_SIZE), lambda i: (0, 0)),
                pl.BlockSpec((NUM_LAYERS - 1, HIDDEN_SIZE, HIDDEN_SIZE), lambda i: (0, 0, 0)),
                pl.BlockSpec((NUM_LAYERS - 1, 1, HIDDEN_SIZE), lambda i: (0, 0, 0)),
                pl.BlockSpec((HIDDEN_SIZE, OUT_PAD), lambda i: (0, 0)),
                pl.BlockSpec((1, OUT_PAD), lambda i: (0, 0)),
            ],
            out_specs=pl.BlockSpec((tb, OUT_PAD), lambda i: (i, 0)),
        ),
        compiler_params=pltpu.CompilerParams(
            dimension_semantics=("parallel",),
        ),
    )(x, w0, b0, wh, bh, wo_p, bo_p)
    # Strip batch padding and the lane padding of the head.
    return out[:batch, :OUT_SIZE]


def init_params(key):
    """Deterministic init mimicking PyTorch nn.Linear default U(-1/sqrt(fan_in), +1/sqrt(fan_in)).

    Weights are stored pre-transposed as (in, out) and cast to bf16; biases stay f32.
    The output head is zero-padded to OUT_PAD lanes for lane-dense stores.
    """
    keys = jax.random.split(key, 2 * (NUM_LAYERS + 1))

    def uniform(k, shape, fan_in):
        bound = 1.0 / jnp.sqrt(jnp.float32(fan_in))
        return jax.random.uniform(k, shape, jnp.float32, -bound, bound)

    # layer 0: 784 -> 256
    w0 = uniform(keys[0], (INPUT_SIZE, HIDDEN_SIZE), INPUT_SIZE).astype(jnp.bfloat16)
    b0 = uniform(keys[1], (1, HIDDEN_SIZE), INPUT_SIZE)
    # layers 1..9: stacked (9, 256, 256) bf16 / (9, 1, 256) f32
    wh = jnp.stack(
        [uniform(keys[2 + 2 * i], (HIDDEN_SIZE, HIDDEN_SIZE), HIDDEN_SIZE)
         for i in range(NUM_LAYERS - 1)]
    ).astype(jnp.bfloat16)
    bh = jnp.stack(
        [uniform(keys[3 + 2 * i], (1, HIDDEN_SIZE), HIDDEN_SIZE)
         for i in range(NUM_LAYERS - 1)]
    )
    # output head: 256 -> 10, zero-padded to 128 lanes
    wo = uniform(keys[2 * NUM_LAYERS], (HIDDEN_SIZE, OUT_SIZE), HIDDEN_SIZE)
    bo = uniform(keys[2 * NUM_LAYERS + 1], (1, OUT_SIZE), HIDDEN_SIZE)
    wo_p = jnp.zeros((HIDDEN_SIZE, OUT_PAD), jnp.float32).at[:, :OUT_SIZE].set(wo)
    wo_p = wo_p.astype(jnp.bfloat16)
    bo_p = jnp.zeros((1, OUT_PAD), jnp.float32).at[:, :OUT_SIZE].set(bo)
    return w0, b0, wh, bh, wo_p, bo_p


def reference_forward(x, params, *, use_bf16_act):
    """Pure-JAX reference using the same bf16-weights / f32-accumulation / tanh-sigmoid math."""
    w0, b0, wh, bh, wo_p, bo_p = params
    h = _activate(jnp.dot(x.astype(jnp.bfloat16), w0, preferred_element_type=jnp.float32),
                  b0, use_bf16_act)
    for i in range(NUM_LAYERS - 1):
        h = _activate(jnp.dot(h, wh[i], preferred_element_type=jnp.float32),
                      bh[i], use_bf16_act)
    out = jnp.dot(h, wo_p, preferred_element_type=jnp.float32) + bo_p
    return out[:, :OUT_SIZE]


if __name__ == "__main__":
    key = jax.random.PRNGKey(0)
    pkey, xkey = jax.random.split(key)
    params = init_params(pkey)

    # Small shapes: batch=40, batch tile=16 -> 3 grid steps (exercises batch padding + pipeline).
    batch = 40
    x = jax.random.normal(xkey, (batch, INPUT_SIZE), jnp.float32)

    use_bf16_act = _use_bf16_activations()
    out = vanishing_gradient_net(x, params, block_batch=16, use_bf16_act=use_bf16_act)
    out = jax.block_until_ready(out)

    ref = reference_forward(x, params, use_bf16_act=use_bf16_act)
    assert out.shape == (batch, OUT_SIZE)
    # bf16 matmul inputs / f32 accumulation / identical tanh-sigmoid formula on both sides.
    assert jnp.allclose(out, ref, atol=3e-2, rtol=3e-2), "Pallas output mismatch vs reference"

    print("KERNEL_OK")
</pallas_src>

<mosaic_0001>
module attributes {stable_mosaic.version = 11 : i64} {
  func.func @mlp_kernel(%arg0: i32, %arg1: memref<16x784xbf16, #tpu.memory_space<vmem>>, %arg2: memref<784x256xbf16, #tpu.memory_space<vmem>>, %arg3: memref<1x256xf32, #tpu.memory_space<vmem>>, %arg4: memref<9x256x256xbf16, #tpu.memory_space<vmem>>, %arg5: memref<9x1x256xf32, #tpu.memory_space<vmem>>, %arg6: memref<256x128xbf16, #tpu.memory_space<vmem>>, %arg7: memref<1x128xf32, #tpu.memory_space<vmem>>, %arg8: memref<16x128xf32, #tpu.memory_space<vmem>>) attributes {dimension_semantics = [#tpu.dimension_semantics<parallel>], iteration_bounds = array<i64: 3>, scalar_prefetch = 0 : i64, scratch_operands = 0 : i64, tpu.core_type = #tpu.core_type<tc>, window_params = [{transform_indices = @transform_0, window_bounds = array<i64: 16, 784>}, {pipeline_mode = #tpu.pipeline_mode<synchronous>, transform_indices = @transform_1, window_bounds = array<i64: 784, 256>}, {pipeline_mode = #tpu.pipeline_mode<synchronous>, transform_indices = @transform_2, window_bounds = array<i64: 1, 256>}, {pipeline_mode = #tpu.pipeline_mode<synchronous>, transform_indices = @transform_3, window_bounds = array<i64: 9, 256, 256>}, {pipeline_mode = #tpu.pipeline_mode<synchronous>, transform_indices = @transform_4, window_bounds = array<i64: 9, 1, 256>}, {pipeline_mode = #tpu.pipeline_mode<synchronous>, transform_indices = @transform_5, window_bounds = array<i64: 256, 128>}, {pipeline_mode = #tpu.pipeline_mode<synchronous>, transform_indices = @transform_6, window_bounds = array<i64: 1, 128>}, {transform_indices = @transform_7, window_bounds = array<i64: 16, 128>}]} {
    %c0 = arith.constant 0 : index
    %c0_0 = arith.constant 0 : index
    %0 = vector.load %arg3[%c0, %c0_0] : memref<1x256xf32, #tpu.memory_space<vmem>>, vector<1x256xf32>
    %c0_1 = arith.constant 0 : index
    %c0_2 = arith.constant 0 : index
    %1 = vector.load %arg7[%c0_1, %c0_2] : memref<1x128xf32, #tpu.memory_space<vmem>>, vector<1x128xf32>
    %c0_3 = arith.constant 0 : index
    %c0_4 = arith.constant 0 : index
    %2 = vector.load %arg2[%c0_3, %c0_4] : memref<784x256xbf16, #tpu.memory_space<vmem>>, vector<784x256xbf16>
    %c0_5 = arith.constant 0 : index
    %c0_6 = arith.constant 0 : index
    %3 = vector.load %arg1[%c0_5, %c0_6] : memref<16x784xbf16, #tpu.memory_space<vmem>>, vector<16x784xbf16>
    %cst = arith.constant dense<0.000000e+00> : vector<16x256xf32>
    %4 = tpu.matmul %3, %2, %cst {dimension_numbers = #tpu.dot_dimension_numbers<[1], [0], [0], [1], [0, 0, 1, 1], [], []>} : vector<16x784xbf16>, vector<784x256xbf16>, vector<16x256xf32> -> vector<16x256xf32>
    %5 = vector.broadcast %0 : vector<1x256xf32> to vector<16x256xf32>
    %6 = arith.addf %4, %5 : vector<16x256xf32>
    %cst_7 = arith.constant 5.000000e-01 : f32
    %7 = vector.broadcast %cst_7 : f32 to vector<16x256xf32>
    %8 = arith.mulf %6, %7 : vector<16x256xf32>
    %9 = math.tanh %8 : vector<16x256xf32>
    %cst_8 = arith.constant 5.000000e-01 : f32
    %10 = vector.broadcast %cst_8 : f32 to vector<16x256xf32>
    %11 = arith.mulf %9, %10 : vector<16x256xf32>
    %cst_9 = arith.constant 5.000000e-01 : f32
    %12 = vector.broadcast %cst_9 : f32 to vector<16x256xf32>
    %13 = arith.addf %11, %12 : vector<16x256xf32>
    %14 = arith.truncf %13 : vector<16x256xf32> to vector<16x256xbf16>
    %c0_10 = arith.constant 0 : index
    %c0_11 = arith.constant 0 : index
    %c0_12 = arith.constant 0 : index
    %15 = vector.load %arg4[%c0_10, %c0_11, %c0_12] : memref<9x256x256xbf16, #tpu.memory_space<vmem>>, vector<1x256x256xbf16>
    %16 = vector.shape_cast %15 : vector<1x256x256xbf16> to vector<256x256xbf16>
    %c0_13 = arith.constant 0 : index
    %c0_14 = arith.constant 0 : index
    %c0_15 = arith.constant 0 : index
    %17 = vector.load %arg5[%c0_13, %c0_14, %c0_15] : memref<9x1x256xf32, #tpu.memory_space<vmem>>, vector<1x1x256xf32>
    %18 = vector.shape_cast %17 : vector<1x1x256xf32> to vector<1x256xf32>
    %cst_16 = arith.constant dense<0.000000e+00> : vector<16x256xf32>
    %19 = tpu.matmul %14, %16, %cst_16 {dimension_numbers = #tpu.dot_dimension_numbers<[1], [0], [0], [1], [0, 0, 1, 1], [], []>} : vector<16x256xbf16>, vector<256x256xbf16>, vector<16x256xf32> -> vector<16x256xf32>
    %20 = vector.broadcast %18 : vector<1x256xf32> to vector<16x256xf32>
    %21 = arith.addf %19, %20 : vector<16x256xf32>
    %cst_17 = arith.constant 5.000000e-01 : f32
    %22 = vector.broadcast %cst_17 : f32 to vector<16x256xf32>
    %23 = arith.mulf %21, %22 : vector<16x256xf32>
    %24 = math.tanh %23 : vector<16x256xf32>
    %cst_18 = arith.constant 5.000000e-01 : f32
    %25 = vector.broadcast %cst_18 : f32 to vector<16x256xf32>
    %26 = arith.mulf %24, %25 : vector<16x256xf32>
    %cst_19 = arith.constant 5.000000e-01 : f32
    %27 = vector.broadcast %cst_19 : f32 to vector<16x256xf32>
    %28 = arith.addf %26, %27 : vector<16x256xf32>
    %29 = arith.truncf %28 : vector<16x256xf32> to vector<16x256xbf16>
    %c1 = arith.constant 1 : index
    %c0_20 = arith.constant 0 : index
    %c0_21 = arith.constant 0 : index
    %30 = vector.load %arg4[%c1, %c0_20, %c0_21] : memref<9x256x256xbf16, #tpu.memory_space<vmem>>, vector<1x256x256xbf16>
    %31 = vector.shape_cast %30 : vector<1x256x256xbf16> to vector<256x256xbf16>
    %c1_22 = arith.constant 1 : index
    %c0_23 = arith.constant 0 : index
    %c0_24 = arith.constant 0 : index
    %32 = vector.load %arg5[%c1_22, %c0_23, %c0_24] : memref<9x1x256xf32, #tpu.memory_space<vmem>>, vector<1x1x256xf32>
    %33 = vector.shape_cast %32 : vector<1x1x256xf32> to vector<1x256xf32>
    %cst_25 = arith.constant dense<0.000000e+00> : vector<16x256xf32>
    %34 = tpu.matmul %29, %31, %cst_25 {dimension_numbers = #tpu.dot_dimension_numbers<[1], [0], [0], [1], [0, 0, 1, 1], [], []>} : vector<16x256xbf16>, vector<256x256xbf16>, vector<16x256xf32> -> vector<16x256xf32>
    %35 = vector.broadcast %33 : vector<1x256xf32> to vector<16x256xf32>
    %36 = arith.addf %34, %35 : vector<16x256xf32>
    %cst_26 = arith.constant 5.000000e-01 : f32
    %37 = vector.broadcast %cst_26 : f32 to vector<16x256xf32>
    %38 = arith.mulf %36, %37 : vector<16x256xf32>
    %39 = math.tanh %38 : vector<16x256xf32>
    %cst_27 = arith.constant 5.000000e-01 : f32
    %40 = vector.broadcast %cst_27 : f32 to vector<16x256xf32>
    %41 = arith.mulf %39, %40 : vector<16x256xf32>
    %cst_28 = arith.constant 5.000000e-01 : f32
    %42 = vector.broadcast %cst_28 : f32 to vector<16x256xf32>
    %43 = arith.addf %41, %42 : vector<16x256xf32>
    %44 = arith.truncf %43 : vector<16x256xf32> to vector<16x256xbf16>
    %c2 = arith.constant 2 : index
    %c0_29 = arith.constant 0 : index
    %c0_30 = arith.constant 0 : index
    %45 = vector.load %arg4[%c2, %c0_29, %c0_30] : memref<9x256x256xbf16, #tpu.memory_space<vmem>>, vector<1x256x256xbf16>
    %46 = vector.shape_cast %45 : vector<1x256x256xbf16> to vector<256x256xbf16>
    %c2_31 = arith.constant 2 : index
    %c0_32 = arith.constant 0 : index
    %c0_33 = arith.constant 0 : index
    %47 = vector.load %arg5[%c2_31, %c0_32, %c0_33] : memref<9x1x256xf32, #tpu.memory_space<vmem>>, vector<1x1x256xf32>
    %48 = vector.shape_cast %47 : vector<1x1x256xf32> to vector<1x256xf32>
    %cst_34 = arith.constant dense<0.000000e+00> : vector<16x256xf32>
    %49 = tpu.matmul %44, %46, %cst_34 {dimension_numbers = #tpu.dot_dimension_numbers<[1], [0], [0], [1], [0, 0, 1, 1], [], []>} : vector<16x256xbf16>, vector<256x256xbf16>, vector<16x256xf32> -> vector<16x256xf32>
    %50 = vector.broadcast %48 : vector<1x256xf32> to vector<16x256xf32>
    %51 = arith.addf %49, %50 : vector<16x256xf32>
    %cst_35 = arith.constant 5.000000e-01 : f32
    %52 = vector.broadcast %cst_35 : f32 to vector<16x256xf32>
    %53 = arith.mulf %51, %52 : vector<16x256xf32>
    %54 = math.tanh %53 : vector<16x256xf32>
    %cst_36 = arith.constant 5.000000e-01 : f32
    %55 = vector.broadcast %cst_36 : f32 to vector<16x256xf32>
    %56 = arith.mulf %54, %55 : vector<16x256xf32>
    %cst_37 = arith.constant 5.000000e-01 : f32
    %57 = vector.broadcast %cst_37 : f32 to vector<16x256xf32>
    %58 = arith.addf %56, %57 : vector<16x256xf32>
    %59 = arith.truncf %58 : vector<16x256xf32> to vector<16x256xbf16>
    %c3 = arith.constant 3 : index
    %c0_38 = arith.constant 0 : index
    %c0_39 = arith.constant 0 : index
    %60 = vector.load %arg4[%c3, %c0_38, %c0_39] : memref<9x256x256xbf16, #tpu.memory_space<vmem>>, vector<1x256x256xbf16>
    %61 = vector.shape_cast %60 : vector<1x256x256xbf16> to vector<256x256xbf16>
    %c3_40 = arith.constant 3 : index
    %c0_41 = arith.constant 0 : index
    %c0_42 = arith.constant 0 : index
    %62 = vector.load %arg5[%c3_40, %c0_41, %c0_42] : memref<9x1x256xf32, #tpu.memory_space<vmem>>, vector<1x1x256xf32>
    %63 = vector.shape_cast %62 : vector<1x1x256xf32> to vector<1x256xf32>
    %cst_43 = arith.constant dense<0.000000e+00> : vector<16x256xf32>
    %64 = tpu.matmul %59, %61, %cst_43 {dimension_numbers = #tpu.dot_dimension_numbers<[1], [0], [0], [1], [0, 0, 1, 1], [], []>} : vector<16x256xbf16>, vector<256x256xbf16>, vector<16x256xf32> -> vector<16x256xf32>
    %65 = vector.broadcast %63 : vector<1x256xf32> to vector<16x256xf32>
    %66 = arith.addf %64, %65 : vector<16x256xf32>
    %cst_44 = arith.constant 5.000000e-01 : f32
    %67 = vector.broadcast %cst_44 : f32 to vector<16x256xf32>
    %68 = arith.mulf %66, %67 : vector<16x256xf32>
    %69 = math.tanh %68 : vector<16x256xf32>
    %cst_45 = arith.constant 5.000000e-01 : f32
    %70 = vector.broadcast %cst_45 : f32 to vector<16x256xf32>
    %71 = arith.mulf %69, %70 : vector<16x256xf32>
    %cst_46 = arith.constant 5.000000e-01 : f32
    %72 = vector.broadcast %cst_46 : f32 to vector<16x256xf32>
    %73 = arith.addf %71, %72 : vector<16x256xf32>
    %74 = arith.truncf %73 : vector<16x256xf32> to vector<16x256xbf16>
    %c4 = arith.constant 4 : index
    %c0_47 = arith.constant 0 : index
    %c0_48 = arith.constant 0 : index
    %75 = vector.load %arg4[%c4, %c0_47, %c0_48] : memref<9x256x256xbf16, #tpu.memory_space<vmem>>, vector<1x256x256xbf16>
    %76 = vector.shape_cast %75 : vector<1x256x256xbf16> to vector<256x256xbf16>
    %c4_49 = arith.constant 4 : index
    %c0_50 = arith.constant 0 : index
    %c0_51 = arith.constant 0 : index
    %77 = vector.load %arg5[%c4_49, %c0_50, %c0_51] : memref<9x1x256xf32, #tpu.memory_space<vmem>>, vector<1x1x256xf32>
    %78 = vector.shape_cast %77 : vector<1x1x256xf32> to vector<1x256xf32>
    %cst_52 = arith.constant dense<0.000000e+00> : vector<16x256xf32>
    %79 = tpu.matmul %74, %76, %cst_52 {dimension_numbers = #tpu.dot_dimension_numbers<[1], [0], [0], [1], [0, 0, 1, 1], [], []>} : vector<16x256xbf16>, vector<256x256xbf16>, vector<16x256xf32> -> vector<16x256xf32>
    %80 = vector.broadcast %78 : vector<1x256xf32> to vector<16x256xf32>
    %81 = arith.addf %79, %80 : vector<16x256xf32>
    %cst_53 = arith.constant 5.000000e-01 : f32
    %82 = vector.broadcast %cst_53 : f32 to vector<16x256xf32>
    %83 = arith.mulf %81, %82 : vector<16x256xf32>
    %84 = math.tanh %83 : vector<16x256xf32>
    %cst_54 = arith.constant 5.000000e-01 : f32
    %85 = vector.broadcast %cst_54 : f32 to vector<16x256xf32>
    %86 = arith.mulf %84, %85 : vector<16x256xf32>
    %cst_55 = arith.constant 5.000000e-01 : f32
    %87 = vector.broadcast %cst_55 : f32 to vector<16x256xf32>
    %88 = arith.addf %86, %87 : vector<16x256xf32>
    %89 = arith.truncf %88 : vector<16x256xf32> to vector<16x256xbf16>
    %c5 = arith.constant 5 : index
    %c0_56 = arith.constant 0 : index
    %c0_57 = arith.constant 0 : index
    %90 = vector.load %arg4[%c5, %c0_56, %c0_57] : memref<9x256x256xbf16, #tpu.memory_space<vmem>>, vector<1x256x256xbf16>
    %91 = vector.shape_cast %90 : vector<1x256x256xbf16> to vector<256x256xbf16>
    %c5_58 = arith.constant 5 : index
    %c0_59 = arith.constant 0 : index
    %c0_60 = arith.constant 0 : index
    %92 = vector.load %arg5[%c5_58, %c0_59, %c0_60] : memref<9x1x256xf32, #tpu.memory_space<vmem>>, vector<1x1x256xf32>
    %93 = vector.shape_cast %92 : vector<1x1x256xf32> to vector<1x256xf32>
    %cst_61 = arith.constant dense<0.000000e+00> : vector<16x256xf32>
    %94 = tpu.matmul %89, %91, %cst_61 {dimension_numbers = #tpu.dot_dimension_numbers<[1], [0], [0], [1], [0, 0, 1, 1], [], []>} : vector<16x256xbf16>, vector<256x256xbf16>, vector<16x256xf32> -> vector<16x256xf32>
    %95 = vector.broadcast %93 : vector<1x256xf32> to vector<16x256xf32>
    %96 = arith.addf %94, %95 : vector<16x256xf32>
    %cst_62 = arith.constant 5.000000e-01 : f32
    %97 = vector.broadcast %cst_62 : f32 to vector<16x256xf32>
    %98 = arith.mulf %96, %97 : vector<16x256xf32>
    %99 = math.tanh %98 : vector<16x256xf32>
    %cst_63 = arith.constant 5.000000e-01 : f32
    %100 = vector.broadcast %cst_63 : f32 to vector<16x256xf32>
    %101 = arith.mulf %99, %100 : vector<16x256xf32>
    %cst_64 = arith.constant 5.000000e-01 : f32
    %102 = vector.broadcast %cst_64 : f32 to vector<16x256xf32>
    %103 = arith.addf %101, %102 : vector<16x256xf32>
    %104 = arith.truncf %103 : vector<16x256xf32> to vector<16x256xbf16>
    %c6 = arith.constant 6 : index
    %c0_65 = arith.constant 0 : index
    %c0_66 = arith.constant 0 : index
    %105 = vector.load %arg4[%c6, %c0_65, %c0_66] : memref<9x256x256xbf16, #tpu.memory_space<vmem>>, vector<1x256x256xbf16>
    %106 = vector.shape_cast %105 : vector<1x256x256xbf16> to vector<256x256xbf16>
    %c6_67 = arith.constant 6 : index
    %c0_68 = arith.constant 0 : index
    %c0_69 = arith.constant 0 : index
    %107 = vector.load %arg5[%c6_67, %c0_68, %c0_69] : memref<9x1x256xf32, #tpu.memory_space<vmem>>, vector<1x1x256xf32>
    %108 = vector.shape_cast %107 : vector<1x1x256xf32> to vector<1x256xf32>
    %cst_70 = arith.constant dense<0.000000e+00> : vector<16x256xf32>
    %109 = tpu.matmul %104, %106, %cst_70 {dimension_numbers = #tpu.dot_dimension_numbers<[1], [0], [0], [1], [0, 0, 1, 1], [], []>} : vector<16x256xbf16>, vector<256x256xbf16>, vector<16x256xf32> -> vector<16x256xf32>
    %110 = vector.broadcast %108 : vector<1x256xf32> to vector<16x256xf32>
    %111 = arith.addf %109, %110 : vector<16x256xf32>
    %cst_71 = arith.constant 5.000000e-01 : f32
    %112 = vector.broadcast %cst_71 : f32 to vector<16x256xf32>
    %113 = arith.mulf %111, %112 : vector<16x256xf32>
    %114 = math.tanh %113 : vector<16x256xf32>
    %cst_72 = arith.constant 5.000000e-01 : f32
    %115 = vector.broadcast %cst_72 : f32 to vector<16x256xf32>
    %116 = arith.mulf %114, %115 : vector<16x256xf32>
    %cst_73 = arith.constant 5.000000e-01 : f32
    %117 = vector.broadcast %cst_73 : f32 to vector<16x256xf32>
    %118 = arith.addf %116, %117 : vector<16x256xf32>
    %119 = arith.truncf %118 : vector<16x256xf32> to vector<16x256xbf16>
    %c7 = arith.constant 7 : index
    %c0_74 = arith.constant 0 : index
    %c0_75 = arith.constant 0 : index
    %120 = vector.load %arg4[%c7, %c0_74, %c0_75] : memref<9x256x256xbf16, #tpu.memory_space<vmem>>, vector<1x256x256xbf16>
    %121 = vector.shape_cast %120 : vector<1x256x256xbf16> to vector<256x256xbf16>
    %c7_76 = arith.constant 7 : index
    %c0_77 = arith.constant 0 : index
    %c0_78 = arith.constant 0 : index
    %122 = vector.load %arg5[%c7_76, %c0_77, %c0_78] : memref<9x1x256xf32, #tpu.memory_space<vmem>>, vector<1x1x256xf32>
    %123 = vector.shape_cast %122 : vector<1x1x256xf32> to vector<1x256xf32>
    %cst_79 = arith.constant dense<0.000000e+00> : vector<16x256xf32>
    %124 = tpu.matmul %119, %121, %cst_79 {dimension_numbers = #tpu.dot_dimension_numbers<[1], [0], [0], [1], [0, 0, 1, 1], [], []>} : vector<16x256xbf16>, vector<256x256xbf16>, vector<16x256xf32> -> vector<16x256xf32>
    %125 = vector.broadcast %123 : vector<1x256xf32> to vector<16x256xf32>
    %126 = arith.addf %124, %125 : vector<16x256xf32>
    %cst_80 = arith.constant 5.000000e-01 : f32
    %127 = vector.broadcast %cst_80 : f32 to vector<16x256xf32>
    %128 = arith.mulf %126, %127 : vector<16x256xf32>
    %129 = math.tanh %128 : vector<16x256xf32>
    %cst_81 = arith.constant 5.000000e-01 : f32
    %130 = vector.broadcast %cst_81 : f32 to vector<16x256xf32>
    %131 = arith.mulf %129, %130 : vector<16x256xf32>
    %cst_82 = arith.constant 5.000000e-01 : f32
    %132 = vector.broadcast %cst_82 : f32 to vector<16x256xf32>
    %133 = arith.addf %131, %132 : vector<16x256xf32>
    %134 = arith.truncf %133 : vector<16x256xf32> to vector<16x256xbf16>
    %c8 = arith.constant 8 : index
    %c0_83 = arith.constant 0 : index
    %c0_84 = arith.constant 0 : index
    %135 = vector.load %arg4[%c8, %c0_83, %c0_84] : memref<9x256x256xbf16, #tpu.memory_space<vmem>>, vector<1x256x256xbf16>
    %136 = vector.shape_cast %135 : vector<1x256x256xbf16> to vector<256x256xbf16>
    %c8_85 = arith.constant 8 : index
    %c0_86 = arith.constant 0 : index
    %c0_87 = arith.constant 0 : index
    %137 = vector.load %arg5[%c8_85, %c0_86, %c0_87] : memref<9x1x256xf32, #tpu.memory_space<vmem>>, vector<1x1x256xf32>
    %138 = vector.shape_cast %137 : vector<1x1x256xf32> to vector<1x256xf32>
    %cst_88 = arith.constant dense<0.000000e+00> : vector<16x256xf32>
    %139 = tpu.matmul %134, %136, %cst_88 {dimension_numbers = #tpu.dot_dimension_numbers<[1], [0], [0], [1], [0, 0, 1, 1], [], []>} : vector<16x256xbf16>, vector<256x256xbf16>, vector<16x256xf32> -> vector<16x256xf32>
    %140 = vector.broadcast %138 : vector<1x256xf32> to vector<16x256xf32>
    %141 = arith.addf %139, %140 : vector<16x256xf32>
    %cst_89 = arith.constant 5.000000e-01 : f32
    %142 = vector.broadcast %cst_89 : f32 to vector<16x256xf32>
    %143 = arith.mulf %141, %142 : vector<16x256xf32>
    %144 = math.tanh %143 : vector<16x256xf32>
    %cst_90 = arith.constant 5.000000e-01 : f32
    %145 = vector.broadcast %cst_90 : f32 to vector<16x256xf32>
    %146 = arith.mulf %144, %145 : vector<16x256xf32>
    %cst_91 = arith.constant 5.000000e-01 : f32
    %147 = vector.broadcast %cst_91 : f32 to vector<16x256xf32>
    %148 = arith.addf %146, %147 : vector<16x256xf32>
    %149 = arith.truncf %148 : vector<16x256xf32> to vector<16x256xbf16>
    %c0_92 = arith.constant 0 : index
    %c0_93 = arith.constant 0 : index
    %150 = vector.load %arg6[%c0_92, %c0_93] : memref<256x128xbf16, #tpu.memory_space<vmem>>, vector<256x128xbf16>
    %cst_94 = arith.constant dense<0.000000e+00> : vector<16x128xf32>
    %151 = tpu.matmul %149, %150, %cst_94 {dimension_numbers = #tpu.dot_dimension_numbers<[1], [0], [0], [1], [0, 0, 1, 1], [], []>} : vector<16x256xbf16>, vector<256x128xbf16>, vector<16x128xf32> -> vector<16x128xf32>
    %152 = vector.broadcast %1 : vector<1x128xf32> to vector<16x128xf32>
    %153 = arith.addf %151, %152 : vector<16x128xf32>
    %c0_95 = arith.constant 0 : index
    %c0_96 = arith.constant 0 : index
    %154 = vector.load %arg8[%c0_95, %c0_96] : memref<16x128xf32, #tpu.memory_space<vmem>>, vector<16x128xf32>
    tpu.vector_store %arg8[%c0_95, %c0_96], %153 {strides = array<i32>} : memref<16x128xf32, #tpu.memory_space<vmem>>, vector<16x128xf32>,
    return
  }
  func.func @transform_0(%arg0: i32) -> (i32, i32) {
    %c0_i32 = arith.constant 0 : i32
    %c0_i32_0 = arith.constant 0 : i32
    return %arg0, %c0_i32 : i32, i32
  }
  func.func @transform_1(%arg0: i32) -> (i32, i32) {
    %c0_i32 = arith.constant 0 : i32
    %c0_i32_0 = arith.constant 0 : i32
    %c0_i32_1 = arith.constant 0 : i32
    return %c0_i32, %c0_i32_0 : i32, i32
  }
  func.func @transform_2(%arg0: i32) -> (i32, i32) {
    %c0_i32 = arith.constant 0 : i32
    %c0_i32_0 = arith.constant 0 : i32
    %c0_i32_1 = arith.constant 0 : i32
    return %c0_i32, %c0_i32_0 : i32, i32
  }
  func.func @transform_3(%arg0: i32) -> (i32, i32, i32) {
    %c0_i32 = arith.constant 0 : i32
    %c0_i32_0 = arith.constant 0 : i32
    %c0_i32_1 = arith.constant 0 : i32
    %c0_i32_2 = arith.constant 0 : i32
    return %c0_i32, %c0_i32_0, %c0_i32_1 : i32, i32, i32
  }
  func.func @transform_4(%arg0: i32) -> (i32, i32, i32) {
    %c0_i32 = arith.constant 0 : i32
    %c0_i32_0 = arith.constant 0 : i32
    %c0_i32_1 = arith.constant 0 : i32
    %c0_i32_2 = arith.constant 0 : i32
    return %c0_i32, %c0_i32_0, %c0_i32_1 : i32, i32, i32
  }
  func.func @transform_5(%arg0: i32) -> (i32, i32) {
    %c0_i32 = arith.constant 0 : i32
    %c0_i32_0 = arith.constant 0 : i32
    %c0_i32_1 = arith.constant 0 : i32
    return %c0_i32, %c0_i32_0 : i32, i32
  }
  func.func @transform_6(%arg0: i32) -> (i32, i32) {
    %c0_i32 = arith.constant 0 : i32
    %c0_i32_0 = arith.constant 0 : i32
    %c0_i32_1 = arith.constant 0 : i32
    return %c0_i32, %c0_i32_0 : i32, i32
  }
  func.func @transform_7(%arg0: i32) -> (i32, i32) {
    %c0_i32 = arith.constant 0 : i32
    %c0_i32_0 = arith.constant 0 : i32
    return %arg0, %c0_i32 : i32, i32
  }
}

</mosaic_0001>

<llo_original>
// kernel: tpu_custom_call.1
$region0: #{tpu_custom_call.1}
  #allocation0 [shape = 'u32[]', space=smem, size = 0x4, offset = 0x4, fixed_abs, tag = 'smem constant byte address 0x4 - core index']
  #allocation1 [shape = 'u32[72,128]{1,0:T(1,128)}', space=vmem, size = 0x9000, scoped, tag = 'internal scratch']
  %s0 = inlined_call_operand.hbm [shape: bf16[48,784], index: 0, kind: input, shape index: {}]
  %s1 = inlined_call_operand.hbm [shape: bf16[784,256], index: 1, kind: input, shape index: {}]
  %s2 = inlined_call_operand.hbm [shape: f32[1,256], index: 2, kind: input, shape index: {}]
  %s3 = inlined_call_operand.hbm [shape: bf16[9,256,256], index: 3, kind: input, shape index: {}]
  %s4 = inlined_call_operand.hbm [shape: f32[9,1,256], index: 4, kind: input, shape index: {}]
  %s5 = inlined_call_operand.hbm [shape: bf16[256,128], index: 5, kind: input, shape index: {}]
  %s6 = inlined_call_operand.hbm [shape: f32[1,128], index: 6, kind: input, shape index: {}]
  %s7 = inlined_call_operand.hbm [shape: f32[48,128], index: 7, kind: output, shape index: {}]
  %s8 = sld [smem:[#allocation0]]
  $region89: #{tpu_custom_call.1} parent=0
    _
  %s10 = ssub.s32 1, %s8
  %s11 = scalar_select 0, %s10, %s8
  $region1: #{tpu_custom_call.1} parent=0
    #allocation2 [shape = 'u8[57344]{0}', space=vmem, size = 0xe000, scoped, tag = 'input window, operand 0']
    #allocation3 [shape = 's32[2]{0}', space=sflag, size = 0x8, scoped, tag = 'scoped memory for tpu_custom_call.1']
    #allocation4 [shape = 's32[2]{0}', space=sflag, size = 0x8, scoped, tag = 'scoped memory for tpu_custom_call.1']
    #allocation5 [shape = 'u8[401408]{0}', space=vmem, size = 0x62000, scoped, tag = 'input window, operand 1, single buffered']
    #allocation6 [shape = 's32[1]{0}', space=sflag, size = 0x4, scoped, tag = 'scoped memory for tpu_custom_call.1']
    #allocation7 [shape = 'u8[1024]{0}', space=vmem, size = 0x400, scoped, tag = 'input window, operand 2, single buffered']
    #allocation8 [shape = 'u8[1179648]{0}', space=vmem, size = 0x120000, scoped, tag = 'input window, operand 3, single buffered']
    #allocation9 [shape = 's32[1]{0}', space=sflag, size = 0x4, scoped, tag = 'scoped memory for tpu_custom_call.1']
    #allocation10 [shape = 'u8[9216]{0}', space=vmem, size = 0x2400, scoped, tag = 'input window, operand 4, single buffered']
    #allocation11 [shape = 'u8[65536]{0}', space=vmem, size = 0x10000, scoped, tag = 'input window, operand 5, single buffered']
    #allocation12 [shape = 's32[1]{0}', space=sflag, size = 0x4, scoped, tag = 'scoped memory for tpu_custom_call.1']
    #allocation13 [shape = 'u8[512]{0}', space=vmem, size = 0x400, scoped, tag = 'input window, operand 6, single buffered']
    #allocation14 [shape = 'u8[16384]{0}', space=vmem, size = 0x4000, scoped, tag = 'output window, operand 0']
    %12 = vsyncpa [#allocation3], 0
    %s13 = scalar_lea.sflag [#allocation3], 1
    %14 = vsyncpa %s13, 0
    %15 = vsyncpa [#allocation6], 0
    %16 = vsyncpa [#allocation9], 0
    %17 = vsyncpa [#allocation12], 0
    %18 = vsyncpa [#allocation4], 0
    %s19 = scalar_lea.sflag [#allocation4], 1
    %20 = vsyncpa %s19, 0
    loop: start=0, step=1, limit=5
    $region2: #{tpu_custom_call.1} parent=1 // loop_pre_header
      _
    $region3: #{tpu_custom_call.1} parent=1 // loop_header
      %s22 = sphi 0, %s26
      %p23 = scmp.ge.s32.totalorder %s22, 5
      %s32 = sphi 0, %s34
      %s35 = sphi 0, %s32
      %s36 = sphi 0, %s35
      %s52 = sphi 0, %s36
      %s56 = sphi 0, %s56
      %s58 = sphi 0, %s56
      %s59 = sphi 0, %s58
      %s73 = sphi 0, %s59
      %s77 = sphi 0, %s77
      %s79 = sphi 0, %s77
      %s80 = sphi 0, %s79
      %s94 = sphi 0, %s80
      %s98 = sphi 0, %s98
      %s100 = sphi 0, %s98
      %s101 = sphi 0, %s100
      %s115 = sphi 0, %s101
      %s119 = sphi 0, %s119
      %s121 = sphi 0, %s119
      %s122 = sphi 0, %s121
      %s136 = sphi 0, %s122
      %s140 = sphi 0, %s140
      %s142 = sphi 0, %s140
      %s143 = sphi 0, %s142
      %s157 = sphi 0, %s143
      %s161 = sphi 0, %s161
      %s163 = sphi 0, %s161
      %s164 = sphi 0, %s163
      %s178 = sphi 0, %s164
      %s184 = sphi 0, %s186
      %s187 = sphi 0, %s184
      %s188 = sphi 0, %s187
      %s204 = sphi 0, %s188
    $region4: #{tpu_custom_call.1} parent=1 // loop_header_branch
      %25 = sbr.rel (%p23) target = $region8
    $region5: #{tpu_custom_call.1} parent=1 // loop_body
      %s27 = ssub.s32 %s22, 1
      %s28 = ssub.s32 %s22, 2
      %s29 = sadd.s32 %s22, 1
      %s30 = ssub.s32 %s22, %s29
      %p31 = scmp.eq.s32.totalorder %s30, 0
      %s33 = sadd.s32 %s32, 1
      %s34 = scalar_select %p31, %s32, %s33
      %p37 = pneg %p31
      %p38 = scmp.eq.s32.totalorder %s22, 2
      %p39 = por %p37, %p38
      %p40 = scmp.ne.s32.totalorder %s32, %s35
      %p41 = scmp.eq.s32.totalorder %s22, 0
      %p42 = por %p40, %p41
      %p43 = scmp.ne.s32.totalorder %s32, %s35
      %p44 = scmp.eq.s32.totalorder %s27, 2
      %p45 = por %p43, %p44
      %p46 = scmp.ne.s32.totalorder %s35, %s36
      %p47 = scmp.eq.s32.totalorder %s27, 0
      %p48 = por %p46, %p47
      %p49 = scmp.ne.s32.totalorder %s35, %s36
      %p50 = scmp.eq.s32.totalorder %s28, 2
      %p51 = por %p49, %p50
      %p53 = scmp.ne.s32.totalorder %s36, %s52
      %p54 = scmp.eq.s32.totalorder %s28, 0
      %p55 = por %p53, %p54
      %s57 = sadd.s32 %s56, 1
      %p60 = scmp.eq.s32.totalorder %s22, 2
      %p61 = scmp.ne.s32.totalorder %s56, %s58
      %p62 = scmp.eq.s32.totalorder %s22, 0
      %p63 = por %p61, %p62
      %p64 = scmp.ne.s32.totalorder %s56, %s58
      %p65 = scmp.eq.s32.totalorder %s27, 2
      %p66 = por %p64, %p65
      %p67 = scmp.ne.s32.totalorder %s58, %s59
      %p68 = scmp.eq.s32.totalorder %s27, 0
      %p69 = por %p67, %p68
      %p70 = scmp.ne.s32.totalorder %s58, %s59
      %p71 = scmp.eq.s32.totalorder %s28, 2
      %p72 = por %p70, %p71
      %p74 = scmp.ne.s32.totalorder %s59, %s73
      %p75 = scmp.eq.s32.totalorder %s28, 0
      %p76 = por %p74, %p75
      %s78 = sadd.s32 %s77, 1
      %p81 = scmp.eq.s32.totalorder %s22, 2
      %p82 = scmp.ne.s32.totalorder %s77, %s79
      %p83 = scmp.eq.s32.totalorder %s22, 0
      %p84 = por %p82, %p83
      %p85 = scmp.ne.s32.totalorder %s77, %s79
      %p86 = scmp.eq.s32.totalorder %s27, 2
      %p87 = por %p85, %p86
      %p88 = scmp.ne.s32.totalorder %s79, %s80
      %p89 = scmp.eq.s32.totalorder %s27, 0
      %p90 = por %p88, %p89
      %p91 = scmp.ne.s32.totalorder %s79, %s80
      %p92 = scmp.eq.s32.totalorder %s28, 2
      %p93 = por %p91, %p92
      %p95 = scmp.ne.s32.totalorder %s80, %s94
      %p96 = scmp.eq.s32.totalorder %s28, 0
      %p97 = por %p95, %p96
      %s99 = sadd.s32 %s98, 1
      %p102 = scmp.eq.s32.totalorder %s22, 2
      %p103 = scmp.ne.s32.totalorder %s98, %s100
      %p104 = scmp.eq.s32.totalorder %s22, 0
      %p105 = por %p103, %p104
      %p106 = scmp.ne.s32.totalorder %s98, %s100
      %p107 = scmp.eq.s32.totalorder %s27, 2
      %p108 = por %p106, %p107
      %p109 = scmp.ne.s32.totalorder %s100, %s101
      %p110 = scmp.eq.s32.totalorder %s27, 0
      %p111 = por %p109, %p110
      %p112 = scmp.ne.s32.totalorder %s100, %s101
      %p113 = scmp.eq.s32.totalorder %s28, 2
      %p114 = por %p112, %p113
      %p116 = scmp.ne.s32.totalorder %s101, %s115
      %p117 = scmp.eq.s32.totalorder %s28, 0
      %p118 = por %p116, %p117
      %s120 = sadd.s32 %s119, 1
      %p123 = scmp.eq.s32.totalorder %s22, 2
      %p124 = scmp.ne.s32.totalorder %s119, %s121
      %p125 = scmp.eq.s32.totalorder %s22, 0
      %p126 = por %p124, %p125
      %p127 = scmp.ne.s32.totalorder %s119, %s121
      %p128 = scmp.eq.s32.totalorder %s27, 2
      %p129 = por %p127, %p128
      %p130 = scmp.ne.s32.totalorder %s121, %s122
      %p131 = scmp.eq.s32.totalorder %s27, 0
      %p132 = por %p130, %p131
      %p133 = scmp.ne.s32.totalorder %s121, %s122
      %p134 = scmp.eq.s32.totalorder %s28, 2
      %p135 = por %p133, %p134
      %p137 = scmp.ne.s32.totalorder %s122, %s136
      %p138 = scmp.eq.s32.totalorder %s28, 0
      %p139 = por %p137, %p138
      %s141 = sadd.s32 %s140, 1
      %p144 = scmp.eq.s32.totalorder %s22, 2
      %p145 = scmp.ne.s32.totalorder %s140, %s142
      %p146 = scmp.eq.s32.totalorder %s22, 0
      %p147 = por %p145, %p146
      %p148 = scmp.ne.s32.totalorder %s140, %s142
      %p149 = scmp.eq.s32.totalorder %s27, 2
      %p150 = por %p148, %p149
      %p151 = scmp.ne.s32.totalorder %s142, %s143
      %p152 = scmp.eq.s32.totalorder %s27, 0
      %p153 = por %p151, %p152
      %p154 = scmp.ne.s32.totalorder %s142, %s143
      %p155 = scmp.eq.s32.totalorder %s28, 2
      %p156 = por %p154, %p155
      %p158 = scmp.ne.s32.totalorder %s143, %s157
      %p159 = scmp.eq.s32.totalorder %s28, 0
      %p160 = por %p158, %p159
      %s162 = sadd.s32 %s161, 1
      %p165 = scmp.eq.s32.totalorder %s22, 2
      %p166 = scmp.ne.s32.totalorder %s161, %s163
      %p167 = scmp.eq.s32.totalorder %s22, 0
      %p168 = por %p166, %p167
      %p169 = scmp.ne.s32.totalorder %s161, %s163
      %p170 = scmp.eq.s32.totalorder %s27, 2
      %p171 = por %p169, %p170
      %p172 = scmp.ne.s32.totalorder %s163, %s164
      %p173 = scmp.eq.s32.totalorder %s27, 0
      %p174 = por %p172, %p173
      %p175 = scmp.ne.s32.totalorder %s163, %s164
      %p176 = scmp.eq.s32.totalorder %s28, 2
      %p177 = por %p175, %p176
      %p179 = scmp.ne.s32.totalorder %s164, %s178
      %p180 = scmp.eq.s32.totalorder %s28, 0
      %p181 = por %p179, %p180
      %s182 = ssub.s32 %s22, %s29
      %p183 = scmp.eq.s32.totalorder %s182, 0
      %s185 = sadd.s32 %s184, 1
      %s186 = scalar_select %p183, %s184, %s185
      %p189 = pneg %p183
      %p190 = scmp.eq.s32.totalorder %s22, 2
      %p191 = por %p189, %p190
      %p192 = scmp.ne.s32.totalorder %s184, %s187
      %p193 = scmp.eq.s32.totalorder %s22, 0
      %p194 = por %p192, %p193
      %p195 = scmp.ne.s32.totalorder %s184, %s187
      %p196 = scmp.eq.s32.totalorder %s27, 2
      %p197 = por %p195, %p196
      %p198 = scmp.ne.s32.totalorder %s187, %s188
      %p199 = scmp.eq.s32.totalorder %s27, 0
      %p200 = por %p198, %p199
      %p201 = scmp.ne.s32.totalorder %s187, %s188
      %p202 = scmp.eq.s32.totalorder %s28, 2
      %p203 = por %p201, %p202
      %p205 = scmp.ne.s32.totalorder %s188, %s204
      %p206 = scmp.eq.s32.totalorder %s28, 0
      %p207 = por %p205, %p206
      %p208 = scmp.le.s32.totalorder 1, %s22
      %p209 = scmp.lt.s32.totalorder %s22, 4
      %p210 = pnand %p208, %p209
      %p211 = pneg %p210
      // Predicated region
      $region9: #{tpu_custom_call.1} parent=5 // pred_check
        _
      $region10: #{tpu_custom_call.1} parent=5 // pred_check_branch
        %213 = sbr.rel (%p210) target = $region12
      $region11: #{tpu_custom_call.1} parent=5 // pred_region
        %s214 = ssub.s32 %s22, 1
        // Predicated region
        $region13: #{tpu_custom_call.1} parent=11 // pred_check
          %p215 = pneg %p69
        $region14: #{tpu_custom_call.1} parent=11 // pred_check_branch
          %217 = sbr.rel (%p215) target = $region16
        $region15: #{tpu_custom_call.1} parent=11 // pred_region
          %219 = vsyncadd [#allocation6], 0
          %s220 = sshll.u32 %s1, 4
          %s221 = int_to_ptr.hbm [resolvable:$true] %s220
          %s222 = sshll.u32 [#allocation5], 4
          %s223 = int_to_ptr.vmem [resolvable:$true] %s222
          %228 = dma.hbm_to_vmem [thread:$0]  %s221, 12544, %s223, [#allocation6], 128, 128, 8
        $region16: #{tpu_custom_call.1} parent=11 // pred_fallthru
          _
        // Predicated region
        $region17: #{tpu_custom_call.1} parent=11 // pred_check
          %p229 = pneg %p90
        $region18: #{tpu_custom_call.1} parent=11 // pred_check_branch
          %231 = sbr.rel (%p229) target = $region20
        $region19: #{tpu_custom_call.1} parent=11 // pred_region
          %233 = vsyncadd [#allocation6], 0
          %s235 = sshll.u32 %s2, 4
          %s236 = int_to_ptr.hbm [resolvable:$true] %s235
          %s237 = sshll.u32 [#allocation7], 4
          %s238 = int_to_ptr.vmem [resolvable:$true] %s237
          %240 = dma.hbm_to_vmem [thread:$0]  %s236, 32, %s238, [#allocation6]
        $region20: #{tpu_custom_call.1} parent=11 // pred_fallthru
          _
        // Predicated region
        $region21: #{tpu_custom_call.1} parent=11 // pred_check
          %p241 = pneg %p111
        $region22: #{tpu_custom_call.1} parent=11 // pred_check_branch
          %243 = sbr.rel (%p241) target = $region24
        $region23: #{tpu_custom_call.1} parent=11 // pred_region
          %245 = vsyncadd [#allocation9], 0
          %s246 = sshll.u32 %s3, 4
          %s247 = int_to_ptr.hbm [resolvable:$true] %s246
          %s248 = sshll.u32 [#allocation8], 4
          %s249 = int_to_ptr.vmem [resolvable:$true] %s248
          %254 = dma.hbm_to_vmem [thread:$0]  %s247, 36864, %s249, [#allocation9], 128, 128, 8
        $region24: #{tpu_custom_call.1} parent=11 // pred_fallthru
          _
        // Predicated region
        $region25: #{tpu_custom_call.1} parent=11 // pred_check
          %p255 = pneg %p132
        $region26: #{tpu_custom_call.1} parent=11 // pred_check_branch
          %257 = sbr.rel (%p255) target = $region28
        $region27: #{tpu_custom_call.1} parent=11 // pred_region
          %259 = vsyncadd [#allocation9], 0
          %s260 = sshll.u32 %s4, 4
          %s261 = int_to_ptr.hbm [resolvable:$true] %s260
          %s262 = sshll.u32 [#allocation10], 4
          %s263 = int_to_ptr.vmem [resolvable:$true] %s262
          %268 = dma.hbm_to_vmem [thread:$0]  %s261, 288, %s263, [#allocation9], 32, 32, 2
        $region28: #{tpu_custom_call.1} parent=11 // pred_fallthru
          _
        // Predicated region
        $region29: #{tpu_custom_call.1} parent=11 // pred_check
          %p269 = pneg %p153
        $region30: #{tpu_custom_call.1} parent=11 // pred_check_branch
          %271 = sbr.rel (%p269) target = $region32
        $region31: #{tpu_custom_call.1} parent=11 // pred_region
          %273 = vsyncadd [#allocation12], 0
          %s274 = sshll.u32 %s5, 4
          %s275 = int_to_ptr.hbm [resolvable:$true] %s274
          %s276 = sshll.u32 [#allocation11], 4
          %s277 = int_to_ptr.vmem [resolvable:$true] %s276
          %282 = dma.hbm_to_vmem [thread:$0]  %s275, 2048, %s277, [#allocation12], 64, 64, 4
        $region32: #{tpu_custom_call.1} parent=11 // pred_fallthru
          _
        // Predicated region
        $region33: #{tpu_custom_call.1} parent=11 // pred_check
          %p283 = pneg %p174
        $region34: #{tpu_custom_call.1} parent=11 // pred_check_branch
          %285 = sbr.rel (%p283) target = $region36
        $region35: #{tpu_custom_call.1} parent=11 // pred_region
          %287 = vsyncadd [#allocation12], 0
          %s289 = sshll.u32 %s6, 4
          %s290 = int_to_ptr.hbm [resolvable:$true] %s289
          %s291 = sshll.u32 [#allocation13], 4
          %s292 = int_to_ptr.vmem [resolvable:$true] %s291
          %294 = dma.hbm_to_vmem [thread:$0]  %s290, 16, %s292, [#allocation12]
        $region36: #{tpu_custom_call.1} parent=11 // pred_fallthru
          _
      $region12: #{tpu_custom_call.1} parent=5 // pred_fallthru
        _
      %p295 = scmp.lt.s32.totalorder %s22, 3
      // Predicated region
      $region37: #{tpu_custom_call.1} parent=5 // pred_check
        %p296 = pneg %p295
      $region38: #{tpu_custom_call.1} parent=5 // pred_check_branch
        %298 = sbr.rel (%p296) target = $region40
      $region39: #{tpu_custom_call.1} parent=5 // pred_region
        // Predicated region
        $region41: #{tpu_custom_call.1} parent=39 // pred_check
          %p299 = pneg %p42
        $region42: #{tpu_custom_call.1} parent=39 // pred_check_branch
          %301 = sbr.rel (%p299) target = $region44
        $region43: #{tpu_custom_call.1} parent=39 // pred_region
          %s302 = sand.u32 %s32, 1
          %s303 = scalar_lea.sflag [#allocation3], %s302
          %s304 = sand.u32 %s32, 1
          %s305 = smul.addr %s304, 56
          %s306 = scalar_lea.vmem [#allocation2], %s305
          %s307 = smul.u32 2, %s22
          %309 = vsyncadd %s303, 0
          %s310 = smul.addr %s307, 7
          %s311 = smul.addr %s310, 4
          %s312 = scalar_lea.hbm %s0, %s311
          %s313 = sshll.u32 %s312, 4
          %s314 = int_to_ptr.hbm [resolvable:$true] %s313
          %s315 = sshll.u32 %s306, 4
          %s316 = int_to_ptr.vmem [resolvable:$true] %s315
          %321 = dma.hbm_to_vmem [thread:$0]  %s314, 896, %s316, %s303, 448, 448, 28
        $region44: #{tpu_custom_call.1} parent=39 // pred_fallthru
          _
      $region40: #{tpu_custom_call.1} parent=5 // pred_fallthru
        _
      %p322 = scmp.le.s32.totalorder 1, %s22
      %p323 = scmp.lt.s32.totalorder %s22, 4
      %p324 = pnand %p322, %p323
      %p325 = pneg %p324
      // Predicated region
      $region45: #{tpu_custom_call.1} parent=5 // pred_check
        _
      $region46: #{tpu_custom_call.1} parent=5 // pred_check_branch
        %327 = sbr.rel (%p324) target = $region48
      $region47: #{tpu_custom_call.1} parent=5 // pred_region
        %s328 = ssub.s32 %s22, 1
        %s329 = sand.u32 %s35, 1
        %s330 = scalar_lea.sflag [#allocation3], %s329
        %s331 = sand.u32 %s35, 1
        %s332 = smul.addr %s331, 56
        %s333 = scalar_lea.vmem [#allocation2], %s332
        // Predicated region
        $region49: #{tpu_custom_call.1} parent=47 // pred_check
          %p334 = pneg %p48
        $region50: #{tpu_custom_call.1} parent=47 // pred_check_branch
          %336 = sbr.rel (%p334) target = $region52
        $region51: #{tpu_custom_call.1} parent=47 // pred_region
          %338 = dma.done %s330, 896
        $region52: #{tpu_custom_call.1} parent=47 // pred_fallthru
          _
        // Predicated region
        $region53: #{tpu_custom_call.1} parent=47 // pred_check
          %p339 = pneg %p69
        $region54: #{tpu_custom_call.1} parent=47 // pred_check_branch
          %341 = sbr.rel (%p339) target = $region56
        $region55: #{tpu_custom_call.1} parent=47 // pred_region
          %343 = dma.done [#allocation6], 12544
        $region56: #{tpu_custom_call.1} parent=47 // pred_fallthru
          _
        // Predicated region
        $region57: #{tpu_custom_call.1} parent=47 // pred_check
          %p344 = pneg %p90
        $region58: #{tpu_custom_call.1} parent=47 // pred_check_branch
          %346 = sbr.rel (%p344) target = $region60
        $region59: #{tpu_custom_call.1} parent=47 // pred_region
          %348 = dma.done [#allocation6], 32
        $region60: #{tpu_custom_call.1} parent=47 // pred_fallthru
          _
        // Predicated region
        $region61: #{tpu_custom_call.1} parent=47 // pred_check
          %p349 = pneg %p111
        $region62: #{tpu_custom_call.1} parent=47 // pred_check_branch
          %351 = sbr.rel (%p349) target = $region64
        $region63: #{tpu_custom_call.1} parent=47 // pred_region
          %353 = dma.done [#allocation9], 36864
        $region64: #{tpu_custom_call.1} parent=47 // pred_fallthru
          _
        // Predicated region
        $region65: #{tpu_custom_call.1} parent=47 // pred_check
          %p354 = pneg %p132
        $region66: #{tpu_custom_call.1} parent=47 // pred_check_branch
          %356 = sbr.rel (%p354) target = $region68
        $region67: #{tpu_custom_call.1} parent=47 // pred_region
          %358 = dma.done [#allocation9], 288
        $region68: #{tpu_custom_call.1} parent=47 // pred_fallthru
          _
        // Predicated region
        $region69: #{tpu_custom_call.1} parent=47 // pred_check
          %p359 = pneg %p153
        $region70: #{tpu_custom_call.1} parent=47 // pred_check_branch
          %361 = sbr.rel (%p359) target = $region72
        $region71: #{tpu_custom_call.1} parent=47 // pred_region
          %363 = dma.done [#allocation12], 2048
        $region72: #{tpu_custom_call.1} parent=47 // pred_fallthru
          _
        // Predicated region
        $region73: #{tpu_custom_call.1} parent=47 // pred_check
          %p364 = pneg %p174
        $region74: #{tpu_custom_call.1} parent=47 // pred_check_branch
          %366 = sbr.rel (%p364) target = $region76
        $region75: #{tpu_custom_call.1} parent=47 // pred_region
          %368 = dma.done [#allocation12], 16
        $region76: #{tpu_custom_call.1} parent=47 // pred_fallthru
          _
        %s369 = sand.u32 %s35, 1
        %s370 = scalar_lea.sflag [#allocation3], %s369
        %s371 = sand.u32 %s35, 1
        %s372 = smul.addr %s371, 56
        %s373 = scalar_lea.vmem [#allocation2], %s372
        %p374 = pneg %p48
        %p375 = pneg %p45
        %p376 = pneg %p69
        %p377 = pneg %p66
        %p378 = pneg %p90
        %p379 = pneg %p87
        %p380 = pneg %p111
        %p381 = pneg %p108
        %p382 = pneg %p132
        %p383 = pneg %p129
        %p384 = pneg %p153
        %p385 = pneg %p150
        %p386 = pneg %p174
        %p387 = pneg %p171
        %p388 = pneg %p200
        %p389 = pneg %p197
        %s390 = sand.u32 %s187, 1
        %s391 = scalar_lea.sflag [#allocation4], %s390
        %s392 = sand.u32 %s187, 1
        %s393 = smul.addr %s392, 16
        %s394 = scalar_lea.vmem [#allocation14], %s393
        %s395 = smul.u32 2, %s27
        %s396 = smul.u32 2, %s27
        %v398 = vld [vmem:[#allocation7] sm:$0x3]
        %v399 = vld [vmem:[#allocation13] sm:$0x1]
        %v400 = vld [vmem:[#allocation5] sm:$0xff]
        %v401 = vld [vmem:[#allocation5 + $0x8] sm:$0xff]
        %v402 = vld [vmem:[#allocation5 + $0x10] sm:$0xff]
        %v403 = vld [vmem:[#allocation5 + $0x18] sm:$0xff]
        %v404 = vld [vmem:[#allocation5 + $0x20] sm:$0xff]
        %v405 = vld [vmem:[#allocation5 + $0x28] sm:$0xff]
        %v406 = vld [vmem:[#allocation5 + $0x30] sm:$0xff]
        %v407 = vld [vmem:[#allocation5 + $0x38] sm:$0xff]
        %v408 = vld [vmem:[#allocation5 + $0x40] sm:$0xff]
        %v409 = vld [vmem:[#allocation5 + $0x48] sm:$0xff]
        %v410 = vld [vmem:[#allocation5 + $0x50] sm:$0xff]
        %v411 = vld [vmem:[#allocation5 + $0x58] sm:$0xff]
        %v412 = vld [vmem:[#allocation5 + $0x60] sm:$0xff]
        %v413 = vld [vmem:[#allocation5 + $0x68] sm:$0xff]
        %v414 = vld [vmem:[#allocation5 + $0x70] sm:$0xff]
        %v415 = vld [vmem:[#allocation5 + $0x78] sm:$0xff]
        %v416 = vld [vmem:[#allocation5 + $0x80] sm:$0xff]
        %v417 = vld [vmem:[#allocation5 + $0x88] sm:$0xff]
        %v418 = vld [vmem:[#allocation5 + $0x90] sm:$0xff]
        %v419 = vld [vmem:[#allocation5 + $0x98] sm:$0xff]
        %v420 = vld [vmem:[#allocation5 + $0xa0] sm:$0xff]
        %v421 = vld [vmem:[#allocation5 + $0xa8] sm:$0xff]
        %v422 = vld [vmem:[#allocation5 + $0xb0] sm:$0xff]
        %v423 = vld [vmem:[#allocation5 + $0xb8] sm:$0xff]
        %v424 = vld [vmem:[#allocation5 + $0xc0] sm:$0xff]
        %v425 = vld [vmem:[#allocation5 + $0xc8] sm:$0xff]
        %v426 = vld [vmem:[#allocation5 + $0xd0] sm:$0xff]
        %v427 = vld [vmem:[#allocation5 + $0xd8] sm:$0xff]
        %v428 = vld [vmem:[#allocation5 + $0xe0] sm:$0xff]
        %v429 = vld [vmem:[#allocation5 + $0xe8] sm:$0xff]
        %v430 = vld [vmem:[#allocation5 + $0xf0] sm:$0xff]
        %v431 = vld [vmem:[#allocation5 + $0xf8] sm:$0xff]
        %v432 = vld [vmem:[#allocation5 + $0x100] sm:$0xff]
        %v433 = vld [vmem:[#allocation5 + $0x108] sm:$0xff]
        %v434 = vld [vmem:[#allocation5 + $0x110] sm:$0xff]
        %v435 = vld [vmem:[#allocation5 + $0x118] sm:$0xff]
        %v436 = vld [vmem:[#allocation5 + $0x120] sm:$0xff]
        %v437 = vld [vmem:[#allocation5 + $0x128] sm:$0xff]
        %v438 = vld [vmem:[#allocation5 + $0x130] sm:$0xff]
        %v439 = vld [vmem:[#allocation5 + $0x138] sm:$0xff]
        %v440 = vld [vmem:[#allocation5 + $0x140] sm:$0xff]
        %v441 = vld [vmem:[#allocation5 + $0x148] sm:$0xff]
        %v442 = vld [vmem:[#allocation5 + $0x150] sm:$0xff]
        %v443 = vld [vmem:[#allocation5 + $0x158] sm:$0xff]
        %v444 = vld [vmem:[#allocation5 + $0x160] sm:$0xff]
        %v445 = vld [vmem:[#allocation5 + $0x168] sm:$0xff]
        %v446 = vld [vmem:[#allocation5 + $0x170] sm:$0xff]
        %v447 = vld [vmem:[#allocation5 + $0x178] sm:$0xff]
        %v448 = vld [vmem:[#allocation5 + $0x180] sm:$0xff]
        %v449 = vld [vmem:[#allocation5 + $0x188] sm:$0xff]
        %v450 = vld [vmem:[#allocation5 + $0x190] sm:$0xff]
        %v451 = vld [vmem:[#allocation5 + $0x198] sm:$0xff]
        %v452 = vld [vmem:[#allocation5 + $0x1a0] sm:$0xff]
        %v453 = vld [vmem:[#allocation5 + $0x1a8] sm:$0xff]
        %v454 = vld [vmem:[#allocation5 + $0x1b0] sm:$0xff]
        %v455 = vld [vmem:[#allocation5 + $0x1b8] sm:$0xff]
        %v456 = vld [vmem:[#allocation5 + $0x1c0] sm:$0xff]
        %v457 = vld [vmem:[#allocation5 + $0x1c8] sm:$0xff]
        %v458 = vld [vmem:[#allocation5 + $0x1d0] sm:$0xff]
        %v459 = vld [vmem:[#allocation5 + $0x1d8] sm:$0xff]
        %v460 = vld [vmem:[#allocation5 + $0x1e0] sm:$0xff]
        %v461 = vld [vmem:[#allocation5 + $0x1e8] sm:$0xff]
        %v462 = vld [vmem:[#allocation5 + $0x1f0] sm:$0xff]
        %v463 = vld [vmem:[#allocation5 + $0x1f8] sm:$0xff]
        %v464 = vld [vmem:[#allocation5 + $0x200] sm:$0xff]
        %v465 = vld [vmem:[#allocation5 + $0x208] sm:$0xff]
        %v466 = vld [vmem:[#allocation5 + $0x210] sm:$0xff]
        %v467 = vld [vmem:[#allocation5 + $0x218] sm:$0xff]
        %v468 = vld [vmem:[#allocation5 + $0x220] sm:$0xff]
        %v469 = vld [vmem:[#allocation5 + $0x228] sm:$0xff]
        %v470 = vld [vmem:[#allocation5 + $0x230] sm:$0xff]
        %v471 = vld [vmem:[#allocation5 + $0x238] sm:$0xff]
        %v472 = vld [vmem:[#allocation5 + $0x240] sm:$0xff]
        %v473 = vld [vmem:[#allocation5 + $0x248] sm:$0xff]
        %v474 = vld [vmem:[#allocation5 + $0x250] sm:$0xff]
        %v475 = vld [vmem:[#allocation5 + $0x258] sm:$0xff]
        %v476 = vld [vmem:[#allocation5 + $0x260] sm:$0xff]
        %v477 = vld [vmem:[#allocation5 + $0x268] sm:$0xff]
        %v478 = vld [vmem:[#allocation5 + $0x270] sm:$0xff]
        %v479 = vld [vmem:[#allocation5 + $0x278] sm:$0xff]
        %v480 = vld [vmem:[#allocation5 + $0x280] sm:$0xff]
        %v481 = vld [vmem:[#allocation5 + $0x288] sm:$0xff]
        %v482 = vld [vmem:[#allocation5 + $0x290] sm:$0xff]
        %v483 = vld [vmem:[#allocation5 + $0x298] sm:$0xff]
        %v484 = vld [vmem:[#allocation5 + $0x2a0] sm:$0xff]
        %v485 = vld [vmem:[#allocation5 + $0x2a8] sm:$0xff]
        %v486 = vld [vmem:[#allocation5 + $0x2b0] sm:$0xff]
        %v487 = vld [vmem:[#allocation5 + $0x2b8] sm:$0xff]
        %v488 = vld [vmem:[#allocation5 + $0x2c0] sm:$0xff]
        %v489 = vld [vmem:[#allocation5 + $0x2c8] sm:$0xff]
        %v490 = vld [vmem:[#allocation5 + $0x2d0] sm:$0xff]
        %v491 = vld [vmem:[#allocation5 + $0x2d8] sm:$0xff]
        %v492 = vld [vmem:[#allocation5 + $0x2e0] sm:$0xff]
        %v493 = vld [vmem:[#allocation5 + $0x2e8] sm:$0xff]
        %v494 = vld [vmem:[#allocation5 + $0x2f0] sm:$0xff]
        %v495 = vld [vmem:[#allocation5 + $0x2f8] sm:$0xff]
        %v496 = vld [vmem:[#allocation5 + $0x300] sm:$0xff]
        %v497 = vld [vmem:[#allocation5 + $0x308] sm:$0xff]
        %v498 = vld [vmem:[%s333] sm:$0xff]
        %v499 = vld [vmem:[%s333 + $0x8] sm:$0xff]
        %v500 = vld [vmem:[%s333 + $0x10] sm:$0xff]
        %v501 = vld [vmem:[%s333 + $0x18] sm:$0xf]
        %v502 = vld [vmem:[%s333 + $0x1c] sm:$0xff]
        %v503 = vld [vmem:[%s333 + $0x24] sm:$0xff]
        %v504 = vld [vmem:[%s333 + $0x2c] sm:$0xff]
        %v505 = vld [vmem:[%s333 + $0x34] sm:$0xf]
        %v507 = vperm.slane %v398, 0
        %v508 = vperm.slane %v398, 1
        %v519 = vunpack.c.l.b16 %v498
        %v520 = vunpack.c.h.b16 %v498
        %v521 = vunpack.c.l.b16 %v499
        %v522 = vunpack.c.h.b16 %v499
        %v523 = vunpack.c.l.b16 %v500
        %v524 = vunpack.c.h.b16 %v500
        %v525 = vunpack.c.l.b16 %v501
        %v526 = vunpack.c.l.b16 %v502
        %v527 = vunpack.c.h.b16 %v502
        %v528 = vunpack.c.l.b16 %v503
        %v529 = vunpack.c.h.b16 %v503
        %v530 = vunpack.c.l.b16 %v504
        %v531 = vunpack.c.h.b16 %v504
        %v532 = vunpack.c.l.b16 %v505
        %v533 = vpack.c.b16 %v526, %v519
        %v534 = vpack.c.b16 %v527, %v520
        %v535 = vpack.c.b16 %v528, %v521
        %v536 = vpack.c.b16 %v529, %v522
        %v537 = vpack.c.b16 %v530, %v523
        %v538 = vpack.c.b16 %v531, %v524
        %v539 = vpack.c.b16 %v532, %v525
        %v644 = vunpack.c.l.b16 %v400
        %v645 = vunpack.c.h.b16 %v400
        %v646 = vunpack.c.l.b16 %v401
        %v647 = vunpack.c.h.b16 %v401
        %v648 = vunpack.c.l.b16 %v402
        %v649 = vunpack.c.h.b16 %v402
        %v650 = vunpack.c.l.b16 %v403
        %v651 = vunpack.c.h.b16 %v403
        %v652 = vunpack.c.l.b16 %v404
        %v653 = vunpack.c.h.b16 %v404
        %v654 = vunpack.c.l.b16 %v405
        %v655 = vunpack.c.h.b16 %v405
        %v656 = vunpack.c.l.b16 %v406
        %v657 = vunpack.c.h.b16 %v406
        %v658 = vunpack.c.l.b16 %v407
        %v659 = vunpack.c.h.b16 %v407
        %v660 = vunpack.c.l.b16 %v408
        %v661 = vunpack.c.h.b16 %v408
        %v662 = vunpack.c.l.b16 %v409
        %v663 = vunpack.c.h.b16 %v409
        %v664 = vunpack.c.l.b16 %v410
        %v665 = vunpack.c.h.b16 %v410
        %v666 = vunpack.c.l.b16 %v411
        %v667 = vunpack.c.h.b16 %v411
        %v668 = vunpack.c.l.b16 %v412
        %v669 = vunpack.c.h.b16 %v412
        %v670 = vunpack.c.l.b16 %v413
        %v671 = vunpack.c.h.b16 %v413
        %v672 = vunpack.c.l.b16 %v414
        %v673 = vunpack.c.h.b16 %v414
        %v674 = vunpack.c.l.b16 %v415
        %v675 = vunpack.c.h.b16 %v415
        %v676 = vunpack.c.l.b16 %v416
        %v677 = vunpack.c.h.b16 %v416
        %v678 = vunpack.c.l.b16 %v417
        %v679 = vunpack.c.h.b16 %v417
        %v680 = vunpack.c.l.b16 %v418
        %v681 = vunpack.c.h.b16 %v418
        %v682 = vunpack.c.l.b16 %v419
        %v683 = vunpack.c.h.b16 %v419
        %v684 = vunpack.c.l.b16 %v420
        %v685 = vunpack.c.h.b16 %v420
        %v686 = vunpack.c.l.b16 %v421
        %v687 = vunpack.c.h.b16 %v421
        %v688 = vunpack.c.l.b16 %v422
        %v689 = vunpack.c.h.b16 %v422
        %v690 = vunpack.c.l.b16 %v423
        %v691 = vunpack.c.h.b16 %v423
        %v692 = vunpack.c.l.b16 %v424
        %v693 = vunpack.c.h.b16 %v424
        %v694 = vunpack.c.l.b16 %v425
        %v695 = vunpack.c.h.b16 %v425
        %v696 = vunpack.c.l.b16 %v426
        %v697 = vunpack.c.h.b16 %v426
        %v698 = vunpack.c.l.b16 %v427
        %v699 = vunpack.c.h.b16 %v427
        %v700 = vunpack.c.l.b16 %v428
        %v701 = vunpack.c.h.b16 %v428
        %v702 = vunpack.c.l.b16 %v429
        %v703 = vunpack.c.h.b16 %v429
        %v704 = vunpack.c.l.b16 %v430
        %v705 = vunpack.c.h.b16 %v430
        %v706 = vunpack.c.l.b16 %v431
        %v707 = vunpack.c.h.b16 %v431
        %v708 = vunpack.c.l.b16 %v432
        %v709 = vunpack.c.h.b16 %v432
        %v710 = vunpack.c.l.b16 %v433
        %v711 = vunpack.c.h.b16 %v433
        %v712 = vunpack.c.l.b16 %v434
        %v713 = vunpack.c.h.b16 %v434
        %v714 = vunpack.c.l.b16 %v435
        %v715 = vunpack.c.h.b16 %v435
        %v716 = vunpack.c.l.b16 %v436
        %v717 = vunpack.c.h.b16 %v436
        %v718 = vunpack.c.l.b16 %v437
        %v719 = vunpack.c.h.b16 %v437
        %v720 = vunpack.c.l.b16 %v438
        %v721 = vunpack.c.h.b16 %v438
        %v722 = vunpack.c.l.b16 %v439
        %v723 = vunpack.c.h.b16 %v439
        %v724 = vunpack.c.l.b16 %v440
        %v725 = vunpack.c.h.b16 %v440
        %v726 = vunpack.c.l.b16 %v441
        %v727 = vunpack.c.h.b16 %v441
        %v728 = vunpack.c.l.b16 %v442
        %v729 = vunpack.c.h.b16 %v442
        %v730 = vunpack.c.l.b16 %v443
        %v731 = vunpack.c.h.b16 %v443
        %v732 = vunpack.c.l.b16 %v444
        %v733 = vunpack.c.h.b16 %v444
        %v734 = vunpack.c.l.b16 %v445
        %v735 = vunpack.c.h.b16 %v445
        %v736 = vunpack.c.l.b16 %v446
        %v737 = vunpack.c.h.b16 %v446
        %v738 = vunpack.c.l.b16 %v447
        %v739 = vunpack.c.h.b16 %v447
        %v740 = vunpack.c.l.b16 %v448
        %v741 = vunpack.c.h.b16 %v448
        %v742 = vunpack.c.l.b16 %v449
        %v743 = vunpack.c.h.b16 %v449
        %v744 = vunpack.c.l.b16 %v450
        %v745 = vunpack.c.h.b16 %v450
        %v746 = vunpack.c.l.b16 %v451
        %v747 = vunpack.c.h.b16 %v451
        %v748 = vunpack.c.l.b16 %v452
        %v749 = vunpack.c.h.b16 %v452
        %v750 = vunpack.c.l.b16 %v453
        %v751 = vunpack.c.h.b16 %v453
        %v752 = vunpack.c.l.b16 %v454
        %v753 = vunpack.c.h.b16 %v454
        %v754 = vunpack.c.l.b16 %v455
        %v755 = vunpack.c.h.b16 %v455
        %v756 = vunpack.c.l.b16 %v456
        %v757 = vunpack.c.h.b16 %v456
        %v758 = vunpack.c.l.b16 %v457
        %v759 = vunpack.c.h.b16 %v457
        %v760 = vunpack.c.l.b16 %v458
        %v761 = vunpack.c.h.b16 %v458
        %v762 = vunpack.c.l.b16 %v459
        %v763 = vunpack.c.h.b16 %v459
        %v764 = vunpack.c.l.b16 %v460
        %v765 = vunpack.c.h.b16 %v460
        %v766 = vunpack.c.l.b16 %v461
        %v767 = vunpack.c.h.b16 %v461
        %v768 = vunpack.c.l.b16 %v462
        %v769 = vunpack.c.h.b16 %v462
        %v770 = vunpack.c.l.b16 %v463
        %v771 = vunpack.c.h.b16 %v463
        %v772 = vunpack.c.l.b16 %v464
        %v773 = vunpack.c.h.b16 %v464
        %v774 = vunpack.c.l.b16 %v465
        %v775 = vunpack.c.h.b16 %v465
        %v776 = vunpack.c.l.b16 %v466
        %v777 = vunpack.c.h.b16 %v466
        %v778 = vunpack.c.l.b16 %v467
        %v779 = vunpack.c.h.b16 %v467
        %v780 = vunpack.c.l.b16 %v468
        %v781 = vunpack.c.h.b16 %v468
        %v782 = vunpack.c.l.b16 %v469
        %v783 = vunpack.c.h.b16 %v469
        %v784 = vunpack.c.l.b16 %v470
        %v785 = vunpack.c.h.b16 %v470
        %v786 = vunpack.c.l.b16 %v471
        %v787 = vunpack.c.h.b16 %v471
        %v788 = vunpack.c.l.b16 %v472
        %v789 = vunpack.c.h.b16 %v472
        %v790 = vunpack.c.l.b16 %v473
        %v791 = vunpack.c.h.b16 %v473
        %v792 = vunpack.c.l.b16 %v474
        %v793 = vunpack.c.h.b16 %v474
        %v794 = vunpack.c.l.b16 %v475
        %v795 = vunpack.c.h.b16 %v475
        %v796 = vunpack.c.l.b16 %v476
        %v797 = vunpack.c.h.b16 %v476
        %v798 = vunpack.c.l.b16 %v477
        %v799 = vunpack.c.h.b16 %v477
        %v800 = vunpack.c.l.b16 %v478
        %v801 = vunpack.c.h.b16 %v478
        %v802 = vunpack.c.l.b16 %v479
        %v803 = vunpack.c.h.b16 %v479
        %v804 = vunpack.c.l.b16 %v480
        %v805 = vunpack.c.h.b16 %v480
        %v806 = vunpack.c.l.b16 %v481
        %v807 = vunpack.c.h.b16 %v481
        %v808 = vunpack.c.l.b16 %v482
        %v809 = vunpack.c.h.b16 %v482
        %v810 = vunpack.c.l.b16 %v483
        %v811 = vunpack.c.h.b16 %v483
        %v812 = vunpack.c.l.b16 %v484
        %v813 = vunpack.c.h.b16 %v484
        %v814 = vunpack.c.l.b16 %v485
        %v815 = vunpack.c.h.b16 %v485
        %v816 = vunpack.c.l.b16 %v486
        %v817 = vunpack.c.h.b16 %v486
        %v818 = vunpack.c.l.b16 %v487
        %v819 = vunpack.c.h.b16 %v487
        %v820 = vunpack.c.l.b16 %v488
        %v821 = vunpack.c.h.b16 %v488
        %v822 = vunpack.c.l.b16 %v489
        %v823 = vunpack.c.h.b16 %v489
        %v824 = vunpack.c.l.b16 %v490
        %v825 = vunpack.c.h.b16 %v490
        %v826 = vunpack.c.l.b16 %v491
        %v827 = vunpack.c.h.b16 %v491
        %v828 = vunpack.c.l.b16 %v492
        %v829 = vunpack.c.h.b16 %v492
        %v830 = vunpack.c.l.b16 %v493
        %v831 = vunpack.c.h.b16 %v493
        %v832 = vunpack.c.l.b16 %v494
        %v833 = vunpack.c.h.b16 %v494
        %v834 = vunpack.c.l.b16 %v495
        %v835 = vunpack.c.h.b16 %v495
        %v836 = vunpack.c.l.b16 %v496
        %v837 = vunpack.c.h.b16 %v496
        %v838 = vunpack.c.l.b16 %v497
        %v839 = vunpack.c.h.b16 %v497
        %v840 = vpack.c.b16 %v646, %v644
        %v841 = vpack.c.b16 %v647, %v645
        %v842 = vpack.c.b16 %v650, %v648
        %v843 = vpack.c.b16 %v651, %v649
        %v844 = vpack.c.b16 %v654, %v652
        %v845 = vpack.c.b16 %v655, %v653
        %v846 = vpack.c.b16 %v658, %v656
        %v847 = vpack.c.b16 %v659, %v657
        %v848 = vpack.c.b16 %v662, %v660
        %v849 = vpack.c.b16 %v663, %v661
        %v850 = vpack.c.b16 %v666, %v664
        %v851 = vpack.c.b16 %v667, %v665
        %v852 = vpack.c.b16 %v670, %v668
        %v853 = vpack.c.b16 %v671, %v669
        %v854 = vpack.c.b16 %v674, %v672
        %v855 = vpack.c.b16 %v675, %v673
        %v856 = vpack.c.b16 %v678, %v676
        %v857 = vpack.c.b16 %v679, %v677
        %v858 = vpack.c.b16 %v682, %v680
        %v859 = vpack.c.b16 %v683, %v681
        %v860 = vpack.c.b16 %v686, %v684
        %v861 = vpack.c.b16 %v687, %v685
        %v862 = vpack.c.b16 %v690, %v688
        %v863 = vpack.c.b16 %v691, %v689
        %v864 = vpack.c.b16 %v694, %v692
        %v865 = vpack.c.b16 %v695, %v693
        %v866 = vpack.c.b16 %v698, %v696
        %v867 = vpack.c.b16 %v699, %v697
        %v868 = vpack.c.b16 %v702, %v700
        %v869 = vpack.c.b16 %v703, %v701
        %v870 = vpack.c.b16 %v706, %v704
        %v871 = vpack.c.b16 %v707, %v705
        %v872 = vpack.c.b16 %v710, %v708
        %v873 = vpack.c.b16 %v711, %v709
        %v874 = vpack.c.b16 %v714, %v712
        %v875 = vpack.c.b16 %v715, %v713
        %v876 = vpack.c.b16 %v718, %v716
        %v877 = vpack.c.b16 %v719, %v717
        %v878 = vpack.c.b16 %v722, %v720
        %v879 = vpack.c.b16 %v723, %v721
        %v880 = vpack.c.b16 %v726, %v724
        %v881 = vpack.c.b16 %v727, %v725
        %v882 = vpack.c.b16 %v730, %v728
        %v883 = vpack.c.b16 %v731, %v729
        %v884 = vpack.c.b16 %v734, %v732
        %v885 = vpack.c.b16 %v735, %v733
        %v886 = vpack.c.b16 %v738, %v736
        %v887 = vpack.c.b16 %v739, %v737
        %v888 = vpack.c.b16 %v742, %v740
        %v889 = vpack.c.b16 %v743, %v741
        %v890 = vpack.c.b16 %v746, %v744
        %v891 = vpack.c.b16 %v747, %v745
        %v892 = vpack.c.b16 %v750, %v748
        %v893 = vpack.c.b16 %v751, %v749
        %v894 = vpack.c.b16 %v754, %v752
        %v895 = vpack.c.b16 %v755, %v753
        %v896 = vpack.c.b16 %v758, %v756
        %v897 = vpack.c.b16 %v759, %v757
        %v898 = vpack.c.b16 %v762, %v760
        %v899 = vpack.c.b16 %v763, %v761
        %v900 = vpack.c.b16 %v766, %v764
        %v901 = vpack.c.b16 %v767, %v765
        %v902 = vpack.c.b16 %v770, %v768
        %v903 = vpack.c.b16 %v771, %v769
        %v904 = vpack.c.b16 %v774, %v772
        %v905 = vpack.c.b16 %v775, %v773
        %v906 = vpack.c.b16 %v778, %v776
        %v907 = vpack.c.b16 %v779, %v777
        %v908 = vpack.c.b16 %v782, %v780
        %v909 = vpack.c.b16 %v783, %v781
        %v910 = vpack.c.b16 %v786, %v784
        %v911 = vpack.c.b16 %v787, %v785
        %v912 = vpack.c.b16 %v790, %v788
        %v913 = vpack.c.b16 %v791, %v789
        %v914 = vpack.c.b16 %v794, %v792
        %v915 = vpack.c.b16 %v795, %v793
        %v916 = vpack.c.b16 %v798, %v796
        %v917 = vpack.c.b16 %v799, %v797
        %v918 = vpack.c.b16 %v802, %v800
        %v919 = vpack.c.b16 %v803, %v801
        %v920 = vpack.c.b16 %v806, %v804
        %v921 = vpack.c.b16 %v807, %v805
        %v922 = vpack.c.b16 %v810, %v808
        %v923 = vpack.c.b16 %v811, %v809
        %v924 = vpack.c.b16 %v814, %v812
        %v925 = vpack.c.b16 %v815, %v813
        %v926 = vpack.c.b16 %v818, %v816
        %v927 = vpack.c.b16 %v819, %v817
        %v928 = vpack.c.b16 %v822, %v820
        %v929 = vpack.c.b16 %v823, %v821
        %v930 = vpack.c.b16 %v826, %v824
        %v931 = vpack.c.b16 %v827, %v825
        %v932 = vpack.c.b16 %v830, %v828
        %v933 = vpack.c.b16 %v831, %v829
        %v934 = vpack.c.b16 %v834, %v832
        %v935 = vpack.c.b16 %v835, %v833
        %v936 = vpack.c.b16 %v838, %v836
        %v937 = vpack.c.b16 %v839, %v837
        %vm1036 = vcmask 130048
        %v1038 = vsel %vm1036, %v539, 0
        %1040 = vmatpush.bf16.msra.mxu0 %v854
        %1041 = vmatpush.bf16.msra.mxu0 %v852
        %1042 = vmatpush.bf16.msra.mxu0 %v850
        %1043 = vmatpush.bf16.msra.mxu0 %v848
        %1044 = vmatpush.bf16.msra.mxu0 %v846
        %1045 = vmatpush.bf16.msra.mxu0 %v844
        %1046 = vmatpush.bf16.msra.mxu0 %v842
        %1047 = vmatpush.bf16.msra.mxu0 %v840
        %1048 = vmatmul.bf16.gmra.mxu0 %v533
        %v1049 = vpop.f32.mrf.mxu0
        %v1050 = vadd.f32 %v507, %v1049
        %v1051 = vpop.f32.mrf.mxu0
        %v1052 = vadd.f32 %v507, %v1051
        %1053 = vdwg.mxu0
        %1054 = vmatpush.bf16.msra.mxu0 %v870
        %1055 = vmatpush.bf16.msra.mxu0 %v868
        %1056 = vmatpush.bf16.msra.mxu0 %v866
        %1057 = vmatpush.bf16.msra.mxu0 %v864
        %1058 = vmatpush.bf16.msra.mxu0 %v862
        %1059 = vmatpush.bf16.msra.mxu0 %v860
        %1060 = vmatpush.bf16.msra.mxu0 %v858
        %1061 = vmatpush.bf16.msra.mxu0 %v856
        %1062 = vmatmul.bf16.gmra.mxu0 %v534
        %v1063 = vpop.f32.mrf.mxu0
        %v1064 = vadd.f32 %v1050, %v1063
        %v1065 = vpop.f32.mrf.mxu0
        %v1066 = vadd.f32 %v1052, %v1065
        %1067 = vdwg.mxu0
        %1068 = vmatpush.bf16.msra.mxu0 %v886
        %1069 = vmatpush.bf16.msra.mxu0 %v884
        %1070 = vmatpush.bf16.msra.mxu0 %v882
        %1071 = vmatpush.bf16.msra.mxu0 %v880
        %1072 = vmatpush.bf16.msra.mxu0 %v878
        %1073 = vmatpush.bf16.msra.mxu0 %v876
        %1074 = vmatpush.bf16.msra.mxu0 %v874
        %1075 = vmatpush.bf16.msra.mxu0 %v872
        %1076 = vmatmul.bf16.gmra.mxu0 %v535
        %v1077 = vpop.f32.mrf.mxu0
        %v1078 = vadd.f32 %v1064, %v1077
        %v1079 = vpop.f32.mrf.mxu0
        %v1080 = vadd.f32 %v1066, %v1079
        %1081 = vdwg.mxu0
        %1082 = vmatpush.bf16.msra.mxu0 %v902
        %1083 = vmatpush.bf16.msra.mxu0 %v900
        %1084 = vmatpush.bf16.msra.mxu0 %v898
        %1085 = vmatpush.bf16.msra.mxu0 %v896
        %1086 = vmatpush.bf16.msra.mxu0 %v894
        %1087 = vmatpush.bf16.msra.mxu0 %v892
        %1088 = vmatpush.bf16.msra.mxu0 %v890
        %1089 = vmatpush.bf16.msra.mxu0 %v888
        %1090 = vmatmul.bf16.gmra.mxu0 %v536
        %v1091 = vpop.f32.mrf.mxu0
        %v1092 = vadd.f32 %v1078, %v1091
        %v1093 = vpop.f32.mrf.mxu0
        %v1094 = vadd.f32 %v1080, %v1093
        %1095 = vdwg.mxu0
        %1096 = vmatpush.bf16.msra.mxu0 %v918
        %1097 = vmatpush.bf16.msra.mxu0 %v916
        %1098 = vmatpush.bf16.msra.mxu0 %v914
        %1099 = vmatpush.bf16.msra.mxu0 %v912
        %1100 = vmatpush.bf16.msra.mxu0 %v910
        %1101 = vmatpush.bf16.msra.mxu0 %v908
        %1102 = vmatpush.bf16.msra.mxu0 %v906
        %1103 = vmatpush.bf16.msra.mxu0 %v904
        %1104 = vmatmul.bf16.gmra.mxu0 %v537
        %v1105 = vpop.f32.mrf.mxu0
        %v1106 = vadd.f32 %v1092, %v1105
        %v1107 = vpop.f32.mrf.mxu0
        %v1108 = vadd.f32 %v1094, %v1107
        %1109 = vdwg.mxu0
        %1110 = vmatpush.bf16.msra.mxu0 %v934
        %1111 = vmatpush.bf16.msra.mxu0 %v932
        %1112 = vmatpush.bf16.msra.mxu0 %v930
        %1113 = vmatpush.bf16.msra.mxu0 %v928
        %1114 = vmatpush.bf16.msra.mxu0 %v926
        %1115 = vmatpush.bf16.msra.mxu0 %v924
        %1116 = vmatpush.bf16.msra.mxu0 %v922
        %1117 = vmatpush.bf16.msra.mxu0 %v920
        %1118 = vmatmul.bf16.gmra.mxu0 %v538
        %v1119 = vpop.f32.mrf.mxu0
        %v1120 = vadd.f32 %v1106, %v1119
        %v1121 = vpop.f32.mrf.mxu0
        %v1122 = vadd.f32 %v1108, %v1121
        %1123 = vdwg.mxu0
        %1124 = vmatpush.bf16.msra.mxu0 0
        %1125 = vmatpush.bf16.msra.mxu0 0
        %1126 = vmatpush.bf16.msra.mxu0 0
        %1127 = vmatpush.bf16.msra.mxu0 0
        %1128 = vmatpush.bf16.msra.mxu0 0
        %1129 = vmatpush.bf16.msra.mxu0 0
        %1130 = vmatpush.bf16.msra.mxu0 0
        %1131 = vmatpush.bf16.msra.mxu0 %v936
        %1132 = vmatmul.bf16.gmra.mxu0 %v1038
        %v1133 = vpop.f32.mrf.mxu0
        %v1134 = vadd.f32 %v1120, %v1133
        %v1135 = vpop.f32.mrf.mxu0
        %v1136 = vadd.f32 %v1122, %v1135
        %1137 = vdwg.mxu0
        %1138 = vmatpush.bf16.msra.mxu0 %v855
        %1139 = vmatpush.bf16.msra.mxu0 %v853
        %1140 = vmatpush.bf16.msra.mxu0 %v851
        %1141 = vmatpush.bf16.msra.mxu0 %v849
        %1142 = vmatpush.bf16.msra.mxu0 %v847
        %1143 = vmatpush.bf16.msra.mxu0 %v845
        %1144 = vmatpush.bf16.msra.mxu0 %v843
        %1145 = vmatpush.bf16.msra.mxu0 %v841
        %1146 = vmatmul.bf16.gmra.mxu0 %v533
        %v1147 = vpop.f32.mrf.mxu0
        %v1148 = vadd.f32 %v508, %v1147
        %v1149 = vpop.f32.mrf.mxu0
        %v1150 = vadd.f32 %v508, %v1149
        %1151 = vdwg.mxu0
        %1152 = vmatpush.bf16.msra.mxu0 %v871
        %1153 = vmatpush.bf16.msra.mxu0 %v869
        %1154 = vmatpush.bf16.msra.mxu0 %v867
        %1155 = vmatpush.bf16.msra.mxu0 %v865
        %1156 = vmatpush.bf16.msra.mxu0 %v863
        %1157 = vmatpush.bf16.msra.mxu0 %v861
        %1158 = vmatpush.bf16.msra.mxu0 %v859
        %1159 = vmatpush.bf16.msra.mxu0 %v857
        %1160 = vmatmul.bf16.gmra.mxu0 %v534
        %v1161 = vpop.f32.mrf.mxu0
        %v1162 = vadd.f32 %v1148, %v1161
        %v1163 = vpop.f32.mrf.mxu0
        %v1164 = vadd.f32 %v1150, %v1163
        %1165 = vdwg.mxu0
        %1166 = vmatpush.bf16.msra.mxu0 %v887
        %1167 = vmatpush.bf16.msra.mxu0 %v885
        %1168 = vmatpush.bf16.msra.mxu0 %v883
        %1169 = vmatpush.bf16.msra.mxu0 %v881
        %1170 = vmatpush.bf16.msra.mxu0 %v879
        %1171 = vmatpush.bf16.msra.mxu0 %v877
        %1172 = vmatpush.bf16.msra.mxu0 %v875
        %1173 = vmatpush.bf16.msra.mxu0 %v873
        %1174 = vmatmul.bf16.gmra.mxu0 %v535
        %v1175 = vpop.f32.mrf.mxu0
        %v1176 = vadd.f32 %v1162, %v1175
        %v1177 = vpop.f32.mrf.mxu0
        %v1178 = vadd.f32 %v1164, %v1177
        %1179 = vdwg.mxu0
        %1180 = vmatpush.bf16.msra.mxu0 %v903
        %1181 = vmatpush.bf16.msra.mxu0 %v901
        %1182 = vmatpush.bf16.msra.mxu0 %v899
        %1183 = vmatpush.bf16.msra.mxu0 %v897
        %1184 = vmatpush.bf16.msra.mxu0 %v895
        %1185 = vmatpush.bf16.msra.mxu0 %v893
        %1186 = vmatpush.bf16.msra.mxu0 %v891
        %1187 = vmatpush.bf16.msra.mxu0 %v889
        %1188 = vmatmul.bf16.gmra.mxu0 %v536
        %v1189 = vpop.f32.mrf.mxu0
        %v1190 = vadd.f32 %v1176, %v1189
        %v1191 = vpop.f32.mrf.mxu0
        %v1192 = vadd.f32 %v1178, %v1191
        %1193 = vdwg.mxu0
        %1194 = vmatpush.bf16.msra.mxu0 %v919
        %1195 = vmatpush.bf16.msra.mxu0 %v917
        %1196 = vmatpush.bf16.msra.mxu0 %v915
        %1197 = vmatpush.bf16.msra.mxu0 %v913
        %1198 = vmatpush.bf16.msra.mxu0 %v911
        %1199 = vmatpush.bf16.msra.mxu0 %v909
        %1200 = vmatpush.bf16.msra.mxu0 %v907
        %1201 = vmatpush.bf16.msra.mxu0 %v905
        %1202 = vmatmul.bf16.gmra.mxu0 %v537
        %v1203 = vpop.f32.mrf.mxu0
        %v1204 = vadd.f32 %v1190, %v1203
        %v1205 = vpop.f32.mrf.mxu0
        %v1206 = vadd.f32 %v1192, %v1205
        %1207 = vdwg.mxu0
        %1208 = vmatpush.bf16.msra.mxu0 %v935
        %1209 = vmatpush.bf16.msra.mxu0 %v933
        %1210 = vmatpush.bf16.msra.mxu0 %v931
        %1211 = vmatpush.bf16.msra.mxu0 %v929
        %1212 = vmatpush.bf16.msra.mxu0 %v927
        %1213 = vmatpush.bf16.msra.mxu0 %v925
        %1214 = vmatpush.bf16.msra.mxu0 %v923
        %1215 = vmatpush.bf16.msra.mxu0 %v921
        %1216 = vmatmul.bf16.gmra.mxu0 %v538
        %v1217 = vpop.f32.mrf.mxu0
        %v1218 = vadd.f32 %v1204, %v1217
        %v1219 = vpop.f32.mrf.mxu0
        %v1220 = vadd.f32 %v1206, %v1219
        %1221 = vdwg.mxu0
        %1222 = vmatpush.bf16.msra.mxu0 0
        %1223 = vmatpush.bf16.msra.mxu0 0
        %1224 = vmatpush.bf16.msra.mxu0 0
        %1225 = vmatpush.bf16.msra.mxu0 0
        %1226 = vmatpush.bf16.msra.mxu0 0
        %1227 = vmatpush.bf16.msra.mxu0 0
        %1228 = vmatpush.bf16.msra.mxu0 0
        %1229 = vmatpush.bf16.msra.mxu0 %v937
        %1230 = vmatmul.bf16.gmra.mxu0 %v1038
        %v1231 = vpop.f32.mrf.mxu0
        %v1232 = vadd.f32 %v1218, %v1231
        %v1233 = vpop.f32.mrf.mxu0
        %v1234 = vadd.f32 %v1220, %v1233
        %1235 = vdwg.mxu0
        %v1236 = vmul.f32 %v1134, 0.5
        %v1237 = vmul.f32 %v1232, 0.5
        %v1238 = vmul.f32 %v1136, 0.5
        %v1239 = vmul.f32 %v1234, 0.5
        %v1240 = vtanh.pop %v1236
        %v1241 = vtanh.pop %v1237
        %v1242 = vtanh.pop %v1238
        %v1243 = vtanh.pop %v1239
        %v1244 = vmul.f32 %v1240, 0.5
        %v1245 = vmul.f32 %v1241, 0.5
        %v1246 = vmul.f32 %v1242, 0.5
        %v1247 = vmul.f32 %v1243, 0.5
        %v1248 = vadd.f32 %v1244, 0.5
        %v1249 = vadd.f32 %v1245, 0.5
        %v1250 = vadd.f32 %v1246, 0.5
        %v1251 = vadd.f32 %v1247, 0.5
        %v1252 = vpack.c.bf16 %v1250, %v1248
        %v1253 = vpack.c.bf16 %v1251, %v1249
        %v1254 = vld [vmem:[#allocation8] sm:$0xff]
        %v1255 = vld [vmem:[#allocation8 + $0x8] sm:$0xff]
        %v1256 = vld [vmem:[#allocation8 + $0x10] sm:$0xff]
        %v1257 = vld [vmem:[#allocation8 + $0x18] sm:$0xff]
        %v1258 = vld [vmem:[#allocation8 + $0x20] sm:$0xff]
        %v1259 = vld [vmem:[#allocation8 + $0x28] sm:$0xff]
        %v1260 = vld [vmem:[#allocation8 + $0x30] sm:$0xff]
        %v1261 = vld [vmem:[#allocation8 + $0x38] sm:$0xff]
        %v1262 = vld [vmem:[#allocation8 + $0x40] sm:$0xff]
        %v1263 = vld [vmem:[#allocation8 + $0x48] sm:$0xff]
        %v1264 = vld [vmem:[#allocation8 + $0x50] sm:$0xff]
        %v1265 = vld [vmem:[#allocation8 + $0x58] sm:$0xff]
        %v1266 = vld [vmem:[#allocation8 + $0x60] sm:$0xff]
        %v1267 = vld [vmem:[#allocation8 + $0x68] sm:$0xff]
        %v1268 = vld [vmem:[#allocation8 + $0x70] sm:$0xff]
        %v1269 = vld [vmem:[#allocation8 + $0x78] sm:$0xff]
        %v1270 = vld [vmem:[#allocation8 + $0x80] sm:$0xff]
        %v1271 = vld [vmem:[#allocation8 + $0x88] sm:$0xff]
        %v1272 = vld [vmem:[#allocation8 + $0x90] sm:$0xff]
        %v1273 = vld [vmem:[#allocation8 + $0x98] sm:$0xff]
        %v1274 = vld [vmem:[#allocation8 + $0xa0] sm:$0xff]
        %v1275 = vld [vmem:[#allocation8 + $0xa8] sm:$0xff]
        %v1276 = vld [vmem:[#allocation8 + $0xb0] sm:$0xff]
        %v1277 = vld [vmem:[#allocation8 + $0xb8] sm:$0xff]
        %v1278 = vld [vmem:[#allocation8 + $0xc0] sm:$0xff]
        %v1279 = vld [vmem:[#allocation8 + $0xc8] sm:$0xff]
        %v1280 = vld [vmem:[#allocation8 + $0xd0] sm:$0xff]
        %v1281 = vld [vmem:[#allocation8 + $0xd8] sm:$0xff]
        %v1282 = vld [vmem:[#allocation8 + $0xe0] sm:$0xff]
        %v1283 = vld [vmem:[#allocation8 + $0xe8] sm:$0xff]
        %v1284 = vld [vmem:[#allocation8 + $0xf0] sm:$0xff]
        %v1285 = vld [vmem:[#allocation8 + $0xf8] sm:$0xff]
        %v1286 = vld [vmem:[#allocation10] sm:$0x3]
        %v1288 = vperm.slane %v1286, 0
        %v1289 = vperm.slane %v1286, 1
        %v1324 = vunpack.c.l.b16 %v1254
        %v1325 = vunpack.c.h.b16 %v1254
        %v1326 = vunpack.c.l.b16 %v1255
        %v1327 = vunpack.c.h.b16 %v1255
        %v1328 = vunpack.c.l.b16 %v1256
        %v1329 = vunpack.c.h.b16 %v1256
        %v1330 = vunpack.c.l.b16 %v1257
        %v1331 = vunpack.c.h.b16 %v1257
        %v1332 = vunpack.c.l.b16 %v1258
        %v1333 = vunpack.c.h.b16 %v1258
        %v1334 = vunpack.c.l.b16 %v1259
        %v1335 = vunpack.c.h.b16 %v1259
        %v1336 = vunpack.c.l.b16 %v1260
        %v1337 = vunpack.c.h.b16 %v1260
        %v1338 = vunpack.c.l.b16 %v1261
        %v1339 = vunpack.c.h.b16 %v1261
        %v1340 = vunpack.c.l.b16 %v1262
        %v1341 = vunpack.c.h.b16 %v1262
        %v1342 = vunpack.c.l.b16 %v1263
        %v1343 = vunpack.c.h.b16 %v1263
        %v1344 = vunpack.c.l.b16 %v1264
        %v1345 = vunpack.c.h.b16 %v1264
        %v1346 = vunpack.c.l.b16 %v1265
        %v1347 = vunpack.c.h.b16 %v1265
        %v1348 = vunpack.c.l.b16 %v1266
        %v1349 = vunpack.c.h.b16 %v1266
        %v1350 = vunpack.c.l.b16 %v1267
        %v1351 = vunpack.c.h.b16 %v1267
        %v1352 = vunpack.c.l.b16 %v1268
        %v1353 = vunpack.c.h.b16 %v1268
        %v1354 = vunpack.c.l.b16 %v1269
        %v1355 = vunpack.c.h.b16 %v1269
        %v1356 = vunpack.c.l.b16 %v1270
        %v1357 = vunpack.c.h.b16 %v1270
        %v1358 = vunpack.c.l.b16 %v1271
        %v1359 = vunpack.c.h.b16 %v1271
        %v1360 = vunpack.c.l.b16 %v1272
        %v1361 = vunpack.c.h.b16 %v1272
        %v1362 = vunpack.c.l.b16 %v1273
        %v1363 = vunpack.c.h.b16 %v1273
        %v1364 = vunpack.c.l.b16 %v1274
        %v1365 = vunpack.c.h.b16 %v1274
        %v1366 = vunpack.c.l.b16 %v1275
        %v1367 = vunpack.c.h.b16 %v1275
        %v1368 = vunpack.c.l.b16 %v1276
        %v1369 = vunpack.c.h.b16 %v1276
        %v1370 = vunpack.c.l.b16 %v1277
        %v1371 = vunpack.c.h.b16 %v1277
        %v1372 = vunpack.c.l.b16 %v1278
        %v1373 = vunpack.c.h.b16 %v1278
        %v1374 = vunpack.c.l.b16 %v1279
        %v1375 = vunpack.c.h.b16 %v1279
        %v1376 = vunpack.c.l.b16 %v1280
        %v1377 = vunpack.c.h.b16 %v1280
        %v1378 = vunpack.c.l.b16 %v1281
        %v1379 = vunpack.c.h.b16 %v1281
        %v1380 = vunpack.c.l.b16 %v1282
        %v1381 = vunpack.c.h.b16 %v1282
        %v1382 = vunpack.c.l.b16 %v1283
        %v1383 = vunpack.c.h.b16 %v1283
        %v1384 = vunpack.c.l.b16 %v1284
        %v1385 = vunpack.c.h.b16 %v1284
        %v1386 = vunpack.c.l.b16 %v1285
        %v1387 = vunpack.c.h.b16 %v1285
        %v1388 = vpack.c.b16 %v1326, %v1324
        %v1389 = vpack.c.b16 %v1327, %v1325
        %v1390 = vpack.c.b16 %v1330, %v1328
        %v1391 = vpack.c.b16 %v1331, %v1329
        %v1392 = vpack.c.b16 %v1334, %v1332
        %v1393 = vpack.c.b16 %v1335, %v1333
        %v1394 = vpack.c.b16 %v1338, %v1336
        %v1395 = vpack.c.b16 %v1339, %v1337
        %v1396 = vpack.c.b16 %v1342, %v1340
        %v1397 = vpack.c.b16 %v1343, %v1341
        %v1398 = vpack.c.b16 %v1346, %v1344
        %v1399 = vpack.c.b16 %v1347, %v1345
        %v1400 = vpack.c.b16 %v1350, %v1348
        %v1401 = vpack.c.b16 %v1351, %v1349
        %v1402 = vpack.c.b16 %v1354, %v1352
        %v1403 = vpack.c.b16 %v1355, %v1353
        %v1404 = vpack.c.b16 %v1358, %v1356
        %v1405 = vpack.c.b16 %v1359, %v1357
        %v1406 = vpack.c.b16 %v1362, %v1360
        %v1407 = vpack.c.b16 %v1363, %v1361
        %v1408 = vpack.c.b16 %v1366, %v1364
        %v1409 = vpack.c.b16 %v1367, %v1365
        %v1410 = vpack.c.b16 %v1370, %v1368
        %v1411 = vpack.c.b16 %v1371, %v1369
        %v1412 = vpack.c.b16 %v1374, %v1372
        %v1413 = vpack.c.b16 %v1375, %v1373
        %v1414 = vpack.c.b16 %v1378, %v1376
        %v1415 = vpack.c.b16 %v1379, %v1377
        %v1416 = vpack.c.b16 %v1382, %v1380
        %v1417 = vpack.c.b16 %v1383, %v1381
        %v1418 = vpack.c.b16 %v1386, %v1384
        %v1419 = vpack.c.b16 %v1387, %v1385
        %1452 = vmatpush.bf16.msra.mxu0 %v1402
        %1453 = vmatpush.bf16.msra.mxu0 %v1400
        %1454 = vmatpush.bf16.msra.mxu0 %v1398
        %1455 = vmatpush.bf16.msra.mxu0 %v1396
        %1456 = vmatpush.bf16.msra.mxu0 %v1394
        %1457 = vmatpush.bf16.msra.mxu0 %v1392
        %1458 = vmatpush.bf16.msra.mxu0 %v1390
        %1459 = vmatpush.bf16.msra.mxu0 %v1388
        %1460 = vmatmul.bf16.gmra.mxu0 %v1252
        %v1461 = vpop.f32.mrf.mxu0
        %v1462 = vadd.f32 %v1288, %v1461
        %v1463 = vpop.f32.mrf.mxu0
        %v1464 = vadd.f32 %v1288, %v1463
        %1465 = vdwg.mxu0
        %1466 = vmatpush.bf16.msra.mxu0 %v1418
        %1467 = vmatpush.bf16.msra.mxu0 %v1416
        %1468 = vmatpush.bf16.msra.mxu0 %v1414
        %1469 = vmatpush.bf16.msra.mxu0 %v1412
        %1470 = vmatpush.bf16.msra.mxu0 %v1410
        %1471 = vmatpush.bf16.msra.mxu0 %v1408
        %1472 = vmatpush.bf16.msra.mxu0 %v1406
        %1473 = vmatpush.bf16.msra.mxu0 %v1404
        %1474 = vmatmul.bf16.gmra.mxu0 %v1253
        %v1475 = vpop.f32.mrf.mxu0
        %v1476 = vadd.f32 %v1462, %v1475
        %v1477 = vpop.f32.mrf.mxu0
        %v1478 = vadd.f32 %v1464, %v1477
        %1479 = vdwg.mxu0
        %1480 = vmatpush.bf16.msra.mxu0 %v1403
        %1481 = vmatpush.bf16.msra.mxu0 %v1401
        %1482 = vmatpush.bf16.msra.mxu0 %v1399
        %1483 = vmatpush.bf16.msra.mxu0 %v1397
        %1484 = vmatpush.bf16.msra.mxu0 %v1395
        %1485 = vmatpush.bf16.msra.mxu0 %v1393
        %1486 = vmatpush.bf16.msra.mxu0 %v1391
        %1487 = vmatpush.bf16.msra.mxu0 %v1389
        %1488 = vmatmul.bf16.gmra.mxu0 %v1252
        %v1489 = vpop.f32.mrf.mxu0
        %v1490 = vadd.f32 %v1289, %v1489
        %v1491 = vpop.f32.mrf.mxu0
        %v1492 = vadd.f32 %v1289, %v1491
        %1493 = vdwg.mxu0
        %1494 = vmatpush.bf16.msra.mxu0 %v1419
        %1495 = vmatpush.bf16.msra.mxu0 %v1417
        %1496 = vmatpush.bf16.msra.mxu0 %v1415
        %1497 = vmatpush.bf16.msra.mxu0 %v1413
        %1498 = vmatpush.bf16.msra.mxu0 %v1411
        %1499 = vmatpush.bf16.msra.mxu0 %v1409
        %1500 = vmatpush.bf16.msra.mxu0 %v1407
        %1501 = vmatpush.bf16.msra.mxu0 %v1405
        %1502 = vmatmul.bf16.gmra.mxu0 %v1253
        %v1503 = vpop.f32.mrf.mxu0
        %v1504 = vadd.f32 %v1490, %v1503
        %v1505 = vpop.f32.mrf.mxu0
        %v1506 = vadd.f32 %v1492, %v1505
        %1507 = vdwg.mxu0
        %v1508 = vmul.f32 %v1476, 0.5
        %v1509 = vmul.f32 %v1504, 0.5
        %v1510 = vmul.f32 %v1478, 0.5
        %v1511 = vmul.f32 %v1506, 0.5
        %v1512 = vtanh.pop %v1508
        %v1513 = vtanh.pop %v1509
        %v1514 = vtanh.pop %v1510
        %v1515 = vtanh.pop %v1511
        %v1516 = vmul.f32 %v1512, 0.5
        %v1517 = vmul.f32 %v1513, 0.5
        %v1518 = vmul.f32 %v1514, 0.5
        %v1519 = vmul.f32 %v1515, 0.5
        %v1520 = vadd.f32 %v1516, 0.5
        %v1521 = vadd.f32 %v1517, 0.5
        %v1522 = vadd.f32 %v1518, 0.5
        %v1523 = vadd.f32 %v1519, 0.5
        %v1524 = vpack.c.bf16 %v1522, %v1520
        %v1525 = vpack.c.bf16 %v1523, %v1521
        %s1526 = scalar_lea.vmem [#allocation8], 256
        %v1527 = vld [vmem:[%s1526] sm:$0xff]
        %v1528 = vld [vmem:[%s1526 + $0x8] sm:$0xff]
        %v1529 = vld [vmem:[%s1526 + $0x10] sm:$0xff]
        %v1530 = vld [vmem:[%s1526 + $0x18] sm:$0xff]
        %v1531 = vld [vmem:[%s1526 + $0x20] sm:$0xff]
        %v1532 = vld [vmem:[%s1526 + $0x28] sm:$0xff]
        %v1533 = vld [vmem:[%s1526 + $0x30] sm:$0xff]
        %v1534 = vld [vmem:[%s1526 + $0x38] sm:$0xff]
        %v1535 = vld [vmem:[%s1526 + $0x40] sm:$0xff]
        %v1536 = vld [vmem:[%s1526 + $0x48] sm:$0xff]
        %v1537 = vld [vmem:[%s1526 + $0x50] sm:$0xff]
        %v1538 = vld [vmem:[%s1526 + $0x58] sm:$0xff]
        %v1539 = vld [vmem:[%s1526 + $0x60] sm:$0xff]
        %v1540 = vld [vmem:[%s1526 + $0x68] sm:$0xff]
        %v1541 = vld [vmem:[%s1526 + $0x70] sm:$0xff]
        %v1542 = vld [vmem:[%s1526 + $0x78] sm:$0xff]
        %v1543 = vld [vmem:[%s1526 + $0x80] sm:$0xff]
        %v1544 = vld [vmem:[%s1526 + $0x88] sm:$0xff]
        %v1545 = vld [vmem:[%s1526 + $0x90] sm:$0xff]
        %v1546 = vld [vmem:[%s1526 + $0x98] sm:$0xff]
        %v1547 = vld [vmem:[%s1526 + $0xa0] sm:$0xff]
        %v1548 = vld [vmem:[%s1526 + $0xa8] sm:$0xff]
        %v1549 = vld [vmem:[%s1526 + $0xb0] sm:$0xff]
        %v1550 = vld [vmem:[%s1526 + $0xb8] sm:$0xff]
        %v1551 = vld [vmem:[%s1526 + $0xc0] sm:$0xff]
        %v1552 = vld [vmem:[%s1526 + $0xc8] sm:$0xff]
        %v1553 = vld [vmem:[%s1526 + $0xd0] sm:$0xff]
        %v1554 = vld [vmem:[%s1526 + $0xd8] sm:$0xff]
        %v1555 = vld [vmem:[%s1526 + $0xe0] sm:$0xff]
        %v1556 = vld [vmem:[%s1526 + $0xe8] sm:$0xff]
        %v1557 = vld [vmem:[%s1526 + $0xf0] sm:$0xff]
        %v1558 = vld [vmem:[%s1526 + $0xf8] sm:$0xff]
        %s1559 = scalar_lea.vmem [#allocation10], 2
        %v1560 = vld [vmem:[%s1559] sm:$0x3]
        %v1562 = vperm.slane %v1560, 0
        %v1563 = vperm.slane %v1560, 1
        %v1598 = vunpack.c.l.b16 %v1527
        %v1599 = vunpack.c.h.b16 %v1527
        %v1600 = vunpack.c.l.b16 %v1528
        %v1601 = vunpack.c.h.b16 %v1528
        %v1602 = vunpack.c.l.b16 %v1529
        %v1603 = vunpack.c.h.b16 %v1529
        %v1604 = vunpack.c.l.b16 %v1530
        %v1605 = vunpack.c.h.b16 %v1530
        %v1606 = vunpack.c.l.b16 %v1531
        %v1607 = vunpack.c.h.b16 %v1531
        %v1608 = vunpack.c.l.b16 %v1532
        %v1609 = vunpack.c.h.b16 %v1532
        %v1610 = vunpack.c.l.b16 %v1533
        %v1611 = vunpack.c.h.b16 %v1533
        %v1612 = vunpack.c.l.b16 %v1534
        %v1613 = vunpack.c.h.b16 %v1534
        %v1614 = vunpack.c.l.b16 %v1535
        %v1615 = vunpack.c.h.b16 %v1535
        %v1616 = vunpack.c.l.b16 %v1536
        %v1617 = vunpack.c.h.b16 %v1536
        %v1618 = vunpack.c.l.b16 %v1537
        %v1619 = vunpack.c.h.b16 %v1537
        %v1620 = vunpack.c.l.b16 %v1538
        %v1621 = vunpack.c.h.b16 %v1538
        %v1622 = vunpack.c.l.b16 %v1539
        %v1623 = vunpack.c.h.b16 %v1539
        %v1624 = vunpack.c.l.b16 %v1540
        %v1625 = vunpack.c.h.b16 %v1540
        %v1626 = vunpack.c.l.b16 %v1541
        %v1627 = vunpack.c.h.b16 %v1541
        %v1628 = vunpack.c.l.b16 %v1542
        %v1629 = vunpack.c.h.b16 %v1542
        %v1630 = vunpack.c.l.b16 %v1543
        %v1631 = vunpack.c.h.b16 %v1543
        %v1632 = vunpack.c.l.b16 %v1544
        %v1633 = vunpack.c.h.b16 %v1544
        %v1634 = vunpack.c.l.b16 %v1545
        %v1635 = vunpack.c.h.b16 %v1545
        %v1636 = vunpack.c.l.b16 %v1546
        %v1637 = vunpack.c.h.b16 %v1546
        %v1638 = vunpack.c.l.b16 %v1547
        %v1639 = vunpack.c.h.b16 %v1547
        %v1640 = vunpack.c.l.b16 %v1548
        %v1641 = vunpack.c.h.b16 %v1548
        %v1642 = vunpack.c.l.b16 %v1549
        %v1643 = vunpack.c.h.b16 %v1549
        %v1644 = vunpack.c.l.b16 %v1550
        %v1645 = vunpack.c.h.b16 %v1550
        %v1646 = vunpack.c.l.b16 %v1551
        %v1647 = vunpack.c.h.b16 %v1551
        %v1648 = vunpack.c.l.b16 %v1552
        %v1649 = vunpack.c.h.b16 %v1552
        %v1650 = vunpack.c.l.b16 %v1553
        %v1651 = vunpack.c.h.b16 %v1553
        %v1652 = vunpack.c.l.b16 %v1554
        %v1653 = vunpack.c.h.b16 %v1554
        %v1654 = vunpack.c.l.b16 %v1555
        %v1655 = vunpack.c.h.b16 %v1555
        %v1656 = vunpack.c.l.b16 %v1556
        %v1657 = vunpack.c.h.b16 %v1556
        %v1658 = vunpack.c.l.b16 %v1557
        %v1659 = vunpack.c.h.b16 %v1557
        %v1660 = vunpack.c.l.b16 %v1558
        %v1661 = vunpack.c.h.b16 %v1558
        %v1662 = vpack.c.b16 %v1600, %v1598
        %v1663 = vpack.c.b16 %v1601, %v1599
        %v1664 = vpack.c.b16 %v1604, %v1602
        %v1665 = vpack.c.b16 %v1605, %v1603
        %v1666 = vpack.c.b16 %v1608, %v1606
        %v1667 = vpack.c.b16 %v1609, %v1607
        %v1668 = vpack.c.b16 %v1612, %v1610
        %v1669 = vpack.c.b16 %v1613, %v1611
        %v1670 = vpack.c.b16 %v1616, %v1614
        %v1671 = vpack.c.b16 %v1617, %v1615
        %v1672 = vpack.c.b16 %v1620, %v1618
        %v1673 = vpack.c.b16 %v1621, %v1619
        %v1674 = vpack.c.b16 %v1624, %v1622
        %v1675 = vpack.c.b16 %v1625, %v1623
        %v1676 = vpack.c.b16 %v1628, %v1626
        %v1677 = vpack.c.b16 %v1629, %v1627
        %v1678 = vpack.c.b16 %v1632, %v1630
        %v1679 = vpack.c.b16 %v1633, %v1631
        %v1680 = vpack.c.b16 %v1636, %v1634
        %v1681 = vpack.c.b16 %v1637, %v1635
        %v1682 = vpack.c.b16 %v1640, %v1638
        %v1683 = vpack.c.b16 %v1641, %v1639
        %v1684 = vpack.c.b16 %v1644, %v1642
        %v1685 = vpack.c.b16 %v1645, %v1643
        %v1686 = vpack.c.b16 %v1648, %v1646
        %v1687 = vpack.c.b16 %v1649, %v1647
        %v1688 = vpack.c.b16 %v1652, %v1650
        %v1689 = vpack.c.b16 %v1653, %v1651
        %v1690 = vpack.c.b16 %v1656, %v1654
        %v1691 = vpack.c.b16 %v1657, %v1655
        %v1692 = vpack.c.b16 %v1660, %v1658
        %v1693 = vpack.c.b16 %v1661, %v1659
        %1726 = vmatpush.bf16.msra.mxu0 %v1676
        %1727 = vmatpush.bf16.msra.mxu0 %v1674
        %1728 = vmatpush.bf16.msra.mxu0 %v1672
        %1729 = vmatpush.bf16.msra.mxu0 %v1670
        %1730 = vmatpush.bf16.msra.mxu0 %v1668
        %1731 = vmatpush.bf16.msra.mxu0 %v1666
        %1732 = vmatpush.bf16.msra.mxu0 %v1664
        %1733 = vmatpush.bf16.msra.mxu0 %v1662
        %1734 = vmatmul.bf16.gmra.mxu0 %v1524
        %v1735 = vpop.f32.mrf.mxu0
        %v1736 = vadd.f32 %v1562, %v1735
        %v1737 = vpop.f32.mrf.mxu0
        %v1738 = vadd.f32 %v1562, %v1737
        %1739 = vdwg.mxu0
        %1740 = vmatpush.bf16.msra.mxu0 %v1692
        %1741 = vmatpush.bf16.msra.mxu0 %v1690
        %1742 = vmatpush.bf16.msra.mxu0 %v1688
        %1743 = vmatpush.bf16.msra.mxu0 %v1686
        %1744 = vmatpush.bf16.msra.mxu0 %v1684
        %1745 = vmatpush.bf16.msra.mxu0 %v1682
        %1746 = vmatpush.bf16.msra.mxu0 %v1680
        %1747 = vmatpush.bf16.msra.mxu0 %v1678
        %1748 = vmatmul.bf16.gmra.mxu0 %v1525
        %v1749 = vpop.f32.mrf.mxu0
        %v1750 = vadd.f32 %v1736, %v1749
        %v1751 = vpop.f32.mrf.mxu0
        %v1752 = vadd.f32 %v1738, %v1751
        %1753 = vdwg.mxu0
        %1754 = vmatpush.bf16.msra.mxu0 %v1677
        %1755 = vmatpush.bf16.msra.mxu0 %v1675
        %1756 = vmatpush.bf16.msra.mxu0 %v1673
        %1757 = vmatpush.bf16.msra.mxu0 %v1671
        %1758 = vmatpush.bf16.msra.mxu0 %v1669
        %1759 = vmatpush.bf16.msra.mxu0 %v1667
        %1760 = vmatpush.bf16.msra.mxu0 %v1665
        %1761 = vmatpush.bf16.msra.mxu0 %v1663
        %1762 = vmatmul.bf16.gmra.mxu0 %v1524
        %v1763 = vpop.f32.mrf.mxu0
        %v1764 = vadd.f32 %v1563, %v1763
        %v1765 = vpop.f32.mrf.mxu0
        %v1766 = vadd.f32 %v1563, %v1765
        %1767 = vdwg.mxu0
        %1768 = vmatpush.bf16.msra.mxu0 %v1693
        %1769 = vmatpush.bf16.msra.mxu0 %v1691
        %1770 = vmatpush.bf16.msra.mxu0 %v1689
        %1771 = vmatpush.bf16.msra.mxu0 %v1687
        %1772 = vmatpush.bf16.msra.mxu0 %v1685
        %1773 = vmatpush.bf16.msra.mxu0 %v1683
        %1774 = vmatpush.bf16.msra.mxu0 %v1681
        %1775 = vmatpush.bf16.msra.mxu0 %v1679
        %1776 = vmatmul.bf16.gmra.mxu0 %v1525
        %v1777 = vpop.f32.mrf.mxu0
        %v1778 = vadd.f32 %v1764, %v1777
        %v1779 = vpop.f32.mrf.mxu0
        %v1780 = vadd.f32 %v1766, %v1779
        %1781 = vdwg.mxu0
        %v1782 = vmul.f32 %v1750, 0.5
        %v1783 = vmul.f32 %v1778, 0.5
        %v1784 = vmul.f32 %v1752, 0.5
        %v1785 = vmul.f32 %v1780, 0.5
        %v1786 = vtanh.pop %v1782
        %v1787 = vtanh.pop %v1783
        %v1788 = vtanh.pop %v1784
        %v1789 = vtanh.pop %v1785
        %v1790 = vmul.f32 %v1786, 0.5
        %v1791 = vmul.f32 %v1787, 0.5
        %v1792 = vmul.f32 %v1788, 0.5
        %v1793 = vmul.f32 %v1789, 0.5
        %v1794 = vadd.f32 %v1790, 0.5
        %v1795 = vadd.f32 %v1791, 0.5
        %v1796 = vadd.f32 %v1792, 0.5
        %v1797 = vadd.f32 %v1793, 0.5
        %v1798 = vpack.c.bf16 %v1796, %v1794
        %v1799 = vpack.c.bf16 %v1797, %v1795
        %s1800 = scalar_lea.vmem [#allocation8], 512
        %v1801 = vld [vmem:[%s1800] sm:$0xff]
        %v1802 = vld [vmem:[%s1800 + $0x8] sm:$0xff]
        %v1803 = vld [vmem:[%s1800 + $0x10] sm:$0xff]
        %v1804 = vld [vmem:[%s1800 + $0x18] sm:$0xff]
        %v1805 = vld [vmem:[%s1800 + $0x20] sm:$0xff]
        %v1806 = vld [vmem:[%s1800 + $0x28] sm:$0xff]
        %v1807 = vld [vmem:[%s1800 + $0x30] sm:$0xff]
        %v1808 = vld [vmem:[%s1800 + $0x38] sm:$0xff]
        %v1809 = vld [vmem:[%s1800 + $0x40] sm:$0xff]
        %v1810 = vld [vmem:[%s1800 + $0x48] sm:$0xff]
        %v1811 = vld [vmem:[%s1800 + $0x50] sm:$0xff]
        %v1812 = vld [vmem:[%s1800 + $0x58] sm:$0xff]
        %v1813 = vld [vmem:[%s1800 + $0x60] sm:$0xff]
        %v1814 = vld [vmem:[%s1800 + $0x68] sm:$0xff]
        %v1815 = vld [vmem:[%s1800 + $0x70] sm:$0xff]
        %v1816 = vld [vmem:[%s1800 + $0x78] sm:$0xff]
        %v1817 = vld [vmem:[%s1800 + $0x80] sm:$0xff]
        %v1818 = vld [vmem:[%s1800 + $0x88] sm:$0xff]
        %v1819 = vld [vmem:[%s1800 + $0x90] sm:$0xff]
        %v1820 = vld [vmem:[%s1800 + $0x98] sm:$0xff]
        %v1821 = vld [vmem:[%s1800 + $0xa0] sm:$0xff]
        %v1822 = vld [vmem:[%s1800 + $0xa8] sm:$0xff]
        %v1823 = vld [vmem:[%s1800 + $0xb0] sm:$0xff]
        %v1824 = vld [vmem:[%s1800 + $0xb8] sm:$0xff]
        %v1825 = vld [vmem:[%s1800 + $0xc0] sm:$0xff]
        %v1826 = vld [vmem:[%s1800 + $0xc8] sm:$0xff]
        %v1827 = vld [vmem:[%s1800 + $0xd0] sm:$0xff]
        %v1828 = vld [vmem:[%s1800 + $0xd8] sm:$0xff]
        %v1829 = vld [vmem:[%s1800 + $0xe0] sm:$0xff]
        %v1830 = vld [vmem:[%s1800 + $0xe8] sm:$0xff]
        %v1831 = vld [vmem:[%s1800 + $0xf0] sm:$0xff]
        %v1832 = vld [vmem:[%s1800 + $0xf8] sm:$0xff]
        %s1833 = scalar_lea.vmem [#allocation10], 4
        %v1834 = vld [vmem:[%s1833] sm:$0x3]
        %v1836 = vperm.slane %v1834, 0
        %v1837 = vperm.slane %v1834, 1
        %v1872 = vunpack.c.l.b16 %v1801
        %v1873 = vunpack.c.h.b16 %v1801
        %v1874 = vunpack.c.l.b16 %v1802
        %v1875 = vunpack.c.h.b16 %v1802
        %v1876 = vunpack.c.l.b16 %v1803
        %v1877 = vunpack.c.h.b16 %v1803
        %v1878 = vunpack.c.l.b16 %v1804
        %v1879 = vunpack.c.h.b16 %v1804
        %v1880 = vunpack.c.l.b16 %v1805
        %v1881 = vunpack.c.h.b16 %v1805
        %v1882 = vunpack.c.l.b16 %v1806
        %v1883 = vunpack.c.h.b16 %v1806
        %v1884 = vunpack.c.l.b16 %v1807
        %v1885 = vunpack.c.h.b16 %v1807
        %v1886 = vunpack.c.l.b16 %v1808
        %v1887 = vunpack.c.h.b16 %v1808
        %v1888 = vunpack.c.l.b16 %v1809
        %v1889 = vunpack.c.h.b16 %v1809
        %v1890 = vunpack.c.l.b16 %v1810
        %v1891 = vunpack.c.h.b16 %v1810
        %v1892 = vunpack.c.l.b16 %v1811
        %v1893 = vunpack.c.h.b16 %v1811
        %v1894 = vunpack.c.l.b16 %v1812
        %v1895 = vunpack.c.h.b16 %v1812
        %v1896 = vunpack.c.l.b16 %v1813
        %v1897 = vunpack.c.h.b16 %v1813
        %v1898 = vunpack.c.l.b16 %v1814
        %v1899 = vunpack.c.h.b16 %v1814
        %v1900 = vunpack.c.l.b16 %v1815
        %v1901 = vunpack.c.h.b16 %v1815
        %v1902 = vunpack.c.l.b16 %v1816
        %v1903 = vunpack.c.h.b16 %v1816
        %v1904 = vunpack.c.l.b16 %v1817
        %v1905 = vunpack.c.h.b16 %v1817
        %v1906 = vunpack.c.l.b16 %v1818
        %v1907 = vunpack.c.h.b16 %v1818
        %v1908 = vunpack.c.l.b16 %v1819
        %v1909 = vunpack.c.h.b16 %v1819
        %v1910 = vunpack.c.l.b16 %v1820
        %v1911 = vunpack.c.h.b16 %v1820
        %v1912 = vunpack.c.l.b16 %v1821
        %v1913 = vunpack.c.h.b16 %v1821
        %v1914 = vunpack.c.l.b16 %v1822
        %v1915 = vunpack.c.h.b16 %v1822
        %v1916 = vunpack.c.l.b16 %v1823
        %v1917 = vunpack.c.h.b16 %v1823
        %v1918 = vunpack.c.l.b16 %v1824
        %v1919 = vunpack.c.h.b16 %v1824
        %v1920 = vunpack.c.l.b16 %v1825
        %v1921 = vunpack.c.h.b16 %v1825
        %v1922 = vunpack.c.l.b16 %v1826
        %v1923 = vunpack.c.h.b16 %v1826
        %v1924 = vunpack.c.l.b16 %v1827
        %v1925 = vunpack.c.h.b16 %v1827
        %v1926 = vunpack.c.l.b16 %v1828
        %v1927 = vunpack.c.h.b16 %v1828
        %v1928 = vunpack.c.l.b16 %v1829
        %v1929 = vunpack.c.h.b16 %v1829
        %v1930 = vunpack.c.l.b16 %v1830
        %v1931 = vunpack.c.h.b16 %v1830
        %v1932 = vunpack.c.l.b16 %v1831
        %v1933 = vunpack.c.h.b16 %v1831
        %v1934 = vunpack.c.l.b16 %v1832
        %v1935 = vunpack.c.h.b16 %v1832
        %v1936 = vpack.c.b16 %v1874, %v1872
        %v1937 = vpack.c.b16 %v1875, %v1873
        %v1938 = vpack.c.b16 %v1878, %v1876
        %v1939 = vpack.c.b16 %v1879, %v1877
        %v1940 = vpack.c.b16 %v1882, %v1880
        %v1941 = vpack.c.b16 %v1883, %v1881
        %v1942 = vpack.c.b16 %v1886, %v1884
        %v1943 = vpack.c.b16 %v1887, %v1885
        %v1944 = vpack.c.b16 %v1890, %v1888
        %v1945 = vpack.c.b16 %v1891, %v1889
        %v1946 = vpack.c.b16 %v1894, %v1892
        %v1947 = vpack.c.b16 %v1895, %v1893
        %v1948 = vpack.c.b16 %v1898, %v1896
        %v1949 = vpack.c.b16 %v1899, %v1897
        %v1950 = vpack.c.b16 %v1902, %v1900
        %v1951 = vpack.c.b16 %v1903, %v1901
        %v1952 = vpack.c.b16 %v1906, %v1904
        %v1953 = vpack.c.b16 %v1907, %v1905
        %v1954 = vpack.c.b16 %v1910, %v1908
        %v1955 = vpack.c.b16 %v1911, %v1909
        %v1956 = vpack.c.b16 %v1914, %v1912
        %v1957 = vpack.c.b16 %v1915, %v1913
        %v1958 = vpack.c.b16 %v1918, %v1916
        %v1959 = vpack.c.b16 %v1919, %v1917
        %v1960 = vpack.c.b16 %v1922, %v1920
        %v1961 = vpack.c.b16 %v1923, %v1921
        %v1962 = vpack.c.b16 %v1926, %v1924
        %v1963 = vpack.c.b16 %v1927, %v1925
        %v1964 = vpack.c.b16 %v1930, %v1928
        %v1965 = vpack.c.b16 %v1931, %v1929
        %v1966 = vpack.c.b16 %v1934, %v1932
        %v1967 = vpack.c.b16 %v1935, %v1933
        %2000 = vmatpush.bf16.msra.mxu0 %v1950
        %2001 = vmatpush.bf16.msra.mxu0 %v1948
        %2002 = vmatpush.bf16.msra.mxu0 %v1946
        %2003 = vmatpush.bf16.msra.mxu0 %v1944
        %2004 = vmatpush.bf16.msra.mxu0 %v1942
        %2005 = vmatpush.bf16.msra.mxu0 %v1940
        %2006 = vmatpush.bf16.msra.mxu0 %v1938
        %2007 = vmatpush.bf16.msra.mxu0 %v1936
        %2008 = vmatmul.bf16.gmra.mxu0 %v1798
        %v2009 = vpop.f32.mrf.mxu0
        %v2010 = vadd.f32 %v1836, %v2009
        %v2011 = vpop.f32.mrf.mxu0
        %v2012 = vadd.f32 %v1836, %v2011
        %2013 = vdwg.mxu0
        %2014 = vmatpush.bf16.msra.mxu0 %v1966
        %2015 = vmatpush.bf16.msra.mxu0 %v1964
        %2016 = vmatpush.bf16.msra.mxu0 %v1962
        %2017 = vmatpush.bf16.msra.mxu0 %v1960
        %2018 = vmatpush.bf16.msra.mxu0 %v1958
        %2019 = vmatpush.bf16.msra.mxu0 %v1956
        %2020 = vmatpush.bf16.msra.mxu0 %v1954
        %2021 = vmatpush.bf16.msra.mxu0 %v1952
        %2022 = vmatmul.bf16.gmra.mxu0 %v1799
        %v2023 = vpop.f32.mrf.mxu0
        %v2024 = vadd.f32 %v2010, %v2023
        %v2025 = vpop.f32.mrf.mxu0
        %v2026 = vadd.f32 %v2012, %v2025
        %2027 = vdwg.mxu0
        %2028 = vmatpush.bf16.msra.mxu0 %v1951
        %2029 = vmatpush.bf16.msra.mxu0 %v1949
        %2030 = vmatpush.bf16.msra.mxu0 %v1947
        %2031 = vmatpush.bf16.msra.mxu0 %v1945
        %2032 = vmatpush.bf16.msra.mxu0 %v1943
        %2033 = vmatpush.bf16.msra.mxu0 %v1941
        %2034 = vmatpush.bf16.msra.mxu0 %v1939
        %2035 = vmatpush.bf16.msra.mxu0 %v1937
        %2036 = vmatmul.bf16.gmra.mxu0 %v1798
        %v2037 = vpop.f32.mrf.mxu0
        %v2038 = vadd.f32 %v1837, %v2037
        %v2039 = vpop.f32.mrf.mxu0
        %v2040 = vadd.f32 %v1837, %v2039
        %2041 = vdwg.mxu0
        %2042 = vmatpush.bf16.msra.mxu0 %v1967
        %2043 = vmatpush.bf16.msra.mxu0 %v1965
        %2044 = vmatpush.bf16.msra.mxu0 %v1963
        %2045 = vmatpush.bf16.msra.mxu0 %v1961
        %2046 = vmatpush.bf16.msra.mxu0 %v1959
        %2047 = vmatpush.bf16.msra.mxu0 %v1957
        %2048 = vmatpush.bf16.msra.mxu0 %v1955
        %2049 = vmatpush.bf16.msra.mxu0 %v1953
        %2050 = vmatmul.bf16.gmra.mxu0 %v1799
        %v2051 = vpop.f32.mrf.mxu0
        %v2052 = vadd.f32 %v2038, %v2051
        %v2053 = vpop.f32.mrf.mxu0
        %v2054 = vadd.f32 %v2040, %v2053
        %2055 = vdwg.mxu0
        %v2056 = vmul.f32 %v2024, 0.5
        %v2057 = vmul.f32 %v2052, 0.5
        %v2058 = vmul.f32 %v2026, 0.5
        %v2059 = vmul.f32 %v2054, 0.5
        %v2060 = vtanh.pop %v2056
        %v2061 = vtanh.pop %v2057
        %v2062 = vtanh.pop %v2058
        %v2063 = vtanh.pop %v2059
        %v2064 = vmul.f32 %v2060, 0.5
        %v2065 = vmul.f32 %v2061, 0.5
        %v2066 = vmul.f32 %v2062, 0.5
        %v2067 = vmul.f32 %v2063, 0.5
        %v2068 = vadd.f32 %v2064, 0.5
        %v2069 = vadd.f32 %v2065, 0.5
        %v2070 = vadd.f32 %v2066, 0.5
        %v2071 = vadd.f32 %v2067, 0.5
        %v2072 = vpack.c.bf16 %v2070, %v2068
        %v2073 = vpack.c.bf16 %v2071, %v2069
        %s2074 = scalar_lea.vmem [#allocation8], 768
        %v2075 = vld [vmem:[%s2074] sm:$0xff]
        %v2076 = vld [vmem:[%s2074 + $0x8] sm:$0xff]
        %v2077 = vld [vmem:[%s2074 + $0x10] sm:$0xff]
        %v2078 = vld [vmem:[%s2074 + $0x18] sm:$0xff]
        %v2079 = vld [vmem:[%s2074 + $0x20] sm:$0xff]
        %v2080 = vld [vmem:[%s2074 + $0x28] sm:$0xff]
        %v2081 = vld [vmem:[%s2074 + $0x30] sm:$0xff]
        %v2082 = vld [vmem:[%s2074 + $0x38] sm:$0xff]
        %v2083 = vld [vmem:[%s2074 + $0x40] sm:$0xff]
        %v2084 = vld [vmem:[%s2074 + $0x48] sm:$0xff]
        %v2085 = vld [vmem:[%s2074 + $0x50] sm:$0xff]
        %v2086 = vld [vmem:[%s2074 + $0x58] sm:$0xff]
        %v2087 = vld [vmem:[%s2074 + $0x60] sm:$0xff]
        %v2088 = vld [vmem:[%s2074 + $0x68] sm:$0xff]
        %v2089 = vld [vmem:[%s2074 + $0x70] sm:$0xff]
        %v2090 = vld [vmem:[%s2074 + $0x78] sm:$0xff]
        %v2091 = vld [vmem:[%s2074 + $0x80] sm:$0xff]
        %v2092 = vld [vmem:[%s2074 + $0x88] sm:$0xff]
        %v2093 = vld [vmem:[%s2074 + $0x90] sm:$0xff]
        %v2094 = vld [vmem:[%s2074 + $0x98] sm:$0xff]
        %v2095 = vld [vmem:[%s2074 + $0xa0] sm:$0xff]
        %v2096 = vld [vmem:[%s2074 + $0xa8] sm:$0xff]
        %v2097 = vld [vmem:[%s2074 + $0xb0] sm:$0xff]
        %v2098 = vld [vmem:[%s2074 + $0xb8] sm:$0xff]
        %v2099 = vld [vmem:[%s2074 + $0xc0] sm:$0xff]
        %v2100 = vld [vmem:[%s2074 + $0xc8] sm:$0xff]
        %v2101 = vld [vmem:[%s2074 + $0xd0] sm:$0xff]
        %v2102 = vld [vmem:[%s2074 + $0xd8] sm:$0xff]
        %v2103 = vld [vmem:[%s2074 + $0xe0] sm:$0xff]
        %v2104 = vld [vmem:[%s2074 + $0xe8] sm:$0xff]
        %v2105 = vld [vmem:[%s2074 + $0xf0] sm:$0xff]
        %v2106 = vld [vmem:[%s2074 + $0xf8] sm:$0xff]
        %s2107 = scalar_lea.vmem [#allocation10], 6
        %v2108 = vld [vmem:[%s2107] sm:$0x3]
        %v2110 = vperm.slane %v2108, 0
        %v2111 = vperm.slane %v2108, 1
        %v2146 = vunpack.c.l.b16 %v2075
        %v2147 = vunpack.c.h.b16 %v2075
        %v2148 = vunpack.c.l.b16 %v2076
        %v2149 = vunpack.c.h.b16 %v2076
        %v2150 = vunpack.c.l.b16 %v2077
        %v2151 = vunpack.c.h.b16 %v2077
        %v2152 = vunpack.c.l.b16 %v2078
        %v2153 = vunpack.c.h.b16 %v2078
        %v2154 = vunpack.c.l.b16 %v2079
        %v2155 = vunpack.c.h.b16 %v2079
        %v2156 = vunpack.c.l.b16 %v2080
        %v2157 = vunpack.c.h.b16 %v2080
        %v2158 = vunpack.c.l.b16 %v2081
        %v2159 = vunpack.c.h.b16 %v2081
        %v2160 = vunpack.c.l.b16 %v2082
        %v2161 = vunpack.c.h.b16 %v2082
        %v2162 = vunpack.c.l.b16 %v2083
        %v2163 = vunpack.c.h.b16 %v2083
        %v2164 = vunpack.c.l.b16 %v2084
        %v2165 = vunpack.c.h.b16 %v2084
        %v2166 = vunpack.c.l.b16 %v2085
        %v2167 = vunpack.c.h.b16 %v2085
        %v2168 = vunpack.c.l.b16 %v2086
        %v2169 = vunpack.c.h.b16 %v2086
        %v2170 = vunpack.c.l.b16 %v2087
        %v2171 = vunpack.c.h.b16 %v2087
        %v2172 = vunpack.c.l.b16 %v2088
        %v2173 = vunpack.c.h.b16 %v2088
        %v2174 = vunpack.c.l.b16 %v2089
        %v2175 = vunpack.c.h.b16 %v2089
        %v2176 = vunpack.c.l.b16 %v2090
        %v2177 = vunpack.c.h.b16 %v2090
        %v2178 = vunpack.c.l.b16 %v2091
        %v2179 = vunpack.c.h.b16 %v2091
        %v2180 = vunpack.c.l.b16 %v2092
        %v2181 = vunpack.c.h.b16 %v2092
        %v2182 = vunpack.c.l.b16 %v2093
        %v2183 = vunpack.c.h.b16 %v2093
        %v2184 = vunpack.c.l.b16 %v2094
        %v2185 = vunpack.c.h.b16 %v2094
        %v2186 = vunpack.c.l.b16 %v2095
        %v2187 = vunpack.c.h.b16 %v2095
        %v2188 = vunpack.c.l.b16 %v2096
        %v2189 = vunpack.c.h.b16 %v2096
        %v2190 = vunpack.c.l.b16 %v2097
        %v2191 = vunpack.c.h.b16 %v2097
        %v2192 = vunpack.c.l.b16 %v2098
        %v2193 = vunpack.c.h.b16 %v2098
        %v2194 = vunpack.c.l.b16 %v2099
        %v2195 = vunpack.c.h.b16 %v2099
        %v2196 = vunpack.c.l.b16 %v2100
        %v2197 = vunpack.c.h.b16 %v2100
        %v2198 = vunpack.c.l.b16 %v2101
        %v2199 = vunpack.c.h.b16 %v2101
        %v2200 = vunpack.c.l.b16 %v2102
        %v2201 = vunpack.c.h.b16 %v2102
        %v2202 = vunpack.c.l.b16 %v2103
        %v2203 = vunpack.c.h.b16 %v2103
        %v2204 = vunpack.c.l.b16 %v2104
        %v2205 = vunpack.c.h.b16 %v2104
        %v2206 = vunpack.c.l.b16 %v2105
        %v2207 = vunpack.c.h.b16 %v2105
        %v2208 = vunpack.c.l.b16 %v2106
        %v2209 = vunpack.c.h.b16 %v2106
        %v2210 = vpack.c.b16 %v2148, %v2146
        %v2211 = vpack.c.b16 %v2149, %v2147
        %v2212 = vpack.c.b16 %v2152, %v2150
        %v2213 = vpack.c.b16 %v2153, %v2151
        %v2214 = vpack.c.b16 %v2156, %v2154
        %v2215 = vpack.c.b16 %v2157, %v2155
        %v2216 = vpack.c.b16 %v2160, %v2158
        %v2217 = vpack.c.b16 %v2161, %v2159
        %v2218 = vpack.c.b16 %v2164, %v2162
        %v2219 = vpack.c.b16 %v2165, %v2163
        %v2220 = vpack.c.b16 %v2168, %v2166
        %v2221 = vpack.c.b16 %v2169, %v2167
        %v2222 = vpack.c.b16 %v2172, %v2170
        %v2223 = vpack.c.b16 %v2173, %v2171
        %v2224 = vpack.c.b16 %v2176, %v2174
        %v2225 = vpack.c.b16 %v2177, %v2175
        %v2226 = vpack.c.b16 %v2180, %v2178
        %v2227 = vpack.c.b16 %v2181, %v2179
        %v2228 = vpack.c.b16 %v2184, %v2182
        %v2229 = vpack.c.b16 %v2185, %v2183
        %v2230 = vpack.c.b16 %v2188, %v2186
        %v2231 = vpack.c.b16 %v2189, %v2187
        %v2232 = vpack.c.b16 %v2192, %v2190
        %v2233 = vpack.c.b16 %v2193, %v2191
        %v2234 = vpack.c.b16 %v2196, %v2194
        %v2235 = vpack.c.b16 %v2197, %v2195
        %v2236 = vpack.c.b16 %v2200, %v2198
        %v2237 = vpack.c.b16 %v2201, %v2199
        %v2238 = vpack.c.b16 %v2204, %v2202
        %v2239 = vpack.c.b16 %v2205, %v2203
        %v2240 = vpack.c.b16 %v2208, %v2206
        %v2241 = vpack.c.b16 %v2209, %v2207
        %2274 = vmatpush.bf16.msra.mxu0 %v2224
        %2275 = vmatpush.bf16.msra.mxu0 %v2222
        %2276 = vmatpush.bf16.msra.mxu0 %v2220
        %2277 = vmatpush.bf16.msra.mxu0 %v2218
        %2278 = vmatpush.bf16.msra.mxu0 %v2216
        %2279 = vmatpush.bf16.msra.mxu0 %v2214
        %2280 = vmatpush.bf16.msra.mxu0 %v2212
        %2281 = vmatpush.bf16.msra.mxu0 %v2210
        %2282 = vmatmul.bf16.gmra.mxu0 %v2072
        %v2283 = vpop.f32.mrf.mxu0
        %v2284 = vadd.f32 %v2110, %v2283
        %v2285 = vpop.f32.mrf.mxu0
        %v2286 = vadd.f32 %v2110, %v2285
        %2287 = vdwg.mxu0
        %2288 = vmatpush.bf16.msra.mxu0 %v2240
        %2289 = vmatpush.bf16.msra.mxu0 %v2238
        %2290 = vmatpush.bf16.msra.mxu0 %v2236
        %2291 = vmatpush.bf16.msra.mxu0 %v2234
        %2292 = vmatpush.bf16.msra.mxu0 %v2232
        %2293 = vmatpush.bf16.msra.mxu0 %v2230
        %2294 = vmatpush.bf16.msra.mxu0 %v2228
        %2295 = vmatpush.bf16.msra.mxu0 %v2226
        %2296 = vmatmul.bf16.gmra.mxu0 %v2073
        %v2297 = vpop.f32.mrf.mxu0
        %v2298 = vadd.f32 %v2284, %v2297
        %v2299 = vpop.f32.mrf.mxu0
        %v2300 = vadd.f32 %v2286, %v2299
        %2301 = vdwg.mxu0
        %2302 = vmatpush.bf16.msra.mxu0 %v2225
        %2303 = vmatpush.bf16.msra.mxu0 %v2223
        %2304 = vmatpush.bf16.msra.mxu0 %v2221
        %2305 = vmatpush.bf16.msra.mxu0 %v2219
        %2306 = vmatpush.bf16.msra.mxu0 %v2217
        %2307 = vmatpush.bf16.msra.mxu0 %v2215
        %2308 = vmatpush.bf16.msra.mxu0 %v2213
        %2309 = vmatpush.bf16.msra.mxu0 %v2211
        %2310 = vmatmul.bf16.gmra.mxu0 %v2072
        %v2311 = vpop.f32.mrf.mxu0
        %v2312 = vadd.f32 %v2111, %v2311
        %v2313 = vpop.f32.mrf.mxu0
        %v2314 = vadd.f32 %v2111, %v2313
        %2315 = vdwg.mxu0
        %2316 = vmatpush.bf16.msra.mxu0 %v2241
        %2317 = vmatpush.bf16.msra.mxu0 %v2239
        %2318 = vmatpush.bf16.msra.mxu0 %v2237
        %2319 = vmatpush.bf16.msra.mxu0 %v2235
        %2320 = vmatpush.bf16.msra.mxu0 %v2233
        %2321 = vmatpush.bf16.msra.mxu0 %v2231
        %2322 = vmatpush.bf16.msra.mxu0 %v2229
        %2323 = vmatpush.bf16.msra.mxu0 %v2227
        %2324 = vmatmul.bf16.gmra.mxu0 %v2073
        %v2325 = vpop.f32.mrf.mxu0
        %v2326 = vadd.f32 %v2312, %v2325
        %v2327 = vpop.f32.mrf.mxu0
        %v2328 = vadd.f32 %v2314, %v2327
        %2329 = vdwg.mxu0
        %v2330 = vmul.f32 %v2298, 0.5
        %v2331 = vmul.f32 %v2326, 0.5
        %v2332 = vmul.f32 %v2300, 0.5
        %v2333 = vmul.f32 %v2328, 0.5
        %v2334 = vtanh.pop %v2330
        %v2335 = vtanh.pop %v2331
        %v2336 = vtanh.pop %v2332
        %v2337 = vtanh.pop %v2333
        %v2338 = vmul.f32 %v2334, 0.5
        %v2339 = vmul.f32 %v2335, 0.5
        %v2340 = vmul.f32 %v2336, 0.5
        %v2341 = vmul.f32 %v2337, 0.5
        %v2342 = vadd.f32 %v2338, 0.5
        %v2343 = vadd.f32 %v2339, 0.5
        %v2344 = vadd.f32 %v2340, 0.5
        %v2345 = vadd.f32 %v2341, 0.5
        %v2346 = vpack.c.bf16 %v2344, %v2342
        %v2347 = vpack.c.bf16 %v2345, %v2343
        %s2348 = scalar_lea.vmem [#allocation8], 1024
        %v2349 = vld [vmem:[%s2348] sm:$0xff]
        %v2350 = vld [vmem:[%s2348 + $0x8] sm:$0xff]
        %v2351 = vld [vmem:[%s2348 + $0x10] sm:$0xff]
        %v2352 = vld [vmem:[%s2348 + $0x18] sm:$0xff]
        %v2353 = vld [vmem:[%s2348 + $0x20] sm:$0xff]
        %v2354 = vld [vmem:[%s2348 + $0x28] sm:$0xff]
        %v2355 = vld [vmem:[%s2348 + $0x30] sm:$0xff]
        %v2356 = vld [vmem:[%s2348 + $0x38] sm:$0xff]
        %v2357 = vld [vmem:[%s2348 + $0x40] sm:$0xff]
        %v2358 = vld [vmem:[%s2348 + $0x48] sm:$0xff]
        %v2359 = vld [vmem:[%s2348 + $0x50] sm:$0xff]
        %v2360 = vld [vmem:[%s2348 + $0x58] sm:$0xff]
        %v2361 = vld [vmem:[%s2348 + $0x60] sm:$0xff]
        %v2362 = vld [vmem:[%s2348 + $0x68] sm:$0xff]
        %v2363 = vld [vmem:[%s2348 + $0x70] sm:$0xff]
        %v2364 = vld [vmem:[%s2348 + $0x78] sm:$0xff]
        %v2365 = vld [vmem:[%s2348 + $0x80] sm:$0xff]
        %v2366 = vld [vmem:[%s2348 + $0x88] sm:$0xff]
        %v2367 = vld [vmem:[%s2348 + $0x90] sm:$0xff]
        %v2368 = vld [vmem:[%s2348 + $0x98] sm:$0xff]
        %v2369 = vld [vmem:[%s2348 + $0xa0] sm:$0xff]
        %v2370 = vld [vmem:[%s2348 + $0xa8] sm:$0xff]
        %v2371 = vld [vmem:[%s2348 + $0xb0] sm:$0xff]
        %v2372 = vld [vmem:[%s2348 + $0xb8] sm:$0xff]
        %v2373 = vld [vmem:[%s2348 + $0xc0] sm:$0xff]
        %v2374 = vld [vmem:[%s2348 + $0xc8] sm:$0xff]
        %v2375 = vld [vmem:[%s2348 + $0xd0] sm:$0xff]
        %v2376 = vld [vmem:[%s2348 + $0xd8] sm:$0xff]
        %v2377 = vld [vmem:[%s2348 + $0xe0] sm:$0xff]
        %v2378 = vld [vmem:[%s2348 + $0xe8] sm:$0xff]
        %v2379 = vld [vmem:[%s2348 + $0xf0] sm:$0xff]
        %v2380 = vld [vmem:[%s2348 + $0xf8] sm:$0xff]
        %s2381 = scalar_lea.vmem [#allocation10], 8
        %v2382 = vld [vmem:[%s2381] sm:$0x3]
        %v2384 = vperm.slane %v2382, 0
        %v2385 = vperm.slane %v2382, 1
        %v2420 = vunpack.c.l.b16 %v2349
        %v2421 = vunpack.c.h.b16 %v2349
        %v2422 = vunpack.c.l.b16 %v2350
        %v2423 = vunpack.c.h.b16 %v2350
        %v2424 = vunpack.c.l.b16 %v2351
        %v2425 = vunpack.c.h.b16 %v2351
        %v2426 = vunpack.c.l.b16 %v2352
        %v2427 = vunpack.c.h.b16 %v2352
        %v2428 = vunpack.c.l.b16 %v2353
        %v2429 = vunpack.c.h.b16 %v2353
        %v2430 = vunpack.c.l.b16 %v2354
        %v2431 = vunpack.c.h.b16 %v2354
        %v2432 = vunpack.c.l.b16 %v2355
        %v2433 = vunpack.c.h.b16 %v2355
        %v2434 = vunpack.c.l.b16 %v2356
        %v2435 = vunpack.c.h.b16 %v2356
        %v2436 = vunpack.c.l.b16 %v2357
        %v2437 = vunpack.c.h.b16 %v2357
        %v2438 = vunpack.c.l.b16 %v2358
        %v2439 = vunpack.c.h.b16 %v2358
        %v2440 = vunpack.c.l.b16 %v2359
        %v2441 = vunpack.c.h.b16 %v2359
        %v2442 = vunpack.c.l.b16 %v2360
        %v2443 = vunpack.c.h.b16 %v2360
        %v2444 = vunpack.c.l.b16 %v2361
        %v2445 = vunpack.c.h.b16 %v2361
        %v2446 = vunpack.c.l.b16 %v2362
        %v2447 = vunpack.c.h.b16 %v2362
        %v2448 = vunpack.c.l.b16 %v2363
        %v2449 = vunpack.c.h.b16 %v2363
        %v2450 = vunpack.c.l.b16 %v2364
        %v2451 = vunpack.c.h.b16 %v2364
        %v2452 = vunpack.c.l.b16 %v2365
        %v2453 = vunpack.c.h.b16 %v2365
        %v2454 = vunpack.c.l.b16 %v2366
        %v2455 = vunpack.c.h.b16 %v2366
        %v2456 = vunpack.c.l.b16 %v2367
        %v2457 = vunpack.c.h.b16 %v2367
        %v2458 = vunpack.c.l.b16 %v2368
        %v2459 = vunpack.c.h.b16 %v2368
        %v2460 = vunpack.c.l.b16 %v2369
        %v2461 = vunpack.c.h.b16 %v2369
        %v2462 = vunpack.c.l.b16 %v2370
        %v2463 = vunpack.c.h.b16 %v2370
        %v2464 = vunpack.c.l.b16 %v2371
        %v2465 = vunpack.c.h.b16 %v2371
        %v2466 = vunpack.c.l.b16 %v2372
        %v2467 = vunpack.c.h.b16 %v2372
        %v2468 = vunpack.c.l.b16 %v2373
        %v2469 = vunpack.c.h.b16 %v2373
        %v2470 = vunpack.c.l.b16 %v2374
        %v2471 = vunpack.c.h.b16 %v2374
        %v2472 = vunpack.c.l.b16 %v2375
        %v2473 = vunpack.c.h.b16 %v2375
        %v2474 = vunpack.c.l.b16 %v2376
        %v2475 = vunpack.c.h.b16 %v2376
        %v2476 = vunpack.c.l.b16 %v2377
        %v2477 = vunpack.c.h.b16 %v2377
        %v2478 = vunpack.c.l.b16 %v2378
        %v2479 = vunpack.c.h.b16 %v2378
        %v2480 = vunpack.c.l.b16 %v2379
        %v2481 = vunpack.c.h.b16 %v2379
        %v2482 = vunpack.c.l.b16 %v2380
        %v2483 = vunpack.c.h.b16 %v2380
        %v2484 = vpack.c.b16 %v2422, %v2420
        %v2485 = vpack.c.b16 %v2423, %v2421
        %v2486 = vpack.c.b16 %v2426, %v2424
        %v2487 = vpack.c.b16 %v2427, %v2425
        %v2488 = vpack.c.b16 %v2430, %v2428
        %v2489 = vpack.c.b16 %v2431, %v2429
        %v2490 = vpack.c.b16 %v2434, %v2432
        %v2491 = vpack.c.b16 %v2435, %v2433
        %v2492 = vpack.c.b16 %v2438, %v2436
        %v2493 = vpack.c.b16 %v2439, %v2437
        %v2494 = vpack.c.b16 %v2442, %v2440
        %v2495 = vpack.c.b16 %v2443, %v2441
        %v2496 = vpack.c.b16 %v2446, %v2444
        %v2497 = vpack.c.b16 %v2447, %v2445
        %v2498 = vpack.c.b16 %v2450, %v2448
        %v2499 = vpack.c.b16 %v2451, %v2449
        %v2500 = vpack.c.b16 %v2454, %v2452
        %v2501 = vpack.c.b16 %v2455, %v2453
        %v2502 = vpack.c.b16 %v2458, %v2456
        %v2503 = vpack.c.b16 %v2459, %v2457
        %v2504 = vpack.c.b16 %v2462, %v2460
        %v2505 = vpack.c.b16 %v2463, %v2461
        %v2506 = vpack.c.b16 %v2466, %v2464
        %v2507 = vpack.c.b16 %v2467, %v2465
        %v2508 = vpack.c.b16 %v2470, %v2468
        %v2509 = vpack.c.b16 %v2471, %v2469
        %v2510 = vpack.c.b16 %v2474, %v2472
        %v2511 = vpack.c.b16 %v2475, %v2473
        %v2512 = vpack.c.b16 %v2478, %v2476
        %v2513 = vpack.c.b16 %v2479, %v2477
        %v2514 = vpack.c.b16 %v2482, %v2480
        %v2515 = vpack.c.b16 %v2483, %v2481
        %2548 = vmatpush.bf16.msra.mxu0 %v2498
        %2549 = vmatpush.bf16.msra.mxu0 %v2496
        %2550 = vmatpush.bf16.msra.mxu0 %v2494
        %2551 = vmatpush.bf16.msra.mxu0 %v2492
        %2552 = vmatpush.bf16.msra.mxu0 %v2490
        %2553 = vmatpush.bf16.msra.mxu0 %v2488
        %2554 = vmatpush.bf16.msra.mxu0 %v2486
        %2555 = vmatpush.bf16.msra.mxu0 %v2484
        %2556 = vmatmul.bf16.gmra.mxu0 %v2346
        %v2557 = vpop.f32.mrf.mxu0
        %v2558 = vadd.f32 %v2384, %v2557
        %v2559 = vpop.f32.mrf.mxu0
        %v2560 = vadd.f32 %v2384, %v2559
        %2561 = vdwg.mxu0
        %2562 = vmatpush.bf16.msra.mxu0 %v2514
        %2563 = vmatpush.bf16.msra.mxu0 %v2512
        %2564 = vmatpush.bf16.msra.mxu0 %v2510
        %2565 = vmatpush.bf16.msra.mxu0 %v2508
        %2566 = vmatpush.bf16.msra.mxu0 %v2506
        %2567 = vmatpush.bf16.msra.mxu0 %v2504
        %2568 = vmatpush.bf16.msra.mxu0 %v2502
        %2569 = vmatpush.bf16.msra.mxu0 %v2500
        %2570 = vmatmul.bf16.gmra.mxu0 %v2347
        %v2571 = vpop.f32.mrf.mxu0
        %v2572 = vadd.f32 %v2558, %v2571
        %v2573 = vpop.f32.mrf.mxu0
        %v2574 = vadd.f32 %v2560, %v2573
        %2575 = vdwg.mxu0
        %2576 = vmatpush.bf16.msra.mxu0 %v2499
        %2577 = vmatpush.bf16.msra.mxu0 %v2497
        %2578 = vmatpush.bf16.msra.mxu0 %v2495
        %2579 = vmatpush.bf16.msra.mxu0 %v2493
        %2580 = vmatpush.bf16.msra.mxu0 %v2491
        %2581 = vmatpush.bf16.msra.mxu0 %v2489
        %2582 = vmatpush.bf16.msra.mxu0 %v2487
        %2583 = vmatpush.bf16.msra.mxu0 %v2485
        %2584 = vmatmul.bf16.gmra.mxu0 %v2346
        %v2585 = vpop.f32.mrf.mxu0
        %v2586 = vadd.f32 %v2385, %v2585
        %v2587 = vpop.f32.mrf.mxu0
        %v2588 = vadd.f32 %v2385, %v2587
        %2589 = vdwg.mxu0
        %2590 = vmatpush.bf16.msra.mxu0 %v2515
        %2591 = vmatpush.bf16.msra.mxu0 %v2513
        %2592 = vmatpush.bf16.msra.mxu0 %v2511
        %2593 = vmatpush.bf16.msra.mxu0 %v2509
        %2594 = vmatpush.bf16.msra.mxu0 %v2507
        %2595 = vmatpush.bf16.msra.mxu0 %v2505
        %2596 = vmatpush.bf16.msra.mxu0 %v2503
        %2597 = vmatpush.bf16.msra.mxu0 %v2501
        %2598 = vmatmul.bf16.gmra.mxu0 %v2347
        %v2599 = vpop.f32.mrf.mxu0
        %v2600 = vadd.f32 %v2586, %v2599
        %v2601 = vpop.f32.mrf.mxu0
        %v2602 = vadd.f32 %v2588, %v2601
        %2603 = vdwg.mxu0
        %v2604 = vmul.f32 %v2572, 0.5
        %v2605 = vmul.f32 %v2600, 0.5
        %v2606 = vmul.f32 %v2574, 0.5
        %v2607 = vmul.f32 %v2602, 0.5
        %v2608 = vtanh.pop %v2604
        %v2609 = vtanh.pop %v2605
        %v2610 = vtanh.pop %v2606
        %v2611 = vtanh.pop %v2607
        %v2612 = vmul.f32 %v2608, 0.5
        %v2613 = vmul.f32 %v2609, 0.5
        %v2614 = vmul.f32 %v2610, 0.5
        %v2615 = vmul.f32 %v2611, 0.5
        %v2616 = vadd.f32 %v2612, 0.5
        %v2617 = vadd.f32 %v2613, 0.5
        %v2618 = vadd.f32 %v2614, 0.5
        %v2619 = vadd.f32 %v2615, 0.5
        %v2620 = vpack.c.bf16 %v2618, %v2616
        %v2621 = vpack.c.bf16 %v2619, %v2617
        %s2622 = scalar_lea.vmem [#allocation8], 1280
        %v2623 = vld [vmem:[%s2622] sm:$0xff]
        %v2624 = vld [vmem:[%s2622 + $0x8] sm:$0xff]
        %v2625 = vld [vmem:[%s2622 + $0x10] sm:$0xff]
        %v2626 = vld [vmem:[%s2622 + $0x18] sm:$0xff]
        %v2627 = vld [vmem:[%s2622 + $0x20] sm:$0xff]
        %v2628 = vld [vmem:[%s2622 + $0x28] sm:$0xff]
        %v2629 = vld [vmem:[%s2622 + $0x30] sm:$0xff]
        %v2630 = vld [vmem:[%s2622 + $0x38] sm:$0xff]
        %v2631 = vld [vmem:[%s2622 + $0x40] sm:$0xff]
        %v2632 = vld [vmem:[%s2622 + $0x48] sm:$0xff]
        %v2633 = vld [vmem:[%s2622 + $0x50] sm:$0xff]
        %v2634 = vld [vmem:[%s2622 + $0x58] sm:$0xff]
        %v2635 = vld [vmem:[%s2622 + $0x60] sm:$0xff]
        %v2636 = vld [vmem:[%s2622 + $0x68] sm:$0xff]
        %v2637 = vld [vmem:[%s2622 + $0x70] sm:$0xff]
        %v2638 = vld [vmem:[%s2622 + $0x78] sm:$0xff]
        %v2639 = vld [vmem:[%s2622 + $0x80] sm:$0xff]
        %v2640 = vld [vmem:[%s2622 + $0x88] sm:$0xff]
        %v2641 = vld [vmem:[%s2622 + $0x90] sm:$0xff]
        %v2642 = vld [vmem:[%s2622 + $0x98] sm:$0xff]
        %v2643 = vld [vmem:[%s2622 + $0xa0] sm:$0xff]
        %v2644 = vld [vmem:[%s2622 + $0xa8] sm:$0xff]
        %v2645 = vld [vmem:[%s2622 + $0xb0] sm:$0xff]
        %v2646 = vld [vmem:[%s2622 + $0xb8] sm:$0xff]
        %v2647 = vld [vmem:[%s2622 + $0xc0] sm:$0xff]
        %v2648 = vld [vmem:[%s2622 + $0xc8] sm:$0xff]
        %v2649 = vld [vmem:[%s2622 + $0xd0] sm:$0xff]
        %v2650 = vld [vmem:[%s2622 + $0xd8] sm:$0xff]
        %v2651 = vld [vmem:[%s2622 + $0xe0] sm:$0xff]
        %v2652 = vld [vmem:[%s2622 + $0xe8] sm:$0xff]
        %v2653 = vld [vmem:[%s2622 + $0xf0] sm:$0xff]
        %v2654 = vld [vmem:[%s2622 + $0xf8] sm:$0xff]
        %s2655 = scalar_lea.vmem [#allocation10], 10
        %v2656 = vld [vmem:[%s2655] sm:$0x3]
        %v2658 = vperm.slane %v2656, 0
        %v2659 = vperm.slane %v2656, 1
        %v2694 = vunpack.c.l.b16 %v2623
        %v2695 = vunpack.c.h.b16 %v2623
        %v2696 = vunpack.c.l.b16 %v2624
        %v2697 = vunpack.c.h.b16 %v2624
        %v2698 = vunpack.c.l.b16 %v2625
        %v2699 = vunpack.c.h.b16 %v2625
        %v2700 = vunpack.c.l.b16 %v2626
        %v2701 = vunpack.c.h.b16 %v2626
        %v2702 = vunpack.c.l.b16 %v2627
        %v2703 = vunpack.c.h.b16 %v2627
        %v2704 = vunpack.c.l.b16 %v2628
        %v2705 = vunpack.c.h.b16 %v2628
        %v2706 = vunpack.c.l.b16 %v2629
        %v2707 = vunpack.c.h.b16 %v2629
        %v2708 = vunpack.c.l.b16 %v2630
        %v2709 = vunpack.c.h.b16 %v2630
        %v2710 = vunpack.c.l.b16 %v2631
        %v2711 = vunpack.c.h.b16 %v2631
        %v2712 = vunpack.c.l.b16 %v2632
        %v2713 = vunpack.c.h.b16 %v2632
        %v2714 = vunpack.c.l.b16 %v2633
        %v2715 = vunpack.c.h.b16 %v2633
        %v2716 = vunpack.c.l.b16 %v2634
        %v2717 = vunpack.c.h.b16 %v2634
        %v2718 = vunpack.c.l.b16 %v2635
        %v2719 = vunpack.c.h.b16 %v2635
        %v2720 = vunpack.c.l.b16 %v2636
        %v2721 = vunpack.c.h.b16 %v2636
        %v2722 = vunpack.c.l.b16 %v2637
        %v2723 = vunpack.c.h.b16 %v2637
        %v2724 = vunpack.c.l.b16 %v2638
        %v2725 = vunpack.c.h.b16 %v2638
        %v2726 = vunpack.c.l.b16 %v2639
        %v2727 = vunpack.c.h.b16 %v2639
        %v2728 = vunpack.c.l.b16 %v2640
        %v2729 = vunpack.c.h.b16 %v2640
        %v2730 = vunpack.c.l.b16 %v2641
        %v2731 = vunpack.c.h.b16 %v2641
        %v2732 = vunpack.c.l.b16 %v2642
        %v2733 = vunpack.c.h.b16 %v2642
        %v2734 = vunpack.c.l.b16 %v2643
        %v2735 = vunpack.c.h.b16 %v2643
        %v2736 = vunpack.c.l.b16 %v2644
        %v2737 = vunpack.c.h.b16 %v2644
        %v2738 = vunpack.c.l.b16 %v2645
        %v2739 = vunpack.c.h.b16 %v2645
        %v2740 = vunpack.c.l.b16 %v2646
        %v2741 = vunpack.c.h.b16 %v2646
        %v2742 = vunpack.c.l.b16 %v2647
        %v2743 = vunpack.c.h.b16 %v2647
        %v2744 = vunpack.c.l.b16 %v2648
        %v2745 = vunpack.c.h.b16 %v2648
        %v2746 = vunpack.c.l.b16 %v2649
        %v2747 = vunpack.c.h.b16 %v2649
        %v2748 = vunpack.c.l.b16 %v2650
        %v2749 = vunpack.c.h.b16 %v2650
        %v2750 = vunpack.c.l.b16 %v2651
        %v2751 = vunpack.c.h.b16 %v2651
        %v2752 = vunpack.c.l.b16 %v2652
        %v2753 = vunpack.c.h.b16 %v2652
        %v2754 = vunpack.c.l.b16 %v2653
        %v2755 = vunpack.c.h.b16 %v2653
        %v2756 = vunpack.c.l.b16 %v2654
        %v2757 = vunpack.c.h.b16 %v2654
        %v2758 = vpack.c.b16 %v2696, %v2694
        %v2759 = vpack.c.b16 %v2697, %v2695
        %v2760 = vpack.c.b16 %v2700, %v2698
        %v2761 = vpack.c.b16 %v2701, %v2699
        %v2762 = vpack.c.b16 %v2704, %v2702
        %v2763 = vpack.c.b16 %v2705, %v2703
        %v2764 = vpack.c.b16 %v2708, %v2706
        %v2765 = vpack.c.b16 %v2709, %v2707
        %v2766 = vpack.c.b16 %v2712, %v2710
        %v2767 = vpack.c.b16 %v2713, %v2711
        %v2768 = vpack.c.b16 %v2716, %v2714
        %v2769 = vpack.c.b16 %v2717, %v2715
        %v2770 = vpack.c.b16 %v2720, %v2718
        %v2771 = vpack.c.b16 %v2721, %v2719
        %v2772 = vpack.c.b16 %v2724, %v2722
        %v2773 = vpack.c.b16 %v2725, %v2723
        %v2774 = vpack.c.b16 %v2728, %v2726
        %v2775 = vpack.c.b16 %v2729, %v2727
        %v2776 = vpack.c.b16 %v2732, %v2730
        %v2777 = vpack.c.b16 %v2733, %v2731
        %v2778 = vpack.c.b16 %v2736, %v2734
        %v2779 = vpack.c.b16 %v2737, %v2735
        %v2780 = vpack.c.b16 %v2740, %v2738
        %v2781 = vpack.c.b16 %v2741, %v2739
        %v2782 = vpack.c.b16 %v2744, %v2742
        %v2783 = vpack.c.b16 %v2745, %v2743
        %v2784 = vpack.c.b16 %v2748, %v2746
        %v2785 = vpack.c.b16 %v2749, %v2747
        %v2786 = vpack.c.b16 %v2752, %v2750
        %v2787 = vpack.c.b16 %v2753, %v2751
        %v2788 = vpack.c.b16 %v2756, %v2754
        %v2789 = vpack.c.b16 %v2757, %v2755
        %2822 = vmatpush.bf16.msra.mxu0 %v2772
        %2823 = vmatpush.bf16.msra.mxu0 %v2770
        %2824 = vmatpush.bf16.msra.mxu0 %v2768
        %2825 = vmatpush.bf16.msra.mxu0 %v2766
        %2826 = vmatpush.bf16.msra.mxu0 %v2764
        %2827 = vmatpush.bf16.msra.mxu0 %v2762
        %2828 = vmatpush.bf16.msra.mxu0 %v2760
        %2829 = vmatpush.bf16.msra.mxu0 %v2758
        %2830 = vmatmul.bf16.gmra.mxu0 %v2620
        %v2831 = vpop.f32.mrf.mxu0
        %v2832 = vadd.f32 %v2658, %v2831
        %v2833 = vpop.f32.mrf.mxu0
        %v2834 = vadd.f32 %v2658, %v2833
        %2835 = vdwg.mxu0
        %2836 = vmatpush.bf16.msra.mxu0 %v2788
        %2837 = vmatpush.bf16.msra.mxu0 %v2786
        %2838 = vmatpush.bf16.msra.mxu0 %v2784
        %2839 = vmatpush.bf16.msra.mxu0 %v2782
        %2840 = vmatpush.bf16.msra.mxu0 %v2780
        %2841 = vmatpush.bf16.msra.mxu0 %v2778
        %2842 = vmatpush.bf16.msra.mxu0 %v2776
        %2843 = vmatpush.bf16.msra.mxu0 %v2774
        %2844 = vmatmul.bf16.gmra.mxu0 %v2621
        %v2845 = vpop.f32.mrf.mxu0
        %v2846 = vadd.f32 %v2832, %v2845
        %v2847 = vpop.f32.mrf.mxu0
        %v2848 = vadd.f32 %v2834, %v2847
        %2849 = vdwg.mxu0
        %2850 = vmatpush.bf16.msra.mxu0 %v2773
        %2851 = vmatpush.bf16.msra.mxu0 %v2771
        %2852 = vmatpush.bf16.msra.mxu0 %v2769
        %2853 = vmatpush.bf16.msra.mxu0 %v2767
        %2854 = vmatpush.bf16.msra.mxu0 %v2765
        %2855 = vmatpush.bf16.msra.mxu0 %v2763
        %2856 = vmatpush.bf16.msra.mxu0 %v2761
        %2857 = vmatpush.bf16.msra.mxu0 %v2759
        %2858 = vmatmul.bf16.gmra.mxu0 %v2620
        %v2859 = vpop.f32.mrf.mxu0
        %v2860 = vadd.f32 %v2659, %v2859
        %v2861 = vpop.f32.mrf.mxu0
        %v2862 = vadd.f32 %v2659, %v2861
        %2863 = vdwg.mxu0
        %2864 = vmatpush.bf16.msra.mxu0 %v2789
        %2865 = vmatpush.bf16.msra.mxu0 %v2787
        %2866 = vmatpush.bf16.msra.mxu0 %v2785
        %2867 = vmatpush.bf16.msra.mxu0 %v2783
        %2868 = vmatpush.bf16.msra.mxu0 %v2781
        %2869 = vmatpush.bf16.msra.mxu0 %v2779
        %2870 = vmatpush.bf16.msra.mxu0 %v2777
        %2871 = vmatpush.bf16.msra.mxu0 %v2775
        %2872 = vmatmul.bf16.gmra.mxu0 %v2621
        %v2873 = vpop.f32.mrf.mxu0
        %v2874 = vadd.f32 %v2860, %v2873
        %v2875 = vpop.f32.mrf.mxu0
        %v2876 = vadd.f32 %v2862, %v2875
        %2877 = vdwg.mxu0
        %v2878 = vmul.f32 %v2846, 0.5
        %v2879 = vmul.f32 %v2874, 0.5
        %v2880 = vmul.f32 %v2848, 0.5
        %v2881 = vmul.f32 %v2876, 0.5
        %v2882 = vtanh.pop %v2878
        %v2883 = vtanh.pop %v2879
        %v2884 = vtanh.pop %v2880
        %v2885 = vtanh.pop %v2881
        %v2886 = vmul.f32 %v2882, 0.5
        %v2887 = vmul.f32 %v2883, 0.5
        %v2888 = vmul.f32 %v2884, 0.5
        %v2889 = vmul.f32 %v2885, 0.5
        %v2890 = vadd.f32 %v2886, 0.5
        %v2891 = vadd.f32 %v2887, 0.5
        %v2892 = vadd.f32 %v2888, 0.5
        %v2893 = vadd.f32 %v2889, 0.5
        %v2894 = vpack.c.bf16 %v2892, %v2890
        %v2895 = vpack.c.bf16 %v2893, %v2891
        %s2896 = scalar_lea.vmem [#allocation8], 1536
        %v2897 = vld [vmem:[%s2896] sm:$0xff]
        %v2898 = vld [vmem:[%s2896 + $0x8] sm:$0xff]
        %v2899 = vld [vmem:[%s2896 + $0x10] sm:$0xff]
        %v2900 = vld [vmem:[%s2896 + $0x18] sm:$0xff]
        %v2901 = vld [vmem:[%s2896 + $0x20] sm:$0xff]
        %v2902 = vld [vmem:[%s2896 + $0x28] sm:$0xff]
        %v2903 = vld [vmem:[%s2896 + $0x30] sm:$0xff]
        %v2904 = vld [vmem:[%s2896 + $0x38] sm:$0xff]
        %v2905 = vld [vmem:[%s2896 + $0x40] sm:$0xff]
        %v2906 = vld [vmem:[%s2896 + $0x48] sm:$0xff]
        %v2907 = vld [vmem:[%s2896 + $0x50] sm:$0xff]
        %v2908 = vld [vmem:[%s2896 + $0x58] sm:$0xff]
        %v2909 = vld [vmem:[%s2896 + $0x60] sm:$0xff]
        %v2910 = vld [vmem:[%s2896 + $0x68] sm:$0xff]
        %v2911 = vld [vmem:[%s2896 + $0x70] sm:$0xff]
        %v2912 = vld [vmem:[%s2896 + $0x78] sm:$0xff]
        %v2913 = vld [vmem:[%s2896 + $0x80] sm:$0xff]
        %v2914 = vld [vmem:[%s2896 + $0x88] sm:$0xff]
        %v2915 = vld [vmem:[%s2896 + $0x90] sm:$0xff]
        %v2916 = vld [vmem:[%s2896 + $0x98] sm:$0xff]
        %v2917 = vld [vmem:[%s2896 + $0xa0] sm:$0xff]
        %v2918 = vld [vmem:[%s2896 + $0xa8] sm:$0xff]
        %v2919 = vld [vmem:[%s2896 + $0xb0] sm:$0xff]
        %v2920 = vld [vmem:[%s2896 + $0xb8] sm:$0xff]
        %v2921 = vld [vmem:[%s2896 + $0xc0] sm:$0xff]
        %v2922 = vld [vmem:[%s2896 + $0xc8] sm:$0xff]
        %v2923 = vld [vmem:[%s2896 + $0xd0] sm:$0xff]
        %v2924 = vld [vmem:[%s2896 + $0xd8] sm:$0xff]
        %v2925 = vld [vmem:[%s2896 + $0xe0] sm:$0xff]
        %v2926 = vld [vmem:[%s2896 + $0xe8] sm:$0xff]
        %v2927 = vld [vmem:[%s2896 + $0xf0] sm:$0xff]
        %v2928 = vld [vmem:[%s2896 + $0xf8] sm:$0xff]
        %s2929 = scalar_lea.vmem [#allocation10], 12
        %v2930 = vld [vmem:[%s2929] sm:$0x3]
        %v2932 = vperm.slane %v2930, 0
        %v2933 = vperm.slane %v2930, 1
        %v2968 = vunpack.c.l.b16 %v2897
        %v2969 = vunpack.c.h.b16 %v2897
        %v2970 = vunpack.c.l.b16 %v2898
        %v2971 = vunpack.c.h.b16 %v2898
        %v2972 = vunpack.c.l.b16 %v2899
        %v2973 = vunpack.c.h.b16 %v2899
        %v2974 = vunpack.c.l.b16 %v2900
        %v2975 = vunpack.c.h.b16 %v2900
        %v2976 = vunpack.c.l.b16 %v2901
        %v2977 = vunpack.c.h.b16 %v2901
        %v2978 = vunpack.c.l.b16 %v2902
        %v2979 = vunpack.c.h.b16 %v2902
        %v2980 = vunpack.c.l.b16 %v2903
        %v2981 = vunpack.c.h.b16 %v2903
        %v2982 = vunpack.c.l.b16 %v2904
        %v2983 = vunpack.c.h.b16 %v2904
        %v2984 = vunpack.c.l.b16 %v2905
        %v2985 = vunpack.c.h.b16 %v2905
        %v2986 = vunpack.c.l.b16 %v2906
        %v2987 = vunpack.c.h.b16 %v2906
        %v2988 = vunpack.c.l.b16 %v2907
        %v2989 = vunpack.c.h.b16 %v2907
        %v2990 = vunpack.c.l.b16 %v2908
        %v2991 = vunpack.c.h.b16 %v2908
        %v2992 = vunpack.c.l.b16 %v2909
        %v2993 = vunpack.c.h.b16 %v2909
        %v2994 = vunpack.c.l.b16 %v2910
        %v2995 = vunpack.c.h.b16 %v2910
        %v2996 = vunpack.c.l.b16 %v2911
        %v2997 = vunpack.c.h.b16 %v2911
        %v2998 = vunpack.c.l.b16 %v2912
        %v2999 = vunpack.c.h.b16 %v2912
        %v3000 = vunpack.c.l.b16 %v2913
        %v3001 = vunpack.c.h.b16 %v2913
        %v3002 = vunpack.c.l.b16 %v2914
        %v3003 = vunpack.c.h.b16 %v2914
        %v3004 = vunpack.c.l.b16 %v2915
        %v3005 = vunpack.c.h.b16 %v2915
        %v3006 = vunpack.c.l.b16 %v2916
        %v3007 = vunpack.c.h.b16 %v2916
        %v3008 = vunpack.c.l.b16 %v2917
        %v3009 = vunpack.c.h.b16 %v2917
        %v3010 = vunpack.c.l.b16 %v2918
        %v3011 = vunpack.c.h.b16 %v2918
        %v3012 = vunpack.c.l.b16 %v2919
        %v3013 = vunpack.c.h.b16 %v2919
        %v3014 = vunpack.c.l.b16 %v2920
        %v3015 = vunpack.c.h.b16 %v2920
        %v3016 = vunpack.c.l.b16 %v2921
        %v3017 = vunpack.c.h.b16 %v2921
        %v3018 = vunpack.c.l.b16 %v2922
        %v3019 = vunpack.c.h.b16 %v2922
        %v3020 = vunpack.c.l.b16 %v2923
        %v3021 = vunpack.c.h.b16 %v2923
        %v3022 = vunpack.c.l.b16 %v2924
        %v3023 = vunpack.c.h.b16 %v2924
        %v3024 = vunpack.c.l.b16 %v2925
        %v3025 = vunpack.c.h.b16 %v2925
        %v3026 = vunpack.c.l.b16 %v2926
        %v3027 = vunpack.c.h.b16 %v2926
        %v3028 = vunpack.c.l.b16 %v2927
        %v3029 = vunpack.c.h.b16 %v2927
        %v3030 = vunpack.c.l.b16 %v2928
        %v3031 = vunpack.c.h.b16 %v2928
        %v3032 = vpack.c.b16 %v2970, %v2968
        %v3033 = vpack.c.b16 %v2971, %v2969
        %v3034 = vpack.c.b16 %v2974, %v2972
        %v3035 = vpack.c.b16 %v2975, %v2973
        %v3036 = vpack.c.b16 %v2978, %v2976
        %v3037 = vpack.c.b16 %v2979, %v2977
        %v3038 = vpack.c.b16 %v2982, %v2980
        %v3039 = vpack.c.b16 %v2983, %v2981
        %v3040 = vpack.c.b16 %v2986, %v2984
        %v3041 = vpack.c.b16 %v2987, %v2985
        %v3042 = vpack.c.b16 %v2990, %v2988
        %v3043 = vpack.c.b16 %v2991, %v2989
        %v3044 = vpack.c.b16 %v2994, %v2992
        %v3045 = vpack.c.b16 %v2995, %v2993
        %v3046 = vpack.c.b16 %v2998, %v2996
        %v3047 = vpack.c.b16 %v2999, %v2997
        %v3048 = vpack.c.b16 %v3002, %v3000
        %v3049 = vpack.c.b16 %v3003, %v3001
        %v3050 = vpack.c.b16 %v3006, %v3004
        %v3051 = vpack.c.b16 %v3007, %v3005
        %v3052 = vpack.c.b16 %v3010, %v3008
        %v3053 = vpack.c.b16 %v3011, %v3009
        %v3054 = vpack.c.b16 %v3014, %v3012
        %v3055 = vpack.c.b16 %v3015, %v3013
        %v3056 = vpack.c.b16 %v3018, %v3016
        %v3057 = vpack.c.b16 %v3019, %v3017
        %v3058 = vpack.c.b16 %v3022, %v3020
        %v3059 = vpack.c.b16 %v3023, %v3021
        %v3060 = vpack.c.b16 %v3026, %v3024
        %v3061 = vpack.c.b16 %v3027, %v3025
        %v3062 = vpack.c.b16 %v3030, %v3028
        %v3063 = vpack.c.b16 %v3031, %v3029
        %3096 = vmatpush.bf16.msra.mxu0 %v3046
        %3097 = vmatpush.bf16.msra.mxu0 %v3044
        %3098 = vmatpush.bf16.msra.mxu0 %v3042
        %3099 = vmatpush.bf16.msra.mxu0 %v3040
        %3100 = vmatpush.bf16.msra.mxu0 %v3038
        %3101 = vmatpush.bf16.msra.mxu0 %v3036
        %3102 = vmatpush.bf16.msra.mxu0 %v3034
        %3103 = vmatpush.bf16.msra.mxu0 %v3032
        %3104 = vmatmul.bf16.gmra.mxu0 %v2894
        %v3105 = vpop.f32.mrf.mxu0
        %v3106 = vadd.f32 %v2932, %v3105
        %v3107 = vpop.f32.mrf.mxu0
        %v3108 = vadd.f32 %v2932, %v3107
        %3109 = vdwg.mxu0
        %3110 = vmatpush.bf16.msra.mxu0 %v3062
        %3111 = vmatpush.bf16.msra.mxu0 %v3060
        %3112 = vmatpush.bf16.msra.mxu0 %v3058
        %3113 = vmatpush.bf16.msra.mxu0 %v3056
        %3114 = vmatpush.bf16.msra.mxu0 %v3054
        %3115 = vmatpush.bf16.msra.mxu0 %v3052
        %3116 = vmatpush.bf16.msra.mxu0 %v3050
        %3117 = vmatpush.bf16.msra.mxu0 %v3048
        %3118 = vmatmul.bf16.gmra.mxu0 %v2895
        %v3119 = vpop.f32.mrf.mxu0
        %v3120 = vadd.f32 %v3106, %v3119
        %v3121 = vpop.f32.mrf.mxu0
        %v3122 = vadd.f32 %v3108, %v3121
        %3123 = vdwg.mxu0
        %3124 = vmatpush.bf16.msra.mxu0 %v3047
        %3125 = vmatpush.bf16.msra.mxu0 %v3045
        %3126 = vmatpush.bf16.msra.mxu0 %v3043
        %3127 = vmatpush.bf16.msra.mxu0 %v3041
        %3128 = vmatpush.bf16.msra.mxu0 %v3039
        %3129 = vmatpush.bf16.msra.mxu0 %v3037
        %3130 = vmatpush.bf16.msra.mxu0 %v3035
        %3131 = vmatpush.bf16.msra.mxu0 %v3033
        %3132 = vmatmul.bf16.gmra.mxu0 %v2894
        %v3133 = vpop.f32.mrf.mxu0
        %v3134 = vadd.f32 %v2933, %v3133
        %v3135 = vpop.f32.mrf.mxu0
        %v3136 = vadd.f32 %v2933, %v3135
        %3137 = vdwg.mxu0
        %3138 = vmatpush.bf16.msra.mxu0 %v3063
        %3139 = vmatpush.bf16.msra.mxu0 %v3061
        %3140 = vmatpush.bf16.msra.mxu0 %v3059
        %3141 = vmatpush.bf16.msra.mxu0 %v3057
        %3142 = vmatpush.bf16.msra.mxu0 %v3055
        %3143 = vmatpush.bf16.msra.mxu0 %v3053
        %3144 = vmatpush.bf16.msra.mxu0 %v3051
        %3145 = vmatpush.bf16.msra.mxu0 %v3049
        %3146 = vmatmul.bf16.gmra.mxu0 %v2895
        %v3147 = vpop.f32.mrf.mxu0
        %v3148 = vadd.f32 %v3134, %v3147
        %v3149 = vpop.f32.mrf.mxu0
        %v3150 = vadd.f32 %v3136, %v3149
        %3151 = vdwg.mxu0
        %v3152 = vmul.f32 %v3120, 0.5
        %v3153 = vmul.f32 %v3148, 0.5
        %v3154 = vmul.f32 %v3122, 0.5
        %v3155 = vmul.f32 %v3150, 0.5
        %v3156 = vtanh.pop %v3152
        %v3157 = vtanh.pop %v3153
        %v3158 = vtanh.pop %v3154
        %v3159 = vtanh.pop %v3155
        %v3160 = vmul.f32 %v3156, 0.5
        %v3161 = vmul.f32 %v3157, 0.5
        %v3162 = vmul.f32 %v3158, 0.5
        %v3163 = vmul.f32 %v3159, 0.5
        %v3164 = vadd.f32 %v3160, 0.5
        %v3165 = vadd.f32 %v3161, 0.5
        %v3166 = vadd.f32 %v3162, 0.5
        %v3167 = vadd.f32 %v3163, 0.5
        %v3168 = vpack.c.bf16 %v3166, %v3164
        %v3169 = vpack.c.bf16 %v3167, %v3165
        %s3170 = scalar_lea.vmem [#allocation8], 1792
        %v3171 = vld [vmem:[%s3170] sm:$0xff]
        %v3172 = vld [vmem:[%s3170 + $0x8] sm:$0xff]
        %v3173 = vld [vmem:[%s3170 + $0x10] sm:$0xff]
        %v3174 = vld [vmem:[%s3170 + $0x18] sm:$0xff]
        %v3175 = vld [vmem:[%s3170 + $0x20] sm:$0xff]
        %v3176 = vld [vmem:[%s3170 + $0x28] sm:$0xff]
        %v3177 = vld [vmem:[%s3170 + $0x30] sm:$0xff]
        %v3178 = vld [vmem:[%s3170 + $0x38] sm:$0xff]
        %v3179 = vld [vmem:[%s3170 + $0x40] sm:$0xff]
        %v3180 = vld [vmem:[%s3170 + $0x48] sm:$0xff]
        %v3181 = vld [vmem:[%s3170 + $0x50] sm:$0xff]
        %v3182 = vld [vmem:[%s3170 + $0x58] sm:$0xff]
        %v3183 = vld [vmem:[%s3170 + $0x60] sm:$0xff]
        %v3184 = vld [vmem:[%s3170 + $0x68] sm:$0xff]
        %v3185 = vld [vmem:[%s3170 + $0x70] sm:$0xff]
        %v3186 = vld [vmem:[%s3170 + $0x78] sm:$0xff]
        %v3187 = vld [vmem:[%s3170 + $0x80] sm:$0xff]
        %v3188 = vld [vmem:[%s3170 + $0x88] sm:$0xff]
        %v3189 = vld [vmem:[%s3170 + $0x90] sm:$0xff]
        %v3190 = vld [vmem:[%s3170 + $0x98] sm:$0xff]
        %v3191 = vld [vmem:[%s3170 + $0xa0] sm:$0xff]
        %v3192 = vld [vmem:[%s3170 + $0xa8] sm:$0xff]
        %v3193 = vld [vmem:[%s3170 + $0xb0] sm:$0xff]
        %v3194 = vld [vmem:[%s3170 + $0xb8] sm:$0xff]
        %v3195 = vld [vmem:[%s3170 + $0xc0] sm:$0xff]
        %v3196 = vld [vmem:[%s3170 + $0xc8] sm:$0xff]
        %v3197 = vld [vmem:[%s3170 + $0xd0] sm:$0xff]
        %v3198 = vld [vmem:[%s3170 + $0xd8] sm:$0xff]
        %v3199 = vld [vmem:[%s3170 + $0xe0] sm:$0xff]
        %v3200 = vld [vmem:[%s3170 + $0xe8] sm:$0xff]
        %v3201 = vld [vmem:[%s3170 + $0xf0] sm:$0xff]
        %v3202 = vld [vmem:[%s3170 + $0xf8] sm:$0xff]
        %s3203 = scalar_lea.vmem [#allocation10], 14
        %v3204 = vld [vmem:[%s3203] sm:$0x3]
        %v3206 = vperm.slane %v3204, 0
        %v3207 = vperm.slane %v3204, 1
        %v3242 = vunpack.c.l.b16 %v3171
        %v3243 = vunpack.c.h.b16 %v3171
        %v3244 = vunpack.c.l.b16 %v3172
        %v3245 = vunpack.c.h.b16 %v3172
        %v3246 = vunpack.c.l.b16 %v3173
        %v3247 = vunpack.c.h.b16 %v3173
        %v3248 = vunpack.c.l.b16 %v3174
        %v3249 = vunpack.c.h.b16 %v3174
        %v3250 = vunpack.c.l.b16 %v3175
        %v3251 = vunpack.c.h.b16 %v3175
        %v3252 = vunpack.c.l.b16 %v3176
        %v3253 = vunpack.c.h.b16 %v3176
        %v3254 = vunpack.c.l.b16 %v3177
        %v3255 = vunpack.c.h.b16 %v3177
        %v3256 = vunpack.c.l.b16 %v3178
        %v3257 = vunpack.c.h.b16 %v3178
        %v3258 = vunpack.c.l.b16 %v3179
        %v3259 = vunpack.c.h.b16 %v3179
        %v3260 = vunpack.c.l.b16 %v3180
        %v3261 = vunpack.c.h.b16 %v3180
        %v3262 = vunpack.c.l.b16 %v3181
        %v3263 = vunpack.c.h.b16 %v3181
        %v3264 = vunpack.c.l.b16 %v3182
        %v3265 = vunpack.c.h.b16 %v3182
        %v3266 = vunpack.c.l.b16 %v3183
        %v3267 = vunpack.c.h.b16 %v3183
        %v3268 = vunpack.c.l.b16 %v3184
        %v3269 = vunpack.c.h.b16 %v3184
        %v3270 = vunpack.c.l.b16 %v3185
        %v3271 = vunpack.c.h.b16 %v3185
        %v3272 = vunpack.c.l.b16 %v3186
        %v3273 = vunpack.c.h.b16 %v3186
        %v3274 = vunpack.c.l.b16 %v3187
        %v3275 = vunpack.c.h.b16 %v3187
        %v3276 = vunpack.c.l.b16 %v3188
        %v3277 = vunpack.c.h.b16 %v3188
        %v3278 = vunpack.c.l.b16 %v3189
        %v3279 = vunpack.c.h.b16 %v3189
        %v3280 = vunpack.c.l.b16 %v3190
        %v3281 = vunpack.c.h.b16 %v3190
        %v3282 = vunpack.c.l.b16 %v3191
        %v3283 = vunpack.c.h.b16 %v3191
        %v3284 = vunpack.c.l.b16 %v3192
        %v3285 = vunpack.c.h.b16 %v3192
        %v3286 = vunpack.c.l.b16 %v3193
        %v3287 = vunpack.c.h.b16 %v3193
        %v3288 = vunpack.c.l.b16 %v3194
        %v3289 = vunpack.c.h.b16 %v3194
        %v3290 = vunpack.c.l.b16 %v3195
        %v3291 = vunpack.c.h.b16 %v3195
        %v3292 = vunpack.c.l.b16 %v3196
        %v3293 = vunpack.c.h.b16 %v3196
        %v3294 = vunpack.c.l.b16 %v3197
        %v3295 = vunpack.c.h.b16 %v3197
        %v3296 = vunpack.c.l.b16 %v3198
        %v3297 = vunpack.c.h.b16 %v3198
        %v3298 = vunpack.c.l.b16 %v3199
        %v3299 = vunpack.c.h.b16 %v3199
        %v3300 = vunpack.c.l.b16 %v3200
        %v3301 = vunpack.c.h.b16 %v3200
        %v3302 = vunpack.c.l.b16 %v3201
        %v3303 = vunpack.c.h.b16 %v3201
        %v3304 = vunpack.c.l.b16 %v3202
        %v3305 = vunpack.c.h.b16 %v3202
        %v3306 = vpack.c.b16 %v3244, %v3242
        %v3307 = vpack.c.b16 %v3245, %v3243
        %v3308 = vpack.c.b16 %v3248, %v3246
        %v3309 = vpack.c.b16 %v3249, %v3247
        %v3310 = vpack.c.b16 %v3252, %v3250
        %v3311 = vpack.c.b16 %v3253, %v3251
        %v3312 = vpack.c.b16 %v3256, %v3254
        %v3313 = vpack.c.b16 %v3257, %v3255
        %v3314 = vpack.c.b16 %v3260, %v3258
        %v3315 = vpack.c.b16 %v3261, %v3259
        %v3316 = vpack.c.b16 %v3264, %v3262
        %v3317 = vpack.c.b16 %v3265, %v3263
        %v3318 = vpack.c.b16 %v3268, %v3266
        %v3319 = vpack.c.b16 %v3269, %v3267
        %v3320 = vpack.c.b16 %v3272, %v3270
        %v3321 = vpack.c.b16 %v3273, %v3271
        %v3322 = vpack.c.b16 %v3276, %v3274
        %v3323 = vpack.c.b16 %v3277, %v3275
        %v3324 = vpack.c.b16 %v3280, %v3278
        %v3325 = vpack.c.b16 %v3281, %v3279
        %v3326 = vpack.c.b16 %v3284, %v3282
        %v3327 = vpack.c.b16 %v3285, %v3283
        %v3328 = vpack.c.b16 %v3288, %v3286
        %v3329 = vpack.c.b16 %v3289, %v3287
        %v3330 = vpack.c.b16 %v3292, %v3290
        %v3331 = vpack.c.b16 %v3293, %v3291
        %v3332 = vpack.c.b16 %v3296, %v3294
        %v3333 = vpack.c.b16 %v3297, %v3295
        %v3334 = vpack.c.b16 %v3300, %v3298
        %v3335 = vpack.c.b16 %v3301, %v3299
        %v3336 = vpack.c.b16 %v3304, %v3302
        %v3337 = vpack.c.b16 %v3305, %v3303
        %3370 = vmatpush.bf16.msra.mxu0 %v3320
        %3371 = vmatpush.bf16.msra.mxu0 %v3318
        %3372 = vmatpush.bf16.msra.mxu0 %v3316
        %3373 = vmatpush.bf16.msra.mxu0 %v3314
        %3374 = vmatpush.bf16.msra.mxu0 %v3312
        %3375 = vmatpush.bf16.msra.mxu0 %v3310
        %3376 = vmatpush.bf16.msra.mxu0 %v3308
        %3377 = vmatpush.bf16.msra.mxu0 %v3306
        %3378 = vmatmul.bf16.gmra.mxu0 %v3168
        %v3379 = vpop.f32.mrf.mxu0
        %v3380 = vadd.f32 %v3206, %v3379
        %v3381 = vpop.f32.mrf.mxu0
        %v3382 = vadd.f32 %v3206, %v3381
        %3383 = vdwg.mxu0
        %3384 = vmatpush.bf16.msra.mxu0 %v3336
        %3385 = vmatpush.bf16.msra.mxu0 %v3334
        %3386 = vmatpush.bf16.msra.mxu0 %v3332
        %3387 = vmatpush.bf16.msra.mxu0 %v3330
        %3388 = vmatpush.bf16.msra.mxu0 %v3328
        %3389 = vmatpush.bf16.msra.mxu0 %v3326
        %3390 = vmatpush.bf16.msra.mxu0 %v3324
        %3391 = vmatpush.bf16.msra.mxu0 %v3322
        %3392 = vmatmul.bf16.gmra.mxu0 %v3169
        %v3393 = vpop.f32.mrf.mxu0
        %v3394 = vadd.f32 %v3380, %v3393
        %v3395 = vpop.f32.mrf.mxu0
        %v3396 = vadd.f32 %v3382, %v3395
        %3397 = vdwg.mxu0
        %3398 = vmatpush.bf16.msra.mxu0 %v3321
        %3399 = vmatpush.bf16.msra.mxu0 %v3319
        %3400 = vmatpush.bf16.msra.mxu0 %v3317
        %3401 = vmatpush.bf16.msra.mxu0 %v3315
        %3402 = vmatpush.bf16.msra.mxu0 %v3313
        %3403 = vmatpush.bf16.msra.mxu0 %v3311
        %3404 = vmatpush.bf16.msra.mxu0 %v3309
        %3405 = vmatpush.bf16.msra.mxu0 %v3307
        %3406 = vmatmul.bf16.gmra.mxu0 %v3168
        %v3407 = vpop.f32.mrf.mxu0
        %v3408 = vadd.f32 %v3207, %v3407
        %v3409 = vpop.f32.mrf.mxu0
        %v3410 = vadd.f32 %v3207, %v3409
        %3411 = vdwg.mxu0
        %3412 = vmatpush.bf16.msra.mxu0 %v3337
        %3413 = vmatpush.bf16.msra.mxu0 %v3335
        %3414 = vmatpush.bf16.msra.mxu0 %v3333
        %3415 = vmatpush.bf16.msra.mxu0 %v3331
        %3416 = vmatpush.bf16.msra.mxu0 %v3329
        %3417 = vmatpush.bf16.msra.mxu0 %v3327
        %3418 = vmatpush.bf16.msra.mxu0 %v3325
        %3419 = vmatpush.bf16.msra.mxu0 %v3323
        %3420 = vmatmul.bf16.gmra.mxu0 %v3169
        %v3421 = vpop.f32.mrf.mxu0
        %v3422 = vadd.f32 %v3408, %v3421
        %v3423 = vpop.f32.mrf.mxu0
        %v3424 = vadd.f32 %v3410, %v3423
        %3425 = vdwg.mxu0
        %v3426 = vmul.f32 %v3394, 0.5
        %v3427 = vmul.f32 %v3422, 0.5
        %v3428 = vmul.f32 %v3396, 0.5
        %v3429 = vmul.f32 %v3424, 0.5
        %v3430 = vtanh.pop %v3426
        %v3431 = vtanh.pop %v3427
        %v3432 = vtanh.pop %v3428
        %v3433 = vtanh.pop %v3429
        %v3434 = vmul.f32 %v3430, 0.5
        %v3435 = vmul.f32 %v3431, 0.5
        %v3436 = vmul.f32 %v3432, 0.5
        %v3437 = vmul.f32 %v3433, 0.5
        %v3438 = vadd.f32 %v3434, 0.5
        %v3439 = vadd.f32 %v3435, 0.5
        %v3440 = vadd.f32 %v3436, 0.5
        %v3441 = vadd.f32 %v3437, 0.5
        %v3442 = vpack.c.bf16 %v3440, %v3438
        %v3443 = vpack.c.bf16 %v3441, %v3439
        %s3444 = scalar_lea.vmem [#allocation8], 2048
        %v3445 = vld [vmem:[%s3444] sm:$0xff]
        %v3446 = vld [vmem:[%s3444 + $0x8] sm:$0xff]
        %v3447 = vld [vmem:[%s3444 + $0x10] sm:$0xff]
        %v3448 = vld [vmem:[%s3444 + $0x18] sm:$0xff]
        %v3449 = vld [vmem:[%s3444 + $0x20] sm:$0xff]
        %v3450 = vld [vmem:[%s3444 + $0x28] sm:$0xff]
        %v3451 = vld [vmem:[%s3444 + $0x30] sm:$0xff]
        %v3452 = vld [vmem:[%s3444 + $0x38] sm:$0xff]
        %v3453 = vld [vmem:[%s3444 + $0x40] sm:$0xff]
        %v3454 = vld [vmem:[%s3444 + $0x48] sm:$0xff]
        %v3455 = vld [vmem:[%s3444 + $0x50] sm:$0xff]
        %v3456 = vld [vmem:[%s3444 + $0x58] sm:$0xff]
        %v3457 = vld [vmem:[%s3444 + $0x60] sm:$0xff]
        %v3458 = vld [vmem:[%s3444 + $0x68] sm:$0xff]
        %v3459 = vld [vmem:[%s3444 + $0x70] sm:$0xff]
        %v3460 = vld [vmem:[%s3444 + $0x78] sm:$0xff]
        %v3461 = vld [vmem:[%s3444 + $0x80] sm:$0xff]
        %v3462 = vld [vmem:[%s3444 + $0x88] sm:$0xff]
        %v3463 = vld [vmem:[%s3444 + $0x90] sm:$0xff]
        %v3464 = vld [vmem:[%s3444 + $0x98] sm:$0xff]
        %v3465 = vld [vmem:[%s3444 + $0xa0] sm:$0xff]
        %v3466 = vld [vmem:[%s3444 + $0xa8] sm:$0xff]
        %v3467 = vld [vmem:[%s3444 + $0xb0] sm:$0xff]
        %v3468 = vld [vmem:[%s3444 + $0xb8] sm:$0xff]
        %v3469 = vld [vmem:[%s3444 + $0xc0] sm:$0xff]
        %v3470 = vld [vmem:[%s3444 + $0xc8] sm:$0xff]
        %v3471 = vld [vmem:[%s3444 + $0xd0] sm:$0xff]
        %v3472 = vld [vmem:[%s3444 + $0xd8] sm:$0xff]
        %v3473 = vld [vmem:[%s3444 + $0xe0] sm:$0xff]
        %v3474 = vld [vmem:[%s3444 + $0xe8] sm:$0xff]
        %v3475 = vld [vmem:[%s3444 + $0xf0] sm:$0xff]
        %v3476 = vld [vmem:[%s3444 + $0xf8] sm:$0xff]
        %s3477 = scalar_lea.vmem [#allocation10], 16
        %v3478 = vld [vmem:[%s3477] sm:$0x3]
        %v3480 = vperm.slane %v3478, 0
        %v3481 = vperm.slane %v3478, 1
        %v3516 = vunpack.c.l.b16 %v3445
        %v3517 = vunpack.c.h.b16 %v3445
        %v3518 = vunpack.c.l.b16 %v3446
        %v3519 = vunpack.c.h.b16 %v3446
        %v3520 = vunpack.c.l.b16 %v3447
        %v3521 = vunpack.c.h.b16 %v3447
        %v3522 = vunpack.c.l.b16 %v3448
        %v3523 = vunpack.c.h.b16 %v3448
        %v3524 = vunpack.c.l.b16 %v3449
        %v3525 = vunpack.c.h.b16 %v3449
        %v3526 = vunpack.c.l.b16 %v3450
        %v3527 = vunpack.c.h.b16 %v3450
        %v3528 = vunpack.c.l.b16 %v3451
        %v3529 = vunpack.c.h.b16 %v3451
        %v3530 = vunpack.c.l.b16 %v3452
        %v3531 = vunpack.c.h.b16 %v3452
        %v3532 = vunpack.c.l.b16 %v3453
        %v3533 = vunpack.c.h.b16 %v3453
        %v3534 = vunpack.c.l.b16 %v3454
        %v3535 = vunpack.c.h.b16 %v3454
        %v3536 = vunpack.c.l.b16 %v3455
        %v3537 = vunpack.c.h.b16 %v3455
        %v3538 = vunpack.c.l.b16 %v3456
        %v3539 = vunpack.c.h.b16 %v3456
        %v3540 = vunpack.c.l.b16 %v3457
        %v3541 = vunpack.c.h.b16 %v3457
        %v3542 = vunpack.c.l.b16 %v3458
        %v3543 = vunpack.c.h.b16 %v3458
        %v3544 = vunpack.c.l.b16 %v3459
        %v3545 = vunpack.c.h.b16 %v3459
        %v3546 = vunpack.c.l.b16 %v3460
        %v3547 = vunpack.c.h.b16 %v3460
        %v3548 = vunpack.c.l.b16 %v3461
        %v3549 = vunpack.c.h.b16 %v3461
        %v3550 = vunpack.c.l.b16 %v3462
        %v3551 = vunpack.c.h.b16 %v3462
        %v3552 = vunpack.c.l.b16 %v3463
        %v3553 = vunpack.c.h.b16 %v3463
        %v3554 = vunpack.c.l.b16 %v3464
        %v3555 = vunpack.c.h.b16 %v3464
        %v3556 = vunpack.c.l.b16 %v3465
        %v3557 = vunpack.c.h.b16 %v3465
        %v3558 = vunpack.c.l.b16 %v3466
        %v3559 = vunpack.c.h.b16 %v3466
        %v3560 = vunpack.c.l.b16 %v3467
        %v3561 = vunpack.c.h.b16 %v3467
        %v3562 = vunpack.c.l.b16 %v3468
        %v3563 = vunpack.c.h.b16 %v3468
        %v3564 = vunpack.c.l.b16 %v3469
        %v3565 = vunpack.c.h.b16 %v3469
        %v3566 = vunpack.c.l.b16 %v3470
        %v3567 = vunpack.c.h.b16 %v3470
        %v3568 = vunpack.c.l.b16 %v3471
        %v3569 = vunpack.c.h.b16 %v3471
        %v3570 = vunpack.c.l.b16 %v3472
        %v3571 = vunpack.c.h.b16 %v3472
        %v3572 = vunpack.c.l.b16 %v3473
        %v3573 = vunpack.c.h.b16 %v3473
        %v3574 = vunpack.c.l.b16 %v3474
        %v3575 = vunpack.c.h.b16 %v3474
        %v3576 = vunpack.c.l.b16 %v3475
        %v3577 = vunpack.c.h.b16 %v3475
        %v3578 = vunpack.c.l.b16 %v3476
        %v3579 = vunpack.c.h.b16 %v3476
        %v3580 = vpack.c.b16 %v3518, %v3516
        %v3581 = vpack.c.b16 %v3519, %v3517
        %v3582 = vpack.c.b16 %v3522, %v3520
        %v3583 = vpack.c.b16 %v3523, %v3521
        %v3584 = vpack.c.b16 %v3526, %v3524
        %v3585 = vpack.c.b16 %v3527, %v3525
        %v3586 = vpack.c.b16 %v3530, %v3528
        %v3587 = vpack.c.b16 %v3531, %v3529
        %v3588 = vpack.c.b16 %v3534, %v3532
        %v3589 = vpack.c.b16 %v3535, %v3533
        %v3590 = vpack.c.b16 %v3538, %v3536
        %v3591 = vpack.c.b16 %v3539, %v3537
        %v3592 = vpack.c.b16 %v3542, %v3540
        %v3593 = vpack.c.b16 %v3543, %v3541
        %v3594 = vpack.c.b16 %v3546, %v3544
        %v3595 = vpack.c.b16 %v3547, %v3545
        %v3596 = vpack.c.b16 %v3550, %v3548
        %v3597 = vpack.c.b16 %v3551, %v3549
        %v3598 = vpack.c.b16 %v3554, %v3552
        %v3599 = vpack.c.b16 %v3555, %v3553
        %v3600 = vpack.c.b16 %v3558, %v3556
        %v3601 = vpack.c.b16 %v3559, %v3557
        %v3602 = vpack.c.b16 %v3562, %v3560
        %v3603 = vpack.c.b16 %v3563, %v3561
        %v3604 = vpack.c.b16 %v3566, %v3564
        %v3605 = vpack.c.b16 %v3567, %v3565
        %v3606 = vpack.c.b16 %v3570, %v3568
        %v3607 = vpack.c.b16 %v3571, %v3569
        %v3608 = vpack.c.b16 %v3574, %v3572
        %v3609 = vpack.c.b16 %v3575, %v3573
        %v3610 = vpack.c.b16 %v3578, %v3576
        %v3611 = vpack.c.b16 %v3579, %v3577
        %3644 = vmatpush.bf16.msra.mxu0 %v3594
        %3645 = vmatpush.bf16.msra.mxu0 %v3592
        %3646 = vmatpush.bf16.msra.mxu0 %v3590
        %3647 = vmatpush.bf16.msra.mxu0 %v3588
        %3648 = vmatpush.bf16.msra.mxu0 %v3586
        %3649 = vmatpush.bf16.msra.mxu0 %v3584
        %3650 = vmatpush.bf16.msra.mxu0 %v3582
        %3651 = vmatpush.bf16.msra.mxu0 %v3580
        %3652 = vmatmul.bf16.gmra.mxu0 %v3442
        %v3653 = vpop.f32.mrf.mxu0
        %v3654 = vadd.f32 %v3480, %v3653
        %v3655 = vpop.f32.mrf.mxu0
        %v3656 = vadd.f32 %v3480, %v3655
        %3657 = vdwg.mxu0
        %3658 = vmatpush.bf16.msra.mxu0 %v3610
        %3659 = vmatpush.bf16.msra.mxu0 %v3608
        %3660 = vmatpush.bf16.msra.mxu0 %v3606
        %3661 = vmatpush.bf16.msra.mxu0 %v3604
        %3662 = vmatpush.bf16.msra.mxu0 %v3602
        %3663 = vmatpush.bf16.msra.mxu0 %v3600
        %3664 = vmatpush.bf16.msra.mxu0 %v3598
        %3665 = vmatpush.bf16.msra.mxu0 %v3596
        %3666 = vmatmul.bf16.gmra.mxu0 %v3443
        %v3667 = vpop.f32.mrf.mxu0
        %v3668 = vadd.f32 %v3654, %v3667
        %v3669 = vpop.f32.mrf.mxu0
        %v3670 = vadd.f32 %v3656, %v3669
        %3671 = vdwg.mxu0
        %3672 = vmatpush.bf16.msra.mxu0 %v3595
        %3673 = vmatpush.bf16.msra.mxu0 %v3593
        %3674 = vmatpush.bf16.msra.mxu0 %v3591
        %3675 = vmatpush.bf16.msra.mxu0 %v3589
        %3676 = vmatpush.bf16.msra.mxu0 %v3587
        %3677 = vmatpush.bf16.msra.mxu0 %v3585
        %3678 = vmatpush.bf16.msra.mxu0 %v3583
        %3679 = vmatpush.bf16.msra.mxu0 %v3581
        %3680 = vmatmul.bf16.gmra.mxu0 %v3442
        %v3681 = vpop.f32.mrf.mxu0
        %v3682 = vadd.f32 %v3481, %v3681
        %v3683 = vpop.f32.mrf.mxu0
        %v3684 = vadd.f32 %v3481, %v3683
        %3685 = vdwg.mxu0
        %3686 = vmatpush.bf16.msra.mxu0 %v3611
        %3687 = vmatpush.bf16.msra.mxu0 %v3609
        %3688 = vmatpush.bf16.msra.mxu0 %v3607
        %3689 = vmatpush.bf16.msra.mxu0 %v3605
        %3690 = vmatpush.bf16.msra.mxu0 %v3603
        %3691 = vmatpush.bf16.msra.mxu0 %v3601
        %3692 = vmatpush.bf16.msra.mxu0 %v3599
        %3693 = vmatpush.bf16.msra.mxu0 %v3597
        %3694 = vmatmul.bf16.gmra.mxu0 %v3443
        %v3695 = vpop.f32.mrf.mxu0
        %v3696 = vadd.f32 %v3682, %v3695
        %v3697 = vpop.f32.mrf.mxu0
        %v3698 = vadd.f32 %v3684, %v3697
        %3699 = vdwg.mxu0
        %v3700 = vmul.f32 %v3668, 0.5
        %v3701 = vmul.f32 %v3696, 0.5
        %v3702 = vmul.f32 %v3670, 0.5
        %v3703 = vmul.f32 %v3698, 0.5
        %v3704 = vtanh.pop %v3700
        %v3705 = vtanh.pop %v3701
        %v3706 = vtanh.pop %v3702
        %v3707 = vtanh.pop %v3703
        %v3708 = vmul.f32 %v3704, 0.5
        %v3709 = vmul.f32 %v3705, 0.5
        %v3710 = vmul.f32 %v3706, 0.5
        %v3711 = vmul.f32 %v3707, 0.5
        %v3712 = vadd.f32 %v3708, 0.5
        %v3713 = vadd.f32 %v3709, 0.5
        %v3714 = vadd.f32 %v3710, 0.5
        %v3715 = vadd.f32 %v3711, 0.5
        %v3716 = vpack.c.bf16 %v3714, %v3712
        %v3717 = vpack.c.bf16 %v3715, %v3713
        %v3718 = vld [vmem:[#allocation11] sm:$0xf]
        %v3719 = vld [vmem:[#allocation11 + $0x4] sm:$0xf]
        %v3720 = vld [vmem:[#allocation11 + $0x8] sm:$0xf]
        %v3721 = vld [vmem:[#allocation11 + $0xc] sm:$0xf]
        %v3722 = vld [vmem:[#allocation11 + $0x10] sm:$0xf]
        %v3723 = vld [vmem:[#allocation11 + $0x14] sm:$0xf]
        %v3724 = vld [vmem:[#allocation11 + $0x18] sm:$0xf]
        %v3725 = vld [vmem:[#allocation11 + $0x1c] sm:$0xf]
        %v3726 = vld [vmem:[#allocation11 + $0x20] sm:$0xf]
        %v3727 = vld [vmem:[#allocation11 + $0x24] sm:$0xf]
        %v3728 = vld [vmem:[#allocation11 + $0x28] sm:$0xf]
        %v3729 = vld [vmem:[#allocation11 + $0x2c] sm:$0xf]
        %v3730 = vld [vmem:[#allocation11 + $0x30] sm:$0xf]
        %v3731 = vld [vmem:[#allocation11 + $0x34] sm:$0xf]
        %v3732 = vld [vmem:[#allocation11 + $0x38] sm:$0xf]
        %v3733 = vld [vmem:[#allocation11 + $0x3c] sm:$0xf]
        %v3734 = vld [vmem:[#allocation11 + $0x40] sm:$0xf]
        %v3735 = vld [vmem:[#allocation11 + $0x44] sm:$0xf]
        %v3736 = vld [vmem:[#allocation11 + $0x48] sm:$0xf]
        %v3737 = vld [vmem:[#allocation11 + $0x4c] sm:$0xf]
        %v3738 = vld [vmem:[#allocation11 + $0x50] sm:$0xf]
        %v3739 = vld [vmem:[#allocation11 + $0x54] sm:$0xf]
        %v3740 = vld [vmem:[#allocation11 + $0x58] sm:$0xf]
        %v3741 = vld [vmem:[#allocation11 + $0x5c] sm:$0xf]
        %v3742 = vld [vmem:[#allocation11 + $0x60] sm:$0xf]
        %v3743 = vld [vmem:[#allocation11 + $0x64] sm:$0xf]
        %v3744 = vld [vmem:[#allocation11 + $0x68] sm:$0xf]
        %v3745 = vld [vmem:[#allocation11 + $0x6c] sm:$0xf]
        %v3746 = vld [vmem:[#allocation11 + $0x70] sm:$0xf]
        %v3747 = vld [vmem:[#allocation11 + $0x74] sm:$0xf]
        %v3748 = vld [vmem:[#allocation11 + $0x78] sm:$0xf]
        %v3749 = vld [vmem:[#allocation11 + $0x7c] sm:$0xf]
        %v3751 = vperm.slane %v399, 0
        %v3785 = vunpack.c.l.b16 %v3718
        %v3786 = vunpack.c.l.b16 %v3719
        %v3787 = vunpack.c.l.b16 %v3720
        %v3788 = vunpack.c.l.b16 %v3721
        %v3789 = vunpack.c.l.b16 %v3722
        %v3790 = vunpack.c.l.b16 %v3723
        %v3791 = vunpack.c.l.b16 %v3724
        %v3792 = vunpack.c.l.b16 %v3725
        %v3793 = vunpack.c.l.b16 %v3726
        %v3794 = vunpack.c.l.b16 %v3727
        %v3795 = vunpack.c.l.b16 %v3728
        %v3796 = vunpack.c.l.b16 %v3729
        %v3797 = vunpack.c.l.b16 %v3730
        %v3798 = vunpack.c.l.b16 %v3731
        %v3799 = vunpack.c.l.b16 %v3732
        %v3800 = vunpack.c.l.b16 %v3733
        %v3801 = vunpack.c.l.b16 %v3734
        %v3802 = vunpack.c.l.b16 %v3735
        %v3803 = vunpack.c.l.b16 %v3736
        %v3804 = vunpack.c.l.b16 %v3737
        %v3805 = vunpack.c.l.b16 %v3738
        %v3806 = vunpack.c.l.b16 %v3739
        %v3807 = vunpack.c.l.b16 %v3740
        %v3808 = vunpack.c.l.b16 %v3741
        %v3809 = vunpack.c.l.b16 %v3742
        %v3810 = vunpack.c.l.b16 %v3743
        %v3811 = vunpack.c.l.b16 %v3744
        %v3812 = vunpack.c.l.b16 %v3745
        %v3813 = vunpack.c.l.b16 %v3746
        %v3814 = vunpack.c.l.b16 %v3747
        %v3815 = vunpack.c.l.b16 %v3748
        %v3816 = vunpack.c.l.b16 %v3749
        %v3817 = vpack.c.b16 %v3786, %v3785
        %v3818 = vpack.c.b16 %v3788, %v3787
        %v3819 = vpack.c.b16 %v3790, %v3789
        %v3820 = vpack.c.b16 %v3792, %v3791
        %v3821 = vpack.c.b16 %v3794, %v3793
        %v3822 = vpack.c.b16 %v3796, %v3795
        %v3823 = vpack.c.b16 %v3798, %v3797
        %v3824 = vpack.c.b16 %v3800, %v3799
        %v3825 = vpack.c.b16 %v3802, %v3801
        %v3826 = vpack.c.b16 %v3804, %v3803
        %v3827 = vpack.c.b16 %v3806, %v3805
        %v3828 = vpack.c.b16 %v3808, %v3807
        %v3829 = vpack.c.b16 %v3810, %v3809
        %v3830 = vpack.c.b16 %v3812, %v3811
        %v3831 = vpack.c.b16 %v3814, %v3813
        %v3832 = vpack.c.b16 %v3816, %v3815
        %3849 = vmatpush.bf16.msra.mxu0 %v3824
        %3850 = vmatpush.bf16.msra.mxu0 %v3823
        %3851 = vmatpush.bf16.msra.mxu0 %v3822
        %3852 = vmatpush.bf16.msra.mxu0 %v3821
        %3853 = vmatpush.bf16.msra.mxu0 %v3820
        %3854 = vmatpush.bf16.msra.mxu0 %v3819
        %3855 = vmatpush.bf16.msra.mxu0 %v3818
        %3856 = vmatpush.bf16.msra.mxu0 %v3817
        %3857 = vmatmul.bf16.gmra.mxu0 %v3716
        %v3858 = vpop.f32.mrf.mxu0
        %v3859 = vadd.f32 %v3751, %v3858
        %v3860 = vpop.f32.mrf.mxu0
        %v3861 = vadd.f32 %v3751, %v3860
        %3862 = vdwg.mxu0
        %3863 = vmatpush.bf16.msra.mxu0 %v3832
        %3864 = vmatpush.bf16.msra.mxu0 %v3831
        %3865 = vmatpush.bf16.msra.mxu0 %v3830
        %3866 = vmatpush.bf16.msra.mxu0 %v3829
        %3867 = vmatpush.bf16.msra.mxu0 %v3828
        %3868 = vmatpush.bf16.msra.mxu0 %v3827
        %3869 = vmatpush.bf16.msra.mxu0 %v3826
        %3870 = vmatpush.bf16.msra.mxu0 %v3825
        %3871 = vmatmul.bf16.gmra.mxu0 %v3717
        %v3872 = vpop.f32.mrf.mxu0
        %v3873 = vadd.f32 %v3859, %v3872
        %v3874 = vpop.f32.mrf.mxu0
        %v3875 = vadd.f32 %v3861, %v3874
        %3876 = vdwg.mxu0
        %3877 = vst [vmem:[%s394] sm:$0xff] %v3873
        %3878 = vst [vmem:[%s394 + $0x8] sm:$0xff] %v3875
        %s3879 = sand.u32 %s187, 1
        %s3880 = scalar_lea.sflag [#allocation4], %s3879
        %s3881 = sand.u32 %s187, 1
        %s3882 = smul.addr %s3881, 16
        %s3883 = scalar_lea.vmem [#allocation14], %s3882
        // Predicated region
        $region77: #{tpu_custom_call.1} parent=47 // pred_check
          %p3884 = pneg %p197
        $region78: #{tpu_custom_call.1} parent=47 // pred_check_branch
          %3886 = sbr.rel (%p3884) target = $region80
        $region79: #{tpu_custom_call.1} parent=47 // pred_region
          %s3887 = smul.u32 2, %s27
          %3889 = vsyncadd %s3880, 0
          %s3890 = smul.addr %s3887, 8
          %s3891 = scalar_lea.hbm %s7, %s3890
          %s3892 = sshll.u32 %s3883, 4
          %s3893 = int_to_ptr.vmem [resolvable:$true] %s3892
          %s3894 = sshll.u32 %s3891, 4
          %s3895 = int_to_ptr.hbm [resolvable:$true] %s3894
          %3900 = dma.vmem_to_hbm [thread:$0]  %s3893, 256, %s3895, %s3880, 128, 128, 8
        $region80: #{tpu_custom_call.1} parent=47 // pred_fallthru
          _
      $region48: #{tpu_custom_call.1} parent=5 // pred_fallthru
        _
      %p3901 = scmp.le.s32.totalorder 2, %s22
      // Predicated region
      $region81: #{tpu_custom_call.1} parent=5 // pred_check
        %p3902 = pneg %p3901
      $region82: #{tpu_custom_call.1} parent=5 // pred_check_branch
        %3904 = sbr.rel (%p3902) target = $region84
      $region83: #{tpu_custom_call.1} parent=5 // pred_region
        %s3905 = ssub.s32 %s22, 2
        // Predicated region
        $region85: #{tpu_custom_call.1} parent=83 // pred_check
          %p3906 = pneg %p203
        $region86: #{tpu_custom_call.1} parent=83 // pred_check_branch
          %3908 = sbr.rel (%p3906) target = $region88
        $region87: #{tpu_custom_call.1} parent=83 // pred_region
          %s3909 = sand.u32 %s188, 1
          %s3910 = scalar_lea.sflag [#allocation4], %s3909
          %s3911 = sand.u32 %s188, 1
          %s3912 = smul.addr %s3911, 16
          %s3913 = scalar_lea.vmem [#allocation14], %s3912
          %3915 = dma.done %s3910, 256
        $region88: #{tpu_custom_call.1} parent=83 // pred_fallthru
          _
      $region84: #{tpu_custom_call.1} parent=5 // pred_fallthru
        _
    $region6: #{tpu_custom_call.1} parent=1 // loop_footer
      %s26 = sadd.s32 1, %s22
    $region7: #{tpu_custom_call.1} parent=1 // loop_footer_branch
      %21 = sbr.rel target = $region3
    $region8: #{tpu_custom_call.1} parent=1 // loop_exit
      _
    %3916 = vsyncpa [#allocation3], 1
    %s3917 = scalar_lea.sflag [#allocation3], 1
    %3918 = vsyncpa %s3917, 1
    %3919 = vsyncpa [#allocation6], 1
    %3920 = vsyncpa [#allocation9], 1
    %3921 = vsyncpa [#allocation12], 1
    %3922 = vsyncpa [#allocation4], 1
    %s3923 = scalar_lea.sflag [#allocation4], 1
    %3924 = vsyncpa %s3923, 1

</llo_original>
